<compile_context>
chip_gen: v7x
topology: tpu7x:2x2x1
jax: 0.10.0
libtpu: 0.0.40
codegen_flags: <defaults>
</compile_context>

<pallas_src>
import functools

import jax
import jax.numpy as jnp
from jax.experimental import pallas as pl
from jax.experimental.pallas import tpu as pltpu


def _shifted_planes(center_f32, col, width):
    """dx = -1 / +1 neighbour planes of a row-flattened image window.

    Built with XLU sublane rolls (pltpu.roll) + a boundary-column mask; the
    wrap-around rows of the roll always land on a masked column (the window
    row count is a multiple of `width`), so no extra fixup is needed.
    """
    n = center_f32.shape[0]
    left = pltpu.roll(center_f32, 1, 0)              # row p <- p-1
    left = jnp.where(col == 0, 0.0, left)            # image left edge -> 0
    right = pltpu.roll(center_f32, n - 1, 0)         # row p <- p+1
    right = jnp.where(col == width - 1, 0.0, right)  # image right edge -> 0
    return left, right


def _simfusion_kernel(W, xm_ref, xt_ref, xb_ref, ym_ref, yt_ref, yb_ref,
                      w1_ref, w2_ref, sb_ref, out_ref):
    """One (batch, row-band) tile per grid step (all refs row-flattened).

    xm_ref : (B0*W, C) f32   band rows of x (also the residual)
    xt_ref : (2*W,  C) f32   2 image rows above the band (ignored for band 0)
    xb_ref : (2*W,  C) f32   2 image rows below the band (ignored for last)
    ym/yt/yb_ref             same for y
    w1_ref : (3, 6C, C) bf16 conv1 weights, [ky, (x|y, kx, ci), co]
    w2_ref : (3, 3C, C) bf16 conv2 weights, [ky, (kx, ci), co]
    sb_ref : (4, C)     f32  packed folded BN params [s1, b1, s2, b2]
    out_ref: (B0*W, C)  f32
    """
    RW, C = out_ref.shape                 # RW = band_rows * W
    n1 = RW + 4 * W                       # conv1 input window rows
    r1 = RW + 2 * W                       # conv1 output rows (h1 + 1-row halo)

    band = pl.program_id(1)
    first = band == 0
    last = band == pl.num_programs(1) - 1

    # ---- input windows: band + 2-row halos, halo rows outside the image
    #      zeroed in registers (no scratch, no HBM zero-pad round trip) ------
    xwin = jnp.concatenate(
        [jnp.where(first, 0.0, xt_ref[...]), xm_ref[...],
         jnp.where(last, 0.0, xb_ref[...])], axis=0)          # (n1, C) f32
    ywin = jnp.concatenate(
        [jnp.where(first, 0.0, yt_ref[...]), ym_ref[...],
         jnp.where(last, 0.0, yb_ref[...])], axis=0)

    col1 = jax.lax.broadcasted_iota(jnp.int32, (n1, 1), 0) % W
    xl, xr = _shifted_planes(xwin, col1, W)
    yl, yr = _shifted_planes(ywin, col1, W)

    # dx taps fused into K; slab built ONCE, dy loop only slices leading rows.
    slab1 = jnp.concatenate(
        [t.astype(jnp.bfloat16) for t in (xl, xwin, xr, yl, ywin, yr)],
        axis=-1)                                              # (n1, 6C) bf16

    # ---- conv1 (3x3, 2C->C) + BN1 + ReLU over r1 rows ----------------------
    acc1 = jnp.dot(slab1[0:r1], w1_ref[0],
                   preferred_element_type=jnp.float32)
    for ky in (1, 2):                      # 3 MXU pushes, K = 6*C each
        acc1 = acc1 + jnp.dot(slab1[ky * W:ky * W + r1], w1_ref[ky],
                              preferred_element_type=jnp.float32)

    sb = sb_ref[...]                                          # (4, C) f32
    h1 = jnp.maximum(acc1 * sb[0:1] + sb[1:2], 0.0)           # (r1, C) f32

    # h1 halo rows that fall outside the image are conv2's *zero* padding,
    # not conv1 outputs -> mask them.
    rid = jax.lax.broadcasted_iota(jnp.int32, (r1, 1), 0)
    valid = jnp.logical_and(
        jnp.logical_or(rid >= W, jnp.logical_not(first)),
        jnp.logical_or(rid < r1 - W, jnp.logical_not(last)))
    h1 = jnp.where(valid, h1, 0.0)

    col2 = rid % W
    hl, hr = _shifted_planes(h1, col2, W)
    slab2 = jnp.concatenate(
        [t.astype(jnp.bfloat16) for t in (hl, h1, hr)], axis=-1)  # (r1, 3C)

    # ---- conv2 (3x3, C->C) + BN2 + ReLU + residual -------------------------
    acc2 = jnp.dot(slab2[0:RW], w2_ref[0],
                   preferred_element_type=jnp.float32)
    for ky in (1, 2):                      # 3 MXU pushes, K = 3*C each
        acc2 = acc2 + jnp.dot(slab2[ky * W:ky * W + RW], w2_ref[ky],
                              preferred_element_type=jnp.float32)

    h2 = jnp.maximum(acc2 * sb[2:3] + sb[3:4], 0.0)
    out_ref[...] = (h2 + xm_ref[...]).astype(out_ref.dtype)


def _band_vmem_bytes(b0, W, C):
    """Conservative per-band VMEM footprint: double-buffered x/y/out blocks and
    2-row halos, plus in-kernel temporaries (f32 windows, bf16 shifted planes,
    K-slabs, f32 accumulators, h1) and double-buffered bf16 weight slabs."""
    return (80 * b0 + 224) * W * C + 108 * C * C + 64 * C


def _pick_band_rows(B, H, W, C, budget_bytes):
    """Largest even divisor of H whose footprint fits the budget, preferring
    >= 2 row-bands (and an even band count when B == 1) so v7x's two
    TensorCores always have parallel grid work."""
    evens = [d for d in range(2, H + 1, 2) if H % d == 0]
    fits = [d for d in evens if _band_vmem_bytes(d, W, C) <= budget_bytes]
    cands = [d for d in fits if H // d >= 2]
    if B == 1:
        even_nb = [d for d in cands if (H // d) % 2 == 0]
        if even_nb:
            cands = even_nb
    if cands:
        return max(cands)
    if fits:
        return max(fits)
    if evens:
        return min(evens)        # even the smallest band busts the budget
    return H                     # TODO(synk): odd H -> single whole-image band


@functools.partial(jax.jit, static_argnames=("band_rows",))
def simfusion_forward(x_nchw, y_nchw, w1, s1, b1, w2, s2, b2, band_rows=None):
    """x, y: (B, C, H, W) f32.  w1: (3,3,2C,C) HWIO, w2: (3,3,C,C) HWIO,
    s*/b*: folded BatchNorm scale/bias, shape (C,).  Returns (B, C, H, W)."""
    B, C, H, W = x_nchw.shape
    assert H >= 2, "SimFusion Pallas kernel needs H >= 2"

    try:   # trace-time VMEM capacity (v5e/v6e: 128 MiB, v7x: 64 MiB)
        vmem_cap = int(pltpu.get_tpu_info().vmem_capacity_bytes)
    except Exception:
        vmem_cap = 64 * 1024 * 1024          # conservative (v7x-sized) default

    B0 = band_rows if band_rows is not None else _pick_band_rows(
        B, H, W, C, budget_bytes=vmem_cap * 2 // 5)
    assert H % B0 == 0 and (B0 % 2 == 0 or H // B0 == 1)
    nb = H // B0

    # Layout glue only (outside the kernel): NCHW -> row-flattened NHWC so C
    # sits on lanes and image rows flatten onto sublanes.
    x_flat = jnp.transpose(x_nchw, (0, 2, 3, 1)).reshape(B, H * W, C)
    y_flat = jnp.transpose(y_nchw, (0, 2, 3, 1)).reshape(B, H * W, C)

    # conv weights -> per-ky K-slabs (kx taps fused into K); bf16 MXU operands.
    w1x = w1[:, :, :C, :].reshape(3, 3 * C, C)
    w1y = w1[:, :, C:, :].reshape(3, 3 * C, C)
    w1_slab = jnp.concatenate([w1x, w1y], axis=1).astype(jnp.bfloat16)
    w2_slab = w2.reshape(3, 3 * C, C).astype(jnp.bfloat16)
    sb = jnp.stack([s1, b1, s2, b2], axis=0).astype(jnp.float32)   # (4, C)

    hb = max(B0 // 2, 1)                       # halo-block stride (2-row blocks)
    last_halo_blk = (H * W + 2 * W - 1) // (2 * W) - 1

    main_map = lambda b, i: (b, i, 0)
    top_map = lambda b, i: (b, jnp.maximum(i * hb - 1, 0), 0)
    bot_map = lambda b, i: (b, jnp.minimum((i + 1) * hb, last_halo_blk), 0)

    band_spec = pl.BlockSpec((None, B0 * W, C), main_map)
    top_spec = pl.BlockSpec((None, 2 * W, C), top_map)
    bot_spec = pl.BlockSpec((None, 2 * W, C), bot_map)
    w1_spec = pl.BlockSpec((3, 6 * C, C), lambda b, i: (0, 0, 0))
    w2_spec = pl.BlockSpec((3, 3 * C, C), lambda b, i: (0, 0, 0))
    sb_spec = pl.BlockSpec((4, C), lambda b, i: (0, 0))

    grid_spec = pltpu.PrefetchScalarGridSpec(
        num_scalar_prefetch=0,
        grid=(B, nb),
        in_specs=[band_spec, top_spec, bot_spec,   # x (main block = residual)
                  band_spec, top_spec, bot_spec,   # y
                  w1_spec, w2_spec, sb_spec],
        out_specs=pl.BlockSpec((None, B0 * W, C), main_map),
    )

    out_flat = pl.pallas_call(
        functools.partial(_simfusion_kernel, W),
        out_shape=jax.ShapeDtypeStruct((B, H * W, C), jnp.float32),
        grid_spec=grid_spec,
        compiler_params=pltpu.CompilerParams(
            dimension_semantics=("parallel", "parallel"),
            vmem_limit_bytes=min(vmem_cap * 3 // 4, 112 * 1024 * 1024)),
    )(x_flat, x_flat, x_flat, y_flat, y_flat, y_flat, w1_slab, w2_slab, sb)

    return jnp.transpose(out_flat.reshape(B, H, W, C), (0, 3, 1, 2))   # NCHW


def _reference(x, y, w1, s1, b1, w2, s2, b2):
    """Pure-JAX f32 reference (NCHW) for correctness checking."""
    def conv(inp, w):  # w: (3, 3, Cin, Cout) HWIO
        return jax.lax.conv_general_dilated(
            inp, w, window_strides=(1, 1), padding='SAME',
            dimension_numbers=('NCHW', 'HWIO', 'NCHW'))
    c = jnp.concatenate([x, y], axis=1)
    h = jnp.maximum(conv(c, w1) * s1[None, :, None, None]
                    + b1[None, :, None, None], 0.0)
    h = jnp.maximum(conv(h, w2) * s2[None, :, None, None]
                    + b2[None, :, None, None], 0.0)
    return h + x


if __name__ == "__main__":
    B, C, H, W = 2, 4, 16, 16
    key = jax.random.PRNGKey(0)
    ks = jax.random.split(key, 12)

    x = jax.random.normal(ks[0], (B, C, H, W), jnp.float32)
    y = jax.random.normal(ks[1], (B, C, H, W), jnp.float32)

    # Conv weights in HWIO, BatchNorm folded to per-channel scale/bias.
    w1 = jax.random.normal(ks[2], (3, 3, 2 * C, C), jnp.float32) * 0.1
    w2 = jax.random.normal(ks[3], (3, 3, C, C), jnp.float32) * 0.1

    eps = 1e-5
    g1 = 1.0 + 0.1 * jax.random.normal(ks[4], (C,), jnp.float32)
    be1 = 0.1 * jax.random.normal(ks[5], (C,), jnp.float32)
    m1 = 0.1 * jax.random.normal(ks[6], (C,), jnp.float32)
    v1 = jnp.abs(jax.random.normal(ks[7], (C,), jnp.float32)) + 0.5
    g2 = 1.0 + 0.1 * jax.random.normal(ks[8], (C,), jnp.float32)
    be2 = 0.1 * jax.random.normal(ks[9], (C,), jnp.float32)
    m2 = 0.1 * jax.random.normal(ks[10], (C,), jnp.float32)
    v2 = jnp.abs(jax.random.normal(ks[11], (C,), jnp.float32)) + 0.5

    s1 = g1 / jnp.sqrt(v1 + eps)
    b1 = be1 - m1 * s1
    s2 = g2 / jnp.sqrt(v2 + eps)
    b2 = be2 - m2 * s2

    # band_rows=8 -> 2 row-bands per image, exercising the in-kernel halos.
    out = simfusion_forward(x, y, w1, s1, b1, w2, s2, b2, band_rows=8)
    out = jax.block_until_ready(out)

    ref = jax.block_until_ready(_reference(x, y, w1, s1, b1, w2, s2, b2))
    assert out.shape == (B, C, H, W)
    # bf16 MXU operands (f32 accumulate) -> loosened tolerance vs f32 ref.
    err = float(jnp.max(jnp.abs(out - ref)))
    assert jnp.allclose(out, ref, atol=5e-2, rtol=5e-2), err

    print("KERNEL_OK")
</pallas_src>

<mosaic_0001>
module attributes {stable_mosaic.version = 11 : i64} {
  func.func @_simfusion_kernel(%arg0: i32, %arg1: i32, %arg2: memref<1x128x4xf32, #tpu.memory_space<vmem>>, %arg3: memref<1x32x4xf32, #tpu.memory_space<vmem>>, %arg4: memref<1x32x4xf32, #tpu.memory_space<vmem>>, %arg5: memref<1x128x4xf32, #tpu.memory_space<vmem>>, %arg6: memref<1x32x4xf32, #tpu.memory_space<vmem>>, %arg7: memref<1x32x4xf32, #tpu.memory_space<vmem>>, %arg8: memref<3x24x4xbf16, #tpu.memory_space<vmem>>, %arg9: memref<3x12x4xbf16, #tpu.memory_space<vmem>>, %arg10: memref<4x4xf32, #tpu.memory_space<vmem>>, %arg11: memref<1x128x4xf32, #tpu.memory_space<vmem>>) attributes {dimension_semantics = [#tpu.dimension_semantics<parallel>, #tpu.dimension_semantics<parallel>], iteration_bounds = array<i64: 2, 2>, scalar_prefetch = 0 : i64, scratch_operands = 0 : i64, tpu.core_type = #tpu.core_type<tc>, window_params = [{transform_indices = @transform_0, window_bounds = array<i64: 1, 128, 4>}, {transform_indices = @transform_1, window_bounds = array<i64: 1, 32, 4>}, {transform_indices = @transform_2, window_bounds = array<i64: 1, 32, 4>}, {transform_indices = @transform_3, window_bounds = array<i64: 1, 128, 4>}, {transform_indices = @transform_4, window_bounds = array<i64: 1, 32, 4>}, {transform_indices = @transform_5, window_bounds = array<i64: 1, 32, 4>}, {pipeline_mode = #tpu.pipeline_mode<synchronous>, transform_indices = @transform_6, window_bounds = array<i64: 3, 24, 4>}, {pipeline_mode = #tpu.pipeline_mode<synchronous>, transform_indices = @transform_7, window_bounds = array<i64: 3, 12, 4>}, {pipeline_mode = #tpu.pipeline_mode<synchronous>, transform_indices = @transform_8, window_bounds = array<i64: 4, 4>}, {transform_indices = @transform_9, window_bounds = array<i64: 1, 128, 4>}]} {
    %c0_i32 = arith.constant 0 : i32
    %0 = arith.cmpi eq, %arg1, %c0_i32 : i32
    %c1_i32 = arith.constant 1 : i32
    %1 = arith.cmpi eq, %arg1, %c1_i32 : i32
    %c0 = arith.constant 0 : index
    %c0_0 = arith.constant 0 : index
    %c0_1 = arith.constant 0 : index
    %2 = vector.load %arg3[%c0, %c0_0, %c0_1] : memref<1x32x4xf32, #tpu.memory_space<vmem>>, vector<1x32x4xf32>
    %3 = vector.shape_cast %2 : vector<1x32x4xf32> to vector<32x4xf32>
    %cst = arith.constant 0.000000e+00 : f32
    %4 = vector.broadcast %cst : f32 to vector<32x4xf32>
    %5 = arith.select %0, %4, %3 : vector<32x4xf32>
    %c0_2 = arith.constant 0 : index
    %c0_3 = arith.constant 0 : index
    %c0_4 = arith.constant 0 : index
    %6 = vector.load %arg2[%c0_2, %c0_3, %c0_4] : memref<1x128x4xf32, #tpu.memory_space<vmem>>, vector<1x128x4xf32>
    %7 = vector.shape_cast %6 : vector<1x128x4xf32> to vector<128x4xf32>
    %c0_5 = arith.constant 0 : index
    %c0_6 = arith.constant 0 : index
    %c0_7 = arith.constant 0 : index
    %8 = vector.load %arg4[%c0_5, %c0_6, %c0_7] : memref<1x32x4xf32, #tpu.memory_space<vmem>>, vector<1x32x4xf32>
    %9 = vector.shape_cast %8 : vector<1x32x4xf32> to vector<32x4xf32>
    %cst_8 = arith.constant 0.000000e+00 : f32
    %10 = vector.broadcast %cst_8 : f32 to vector<32x4xf32>
    %11 = arith.select %1, %10, %9 : vector<32x4xf32>
    %12 = tpu.concatenate %5, %7, %11 in 0 : vector<32x4xf32>, vector<128x4xf32>, vector<32x4xf32> -> vector<192x4xf32>
    %c0_9 = arith.constant 0 : index
    %c0_10 = arith.constant 0 : index
    %c0_11 = arith.constant 0 : index
    %13 = vector.load %arg6[%c0_9, %c0_10, %c0_11] : memref<1x32x4xf32, #tpu.memory_space<vmem>>, vector<1x32x4xf32>
    %14 = vector.shape_cast %13 : vector<1x32x4xf32> to vector<32x4xf32>
    %cst_12 = arith.constant 0.000000e+00 : f32
    %15 = vector.broadcast %cst_12 : f32 to vector<32x4xf32>
    %16 = arith.select %0, %15, %14 : vector<32x4xf32>
    %c0_13 = arith.constant 0 : index
    %c0_14 = arith.constant 0 : index
    %c0_15 = arith.constant 0 : index
    %17 = vector.load %arg5[%c0_13, %c0_14, %c0_15] : memref<1x128x4xf32, #tpu.memory_space<vmem>>, vector<1x128x4xf32>
    %18 = vector.shape_cast %17 : vector<1x128x4xf32> to vector<128x4xf32>
    %c0_16 = arith.constant 0 : index
    %c0_17 = arith.constant 0 : index
    %c0_18 = arith.constant 0 : index
    %19 = vector.load %arg7[%c0_16, %c0_17, %c0_18] : memref<1x32x4xf32, #tpu.memory_space<vmem>>, vector<1x32x4xf32>
    %20 = vector.shape_cast %19 : vector<1x32x4xf32> to vector<32x4xf32>
    %cst_19 = arith.constant 0.000000e+00 : f32
    %21 = vector.broadcast %cst_19 : f32 to vector<32x4xf32>
    %22 = arith.select %1, %21, %20 : vector<32x4xf32>
    %23 = tpu.concatenate %16, %18, %22 in 0 : vector<32x4xf32>, vector<128x4xf32>, vector<32x4xf32> -> vector<192x4xf32>
    %24 = tpu.iota {dimensions = array<i32: 0>} : vector<192x1xi32>
    %c16_i32 = arith.constant 16 : i32
    %c0_i32_20 = arith.constant 0 : i32
    %25 = arith.cmpi eq, %c16_i32, %c0_i32_20 : i32
    %c1_i32_21 = arith.constant 1 : i32
    %26 = arith.select %25, %c1_i32_21, %c16_i32 : i32
    %27 = vector.broadcast %26 : i32 to vector<192x1xi32>
    %28 = arith.remsi %24, %27 : vector<192x1xi32>
    %c0_i32_22 = arith.constant 0 : i32
    %29 = vector.broadcast %c0_i32_22 : i32 to vector<192x1xi32>
    %30 = arith.cmpi ne, %28, %29 : vector<192x1xi32>
    %c0_i32_23 = arith.constant 0 : i32
    %31 = vector.broadcast %c0_i32_23 : i32 to vector<192x1xi32>
    %32 = arith.cmpi slt, %28, %31 : vector<192x1xi32>
    %c0_i32_24 = arith.constant 0 : i32
    %33 = arith.cmpi slt, %26, %c0_i32_24 : i32
    %34 = vector.broadcast %33 : i1 to vector<192x1xi1>
    %35 = vector.broadcast %34 : vector<192x1xi1> to vector<192x1xi1>
    %36 = arith.xori %32, %35 : vector<192x1xi1>
    %37 = arith.andi %36, %30 : vector<192x1xi1>
    %38 = vector.broadcast %26 : i32 to vector<192x1xi32>
    %39 = arith.addi %28, %38 : vector<192x1xi32>
    %40 = arith.select %37, %39, %28 : vector<192x1xi1>, vector<192x1xi32>
    %c1_i32_25 = arith.constant 1 : i32
    %41 = tpu.dynamic_rotate %12 by %c1_i32_25 dim 0 : vector<192x4xf32>, i32 -> vector<192x4xf32>
    %c0_i32_26 = arith.constant 0 : i32
    %42 = vector.broadcast %c0_i32_26 : i32 to vector<192x1xi32>
    %43 = arith.cmpi eq, %40, %42 : vector<192x1xi32>
    %cst_27 = arith.constant 0.000000e+00 : f32
    %44 = vector.shape_cast %43 : vector<192x1xi1> to vector<192x1xi1>
    %45 = vector.broadcast %44 : vector<192x1xi1> to vector<192x4xi1>
    %46 = vector.broadcast %cst_27 : f32 to vector<192x4xf32>
    %47 = arith.select %45, %46, %41 : vector<192x4xi1>, vector<192x4xf32>
    %c191_i32 = arith.constant 191 : i32
    %48 = tpu.dynamic_rotate %12 by %c191_i32 dim 0 : vector<192x4xf32>, i32 -> vector<192x4xf32>
    %c15_i32 = arith.constant 15 : i32
    %49 = vector.broadcast %c15_i32 : i32 to vector<192x1xi32>
    %50 = arith.cmpi eq, %40, %49 : vector<192x1xi32>
    %cst_28 = arith.constant 0.000000e+00 : f32
    %51 = vector.shape_cast %50 : vector<192x1xi1> to vector<192x1xi1>
    %52 = vector.broadcast %51 : vector<192x1xi1> to vector<192x4xi1>
    %53 = vector.broadcast %cst_28 : f32 to vector<192x4xf32>
    %54 = arith.select %52, %53, %48 : vector<192x4xi1>, vector<192x4xf32>
    %c1_i32_29 = arith.constant 1 : i32
    %55 = tpu.dynamic_rotate %23 by %c1_i32_29 dim 0 : vector<192x4xf32>, i32 -> vector<192x4xf32>
    %c0_i32_30 = arith.constant 0 : i32
    %56 = vector.broadcast %c0_i32_30 : i32 to vector<192x1xi32>
    %57 = arith.cmpi eq, %40, %56 : vector<192x1xi32>
    %cst_31 = arith.constant 0.000000e+00 : f32
    %58 = vector.shape_cast %57 : vector<192x1xi1> to vector<192x1xi1>
    %59 = vector.broadcast %58 : vector<192x1xi1> to vector<192x4xi1>
    %60 = vector.broadcast %cst_31 : f32 to vector<192x4xf32>
    %61 = arith.select %59, %60, %55 : vector<192x4xi1>, vector<192x4xf32>
    %c191_i32_32 = arith.constant 191 : i32
    %62 = tpu.dynamic_rotate %23 by %c191_i32_32 dim 0 : vector<192x4xf32>, i32 -> vector<192x4xf32>
    %c15_i32_33 = arith.constant 15 : i32
    %63 = vector.broadcast %c15_i32_33 : i32 to vector<192x1xi32>
    %64 = arith.cmpi eq, %40, %63 : vector<192x1xi32>
    %cst_34 = arith.constant 0.000000e+00 : f32
    %65 = vector.shape_cast %64 : vector<192x1xi1> to vector<192x1xi1>
    %66 = vector.broadcast %65 : vector<192x1xi1> to vector<192x4xi1>
    %67 = vector.broadcast %cst_34 : f32 to vector<192x4xf32>
    %68 = arith.select %66, %67, %62 : vector<192x4xi1>, vector<192x4xf32>
    %69 = arith.truncf %47 : vector<192x4xf32> to vector<192x4xbf16>
    %70 = arith.truncf %12 : vector<192x4xf32> to vector<192x4xbf16>
    %71 = arith.truncf %54 : vector<192x4xf32> to vector<192x4xbf16>
    %72 = arith.truncf %61 : vector<192x4xf32> to vector<192x4xbf16>
    %73 = arith.truncf %23 : vector<192x4xf32> to vector<192x4xbf16>
    %74 = arith.truncf %68 : vector<192x4xf32> to vector<192x4xbf16>
    %75 = tpu.concatenate %69, %70, %71, %72, %73, %74 in 1 : vector<192x4xbf16>, vector<192x4xbf16>, vector<192x4xbf16>, vector<192x4xbf16>, vector<192x4xbf16>, vector<192x4xbf16> -> vector<192x24xbf16>
    %76 = vector.extract_strided_slice %75 {offsets = [0, 0], sizes = [160, 24], strides = [1, 1]} : vector<192x24xbf16> to vector<160x24xbf16>
    %c0_35 = arith.constant 0 : index
    %c0_36 = arith.constant 0 : index
    %c0_37 = arith.constant 0 : index
    %77 = vector.load %arg8[%c0_35, %c0_36, %c0_37] : memref<3x24x4xbf16, #tpu.memory_space<vmem>>, vector<1x24x4xbf16>
    %78 = vector.shape_cast %77 : vector<1x24x4xbf16> to vector<24x4xbf16>
    %cst_38 = arith.constant dense<0.000000e+00> : vector<160x4xf32>
    %79 = tpu.matmul %76, %78, %cst_38 {dimension_numbers = #tpu.dot_dimension_numbers<[1], [0], [0], [1], [0, 0, 1, 1], [], []>} : vector<160x24xbf16>, vector<24x4xbf16>, vector<160x4xf32> -> vector<160x4xf32>
    %80 = vector.extract_strided_slice %75 {offsets = [16, 0], sizes = [160, 24], strides = [1, 1]} : vector<192x24xbf16> to vector<160x24xbf16>
    %c1 = arith.constant 1 : index
    %c0_39 = arith.constant 0 : index
    %c0_40 = arith.constant 0 : index
    %81 = vector.load %arg8[%c1, %c0_39, %c0_40] : memref<3x24x4xbf16, #tpu.memory_space<vmem>>, vector<1x24x4xbf16>
    %82 = vector.shape_cast %81 : vector<1x24x4xbf16> to vector<24x4xbf16>
    %cst_41 = arith.constant dense<0.000000e+00> : vector<160x4xf32>
    %83 = tpu.matmul %80, %82, %cst_41 {dimension_numbers = #tpu.dot_dimension_numbers<[1], [0], [0], [1], [0, 0, 1, 1], [], []>} : vector<160x24xbf16>, vector<24x4xbf16>, vector<160x4xf32> -> vector<160x4xf32>
    %84 = arith.addf %79, %83 : vector<160x4xf32>
    %85 = vector.extract_strided_slice %75 {offsets = [32, 0], sizes = [160, 24], strides = [1, 1]} : vector<192x24xbf16> to vector<160x24xbf16>
    %c2 = arith.constant 2 : index
    %c0_42 = arith.constant 0 : index
    %c0_43 = arith.constant 0 : index
    %86 = vector.load %arg8[%c2, %c0_42, %c0_43] : memref<3x24x4xbf16, #tpu.memory_space<vmem>>, vector<1x24x4xbf16>
    %87 = vector.shape_cast %86 : vector<1x24x4xbf16> to vector<24x4xbf16>
    %cst_44 = arith.constant dense<0.000000e+00> : vector<160x4xf32>
    %88 = tpu.matmul %85, %87, %cst_44 {dimension_numbers = #tpu.dot_dimension_numbers<[1], [0], [0], [1], [0, 0, 1, 1], [], []>} : vector<160x24xbf16>, vector<24x4xbf16>, vector<160x4xf32> -> vector<160x4xf32>
    %89 = arith.addf %84, %88 : vector<160x4xf32>
    %c0_45 = arith.constant 0 : index
    %c0_46 = arith.constant 0 : index
    %90 = vector.load %arg10[%c0_45, %c0_46] : memref<4x4xf32, #tpu.memory_space<vmem>>, vector<4x4xf32>
    %91 = vector.extract_strided_slice %90 {offsets = [0, 0], sizes = [1, 4], strides = [1, 1]} : vector<4x4xf32> to vector<1x4xf32>
    %92 = vector.broadcast %91 : vector<1x4xf32> to vector<160x4xf32>
    %93 = arith.mulf %89, %92 : vector<160x4xf32>
    %94 = vector.extract_strided_slice %90 {offsets = [1, 0], sizes = [1, 4], strides = [1, 1]} : vector<4x4xf32> to vector<1x4xf32>
    %95 = vector.broadcast %94 : vector<1x4xf32> to vector<160x4xf32>
    %96 = arith.addf %93, %95 : vector<160x4xf32>
    %cst_47 = arith.constant 0.000000e+00 : f32
    %97 = vector.broadcast %cst_47 : f32 to vector<160x4xf32>
    %98 = arith.maximumf %96, %97 : vector<160x4xf32>
    %99 = tpu.iota {dimensions = array<i32: 0>} : vector<160x1xi32>
    %c16_i32_48 = arith.constant 16 : i32
    %100 = vector.broadcast %c16_i32_48 : i32 to vector<160x1xi32>
    %101 = arith.cmpi sge, %99, %100 : vector<160x1xi32>
    %true = arith.constant true
    %102 = arith.xori %0, %true : i1
    %103 = vector.broadcast %102 : i1 to vector<160x1xi1>
    %104 = arith.ori %101, %103 : vector<160x1xi1>
    %c144_i32 = arith.constant 144 : i32
    %105 = vector.broadcast %c144_i32 : i32 to vector<160x1xi32>
    %106 = arith.cmpi slt, %99, %105 : vector<160x1xi32>
    %true_49 = arith.constant true
    %107 = arith.xori %1, %true_49 : i1
    %108 = vector.broadcast %107 : i1 to vector<160x1xi1>
    %109 = arith.ori %106, %108 : vector<160x1xi1>
    %110 = arith.andi %104, %109 : vector<160x1xi1>
    %cst_50 = arith.constant 0.000000e+00 : f32
    %111 = vector.shape_cast %110 : vector<160x1xi1> to vector<160x1xi1>
    %112 = vector.broadcast %111 : vector<160x1xi1> to vector<160x4xi1>
    %113 = vector.broadcast %cst_50 : f32 to vector<160x4xf32>
    %114 = arith.select %112, %98, %113 : vector<160x4xi1>, vector<160x4xf32>
    %c16_i32_51 = arith.constant 16 : i32
    %c0_i32_52 = arith.constant 0 : i32
    %115 = arith.cmpi eq, %c16_i32_51, %c0_i32_52 : i32
    %c1_i32_53 = arith.constant 1 : i32
    %116 = arith.select %115, %c1_i32_53, %c16_i32_51 : i32
    %117 = vector.broadcast %116 : i32 to vector<160x1xi32>
    %118 = arith.remsi %99, %117 : vector<160x1xi32>
    %c0_i32_54 = arith.constant 0 : i32
    %119 = vector.broadcast %c0_i32_54 : i32 to vector<160x1xi32>
    %120 = arith.cmpi ne, %118, %119 : vector<160x1xi32>
    %c0_i32_55 = arith.constant 0 : i32
    %121 = vector.broadcast %c0_i32_55 : i32 to vector<160x1xi32>
    %122 = arith.cmpi slt, %118, %121 : vector<160x1xi32>
    %c0_i32_56 = arith.constant 0 : i32
    %123 = arith.cmpi slt, %116, %c0_i32_56 : i32
    %124 = vector.broadcast %123 : i1 to vector<160x1xi1>
    %125 = vector.broadcast %124 : vector<160x1xi1> to vector<160x1xi1>
    %126 = arith.xori %122, %125 : vector<160x1xi1>
    %127 = arith.andi %126, %120 : vector<160x1xi1>
    %128 = vector.broadcast %116 : i32 to vector<160x1xi32>
    %129 = arith.addi %118, %128 : vector<160x1xi32>
    %130 = arith.select %127, %129, %118 : vector<160x1xi1>, vector<160x1xi32>
    %c1_i32_57 = arith.constant 1 : i32
    %131 = tpu.dynamic_rotate %114 by %c1_i32_57 dim 0 : vector<160x4xf32>, i32 -> vector<160x4xf32>
    %c0_i32_58 = arith.constant 0 : i32
    %132 = vector.broadcast %c0_i32_58 : i32 to vector<160x1xi32>
    %133 = arith.cmpi eq, %130, %132 : vector<160x1xi32>
    %cst_59 = arith.constant 0.000000e+00 : f32
    %134 = vector.shape_cast %133 : vector<160x1xi1> to vector<160x1xi1>
    %135 = vector.broadcast %134 : vector<160x1xi1> to vector<160x4xi1>
    %136 = vector.broadcast %cst_59 : f32 to vector<160x4xf32>
    %137 = arith.select %135, %136, %131 : vector<160x4xi1>, vector<160x4xf32>
    %c159_i32 = arith.constant 159 : i32
    %138 = tpu.dynamic_rotate %114 by %c159_i32 dim 0 : vector<160x4xf32>, i32 -> vector<160x4xf32>
    %c15_i32_60 = arith.constant 15 : i32
    %139 = vector.broadcast %c15_i32_60 : i32 to vector<160x1xi32>
    %140 = arith.cmpi eq, %130, %139 : vector<160x1xi32>
    %cst_61 = arith.constant 0.000000e+00 : f32
    %141 = vector.shape_cast %140 : vector<160x1xi1> to vector<160x1xi1>
    %142 = vector.broadcast %141 : vector<160x1xi1> to vector<160x4xi1>
    %143 = vector.broadcast %cst_61 : f32 to vector<160x4xf32>
    %144 = arith.select %142, %143, %138 : vector<160x4xi1>, vector<160x4xf32>
    %145 = arith.truncf %137 : vector<160x4xf32> to vector<160x4xbf16>
    %146 = arith.truncf %114 : vector<160x4xf32> to vector<160x4xbf16>
    %147 = arith.truncf %144 : vector<160x4xf32> to vector<160x4xbf16>
    %148 = tpu.concatenate %145, %146, %147 in 1 : vector<160x4xbf16>, vector<160x4xbf16>, vector<160x4xbf16> -> vector<160x12xbf16>
    %149 = vector.extract_strided_slice %148 {offsets = [0, 0], sizes = [128, 12], strides = [1, 1]} : vector<160x12xbf16> to vector<128x12xbf16>
    %c0_62 = arith.constant 0 : index
    %c0_63 = arith.constant 0 : index
    %c0_64 = arith.constant 0 : index
    %150 = vector.load %arg9[%c0_62, %c0_63, %c0_64] : memref<3x12x4xbf16, #tpu.memory_space<vmem>>, vector<1x12x4xbf16>
    %151 = vector.shape_cast %150 : vector<1x12x4xbf16> to vector<12x4xbf16>
    %cst_65 = arith.constant dense<0.000000e+00> : vector<128x4xf32>
    %152 = tpu.matmul %149, %151, %cst_65 {dimension_numbers = #tpu.dot_dimension_numbers<[1], [0], [0], [1], [0, 0, 1, 1], [], []>} : vector<128x12xbf16>, vector<12x4xbf16>, vector<128x4xf32> -> vector<128x4xf32>
    %153 = vector.extract_strided_slice %148 {offsets = [16, 0], sizes = [128, 12], strides = [1, 1]} : vector<160x12xbf16> to vector<128x12xbf16>
    %c1_66 = arith.constant 1 : index
    %c0_67 = arith.constant 0 : index
    %c0_68 = arith.constant 0 : index
    %154 = vector.load %arg9[%c1_66, %c0_67, %c0_68] : memref<3x12x4xbf16, #tpu.memory_space<vmem>>, vector<1x12x4xbf16>
    %155 = vector.shape_cast %154 : vector<1x12x4xbf16> to vector<12x4xbf16>
    %cst_69 = arith.constant dense<0.000000e+00> : vector<128x4xf32>
    %156 = tpu.matmul %153, %155, %cst_69 {dimension_numbers = #tpu.dot_dimension_numbers<[1], [0], [0], [1], [0, 0, 1, 1], [], []>} : vector<128x12xbf16>, vector<12x4xbf16>, vector<128x4xf32> -> vector<128x4xf32>
    %157 = arith.addf %152, %156 : vector<128x4xf32>
    %158 = vector.extract_strided_slice %148 {offsets = [32, 0], sizes = [128, 12], strides = [1, 1]} : vector<160x12xbf16> to vector<128x12xbf16>
    %c2_70 = arith.constant 2 : index
    %c0_71 = arith.constant 0 : index
    %c0_72 = arith.constant 0 : index
    %159 = vector.load %arg9[%c2_70, %c0_71, %c0_72] : memref<3x12x4xbf16, #tpu.memory_space<vmem>>, vector<1x12x4xbf16>
    %160 = vector.shape_cast %159 : vector<1x12x4xbf16> to vector<12x4xbf16>
    %cst_73 = arith.constant dense<0.000000e+00> : vector<128x4xf32>
    %161 = tpu.matmul %158, %160, %cst_73 {dimension_numbers = #tpu.dot_dimension_numbers<[1], [0], [0], [1], [0, 0, 1, 1], [], []>} : vector<128x12xbf16>, vector<12x4xbf16>, vector<128x4xf32> -> vector<128x4xf32>
    %162 = arith.addf %157, %161 : vector<128x4xf32>
    %163 = vector.extract_strided_slice %90 {offsets = [2, 0], sizes = [1, 4], strides = [1, 1]} : vector<4x4xf32> to vector<1x4xf32>
    %164 = vector.broadcast %163 : vector<1x4xf32> to vector<128x4xf32>
    %165 = arith.mulf %162, %164 : vector<128x4xf32>
    %166 = vector.extract_strided_slice %90 {offsets = [3, 0], sizes = [1, 4], strides = [1, 1]} : vector<4x4xf32> to vector<1x4xf32>
    %167 = vector.broadcast %166 : vector<1x4xf32> to vector<128x4xf32>
    %168 = arith.addf %165, %167 : vector<128x4xf32>
    %cst_74 = arith.constant 0.000000e+00 : f32
    %169 = vector.broadcast %cst_74 : f32 to vector<128x4xf32>
    %170 = arith.maximumf %168, %169 : vector<128x4xf32>
    %c0_75 = arith.constant 0 : index
    %c0_76 = arith.constant 0 : index
    %c0_77 = arith.constant 0 : index
    %171 = vector.load %arg2[%c0_75, %c0_76, %c0_77] : memref<1x128x4xf32, #tpu.memory_space<vmem>>, vector<1x128x4xf32>
    %172 = vector.shape_cast %171 : vector<1x128x4xf32> to vector<128x4xf32>
    %173 = arith.addf %170, %172 : vector<128x4xf32>
    %c0_78 = arith.constant 0 : index
    %c0_79 = arith.constant 0 : index
    %c0_80 = arith.constant 0 : index
    %174 = vector.load %arg11[%c0_78, %c0_79, %c0_80] : memref<1x128x4xf32, #tpu.memory_space<vmem>>, vector<1x128x4xf32>
    %175 = vector.shape_cast %174 : vector<1x128x4xf32> to vector<128x4xf32>
    %176 = vector.shape_cast %173 : vector<128x4xf32> to vector<1x128x4xf32>
    tpu.vector_store %arg11[%c0_78, %c0_79, %c0_80], %176 {strides = array<i32>} : memref<1x128x4xf32, #tpu.memory_space<vmem>>, vector<1x128x4xf32>,
    return
  }
  func.func @transform_0(%arg0: i32, %arg1: i32) -> (i32, i32, i32) {
    %c0_i32 = arith.constant 0 : i32
    %c0_i32_0 = arith.constant 0 : i32
    return %arg0, %arg1, %c0_i32 : i32, i32, i32
  }
  func.func @transform_1(%arg0: i32, %arg1: i32) -> (i32, i32, i32) {
    %c4_i32 = arith.constant 4 : i32
    %0 = arith.muli %arg1, %c4_i32 : i32
    %c1_i32 = arith.constant 1 : i32
    %1 = arith.subi %0, %c1_i32 : i32
    %c0_i32 = arith.constant 0 : i32
    %2 = arith.maxsi %1, %c0_i32 : i32
    %c0_i32_0 = arith.constant 0 : i32
    %c0_i32_1 = arith.constant 0 : i32
    return %arg0, %2, %c0_i32_0 : i32, i32, i32
  }
  func.func @transform_2(%arg0: i32, %arg1: i32) -> (i32, i32, i32) {
    %c1_i32 = arith.constant 1 : i32
    %0 = arith.addi %arg1, %c1_i32 : i32
    %c4_i32 = arith.constant 4 : i32
    %1 = arith.muli %0, %c4_i32 : i32
    %c7_i32 = arith.constant 7 : i32
    %2 = arith.minsi %1, %c7_i32 : i32
    %c0_i32 = arith.constant 0 : i32
    %c0_i32_0 = arith.constant 0 : i32
    return %arg0, %2, %c0_i32 : i32, i32, i32
  }
  func.func @transform_3(%arg0: i32, %arg1: i32) -> (i32, i32, i32) {
    %c0_i32 = arith.constant 0 : i32
    %c0_i32_0 = arith.constant 0 : i32
    return %arg0, %arg1, %c0_i32 : i32, i32, i32
  }
  func.func @transform_4(%arg0: i32, %arg1: i32) -> (i32, i32, i32) {
    %c4_i32 = arith.constant 4 : i32
    %0 = arith.muli %arg1, %c4_i32 : i32
    %c1_i32 = arith.constant 1 : i32
    %1 = arith.subi %0, %c1_i32 : i32
    %c0_i32 = arith.constant 0 : i32
    %2 = arith.maxsi %1, %c0_i32 : i32
    %c0_i32_0 = arith.constant 0 : i32
    %c0_i32_1 = arith.constant 0 : i32
    return %arg0, %2, %c0_i32_0 : i32, i32, i32
  }
  func.func @transform_5(%arg0: i32, %arg1: i32) -> (i32, i32, i32) {
    %c1_i32 = arith.constant 1 : i32
    %0 = arith.addi %arg1, %c1_i32 : i32
    %c4_i32 = arith.constant 4 : i32
    %1 = arith.muli %0, %c4_i32 : i32
    %c7_i32 = arith.constant 7 : i32
    %2 = arith.minsi %1, %c7_i32 : i32
    %c0_i32 = arith.constant 0 : i32
    %c0_i32_0 = arith.constant 0 : i32
    return %arg0, %2, %c0_i32 : i32, i32, i32
  }
  func.func @transform_6(%arg0: i32, %arg1: i32) -> (i32, i32, i32) {
    %c0_i32 = arith.constant 0 : i32
    %c0_i32_0 = arith.constant 0 : i32
    %c0_i32_1 = arith.constant 0 : i32
    %c0_i32_2 = arith.constant 0 : i32
    return %c0_i32, %c0_i32_0, %c0_i32_1 : i32, i32, i32
  }
  func.func @transform_7(%arg0: i32, %arg1: i32) -> (i32, i32, i32) {
    %c0_i32 = arith.constant 0 : i32
    %c0_i32_0 = arith.constant 0 : i32
    %c0_i32_1 = arith.constant 0 : i32
    %c0_i32_2 = arith.constant 0 : i32
    return %c0_i32, %c0_i32_0, %c0_i32_1 : i32, i32, i32
  }
  func.func @transform_8(%arg0: i32, %arg1: i32) -> (i32, i32) {
    %c0_i32 = arith.constant 0 : i32
    %c0_i32_0 = arith.constant 0 : i32
    %c0_i32_1 = arith.constant 0 : i32
    return %c0_i32, %c0_i32_0 : i32, i32
  }
  func.func @transform_9(%arg0: i32, %arg1: i32) -> (i32, i32, i32) {
    %c0_i32 = arith.constant 0 : i32
    %c0_i32_0 = arith.constant 0 : i32
    return %arg0, %arg1, %c0_i32 : i32, i32, i32
  }
}

</mosaic_0001>

<llo_original>
// kernel: simfusion_forward.1
$region0: #{simfusion_forward.1}
  #allocation0 [shape = 'u32[]', space=smem, size = 0x4, offset = 0x4, fixed_abs, tag = 'smem constant byte address 0x4 - core index']
  #allocation1 [shape = 'u32[144,128]{1,0:T(1,128)}', space=vmem, size = 0x12000, scoped, tag = 'internal scratch']
  %s0 = inlined_call_operand.vmem [shape: f32[2,256,4], index: 0, kind: input, shape index: {}, may-alias: {0,1,2}]
  %s1 = inlined_call_operand.vmem [shape: f32[2,256,4], index: 1, kind: input, shape index: {}, may-alias: {0,1,2}]
  %s2 = inlined_call_operand.vmem [shape: f32[2,256,4], index: 2, kind: input, shape index: {}, may-alias: {0,1,2}]
  %s3 = inlined_call_operand.vmem [shape: f32[2,256,4], index: 3, kind: input, shape index: {}, may-alias: {3,4,5}]
  %s4 = inlined_call_operand.vmem [shape: f32[2,256,4], index: 4, kind: input, shape index: {}, may-alias: {3,4,5}]
  %s5 = inlined_call_operand.vmem [shape: f32[2,256,4], index: 5, kind: input, shape index: {}, may-alias: {3,4,5}]
  %s6 = inlined_call_operand.vmem [shape: bf16[3,24,4], index: 6, kind: input, shape index: {}]
  %s7 = inlined_call_operand.vmem [shape: bf16[3,12,4], index: 7, kind: input, shape index: {}]
  %s8 = inlined_call_operand.vmem [shape: f32[4,4], index: 8, kind: input, shape index: {}]
  %s9 = inlined_call_operand.vmem [shape: f32[2,256,4], index: 9, kind: output, shape index: {}]
  %s10 = sld [smem:[#allocation0]]
  $region69: #{simfusion_forward.1} parent=0
    _
  %s12 = ssub.s32 1, %s10
  %s13 = scalar_select 0, %s12, %s10
  loop: start=0, step=1, limit=6
  $region2: #{simfusion_forward.1} parent=0 // loop_pre_header
    _
  $region3: #{simfusion_forward.1} parent=0 // loop_header
    %s15 = sphi 0, %s19
    %p16 = scmp.ge.s32.totalorder %s15, 6
    %s22 = sphi 0, %s34
    %s23 = sphi 0, %s30
    %s24 = sphi 0, %s22
    %s25 = sphi 0, %s23
    %s26 = sphi 0, %s24
    %s27 = sphi 0, %s25
    %s39 = sphi 0, %s41
    %s42 = sphi 0, %s39
    %s43 = sphi 0, %s42
    %s59 = sphi 0, %s43
    %s75 = sphi 0, %s77
    %s78 = sphi 0, %s75
    %s79 = sphi 0, %s78
    %s95 = sphi 0, %s79
    %s111 = sphi 0, %s113
    %s114 = sphi 0, %s111
    %s115 = sphi 0, %s114
    %s131 = sphi 0, %s115
    %s139 = sphi 0, %s141
    %s142 = sphi 0, %s139
    %s143 = sphi 0, %s142
    %s159 = sphi 0, %s143
    %s175 = sphi 0, %s177
    %s178 = sphi 0, %s175
    %s179 = sphi 0, %s178
    %s195 = sphi 0, %s179
    %s211 = sphi 0, %s213
    %s214 = sphi 0, %s211
    %s215 = sphi 0, %s214
    %s231 = sphi 0, %s215
    %s235 = sphi 0, %s235
    %s237 = sphi 0, %s235
    %s238 = sphi 0, %s237
    %s252 = sphi 0, %s238
    %s256 = sphi 0, %s256
    %s258 = sphi 0, %s256
    %s259 = sphi 0, %s258
    %s273 = sphi 0, %s259
    %s277 = sphi 0, %s277
    %s279 = sphi 0, %s277
    %s280 = sphi 0, %s279
    %s294 = sphi 0, %s280
    %s302 = sphi 0, %s304
    %s305 = sphi 0, %s302
    %s306 = sphi 0, %s305
    %s322 = sphi 0, %s306
  $region4: #{simfusion_forward.1} parent=0 // loop_header_branch
    %18 = sbr.rel (%p16) target = $region8
  $region5: #{simfusion_forward.1} parent=0 // loop_body
    %s20 = ssub.s32 %s15, 1
    %s21 = ssub.s32 %s15, 2
    %s28 = sadd.s32 1, %s23
    %p29 = scmp.ge.s32.totalorder %s28, 2
    %s30 = scalar_select %p29, 0, %s28
    %s31 = sadd.s32 1, %s22
    %s32 = scalar_select %p29, %s31, %s22
    %p33 = scmp.ge.s32.totalorder %s32, 2
    %s34 = scalar_select %p33, 0, %s32
    %s35 = ssub.s32 %s22, %s34
    %s36 = ssub.s32 %s23, %s30
    %s37 = sor.u32 %s35, %s36
    %p38 = scmp.eq.s32.totalorder %s37, 0
    %s40 = sadd.s32 %s39, 1
    %s41 = scalar_select %p38, %s39, %s40
    %p44 = pneg %p38
    %p45 = scmp.eq.s32.totalorder %s15, 3
    %p46 = por %p44, %p45
    %p47 = scmp.ne.s32.totalorder %s39, %s42
    %p48 = scmp.eq.s32.totalorder %s15, 0
    %p49 = por %p47, %p48
    %p50 = scmp.ne.s32.totalorder %s39, %s42
    %p51 = scmp.eq.s32.totalorder %s20, 3
    %p52 = por %p50, %p51
    %p53 = scmp.ne.s32.totalorder %s42, %s43
    %p54 = scmp.eq.s32.totalorder %s20, 0
    %p55 = por %p53, %p54
    %p56 = scmp.ne.s32.totalorder %s42, %s43
    %p57 = scmp.eq.s32.totalorder %s21, 3
    %p58 = por %p56, %p57
    %p60 = scmp.ne.s32.totalorder %s43, %s59
    %p61 = scmp.eq.s32.totalorder %s21, 0
    %p62 = por %p60, %p61
    %s63 = smul.u32 %s23, 4
    %s64 = ssub.s32 %s63, 1
    %p65 = scmp.gt.s32.totalorder %s64, 0
    %s66 = scalar_select %p65, %s64, 0
    %s67 = smul.u32 %s30, 4
    %s68 = ssub.s32 %s67, 1
    %p69 = scmp.gt.s32.totalorder %s68, 0
    %s70 = scalar_select %p69, %s68, 0
    %s71 = ssub.s32 %s22, %s34
    %s72 = ssub.s32 %s66, %s70
    %s73 = sor.u32 %s71, %s72
    %p74 = scmp.eq.s32.totalorder %s73, 0
    %s76 = sadd.s32 %s75, 1
    %s77 = scalar_select %p74, %s75, %s76
    %p80 = pneg %p74
    %p81 = scmp.eq.s32.totalorder %s15, 3
    %p82 = por %p80, %p81
    %p83 = scmp.ne.s32.totalorder %s75, %s78
    %p84 = scmp.eq.s32.totalorder %s15, 0
    %p85 = por %p83, %p84
    %p86 = scmp.ne.s32.totalorder %s75, %s78
    %p87 = scmp.eq.s32.totalorder %s20, 3
    %p88 = por %p86, %p87
    %p89 = scmp.ne.s32.totalorder %s78, %s79
    %p90 = scmp.eq.s32.totalorder %s20, 0
    %p91 = por %p89, %p90
    %p92 = scmp.ne.s32.totalorder %s78, %s79
    %p93 = scmp.eq.s32.totalorder %s21, 3
    %p94 = por %p92, %p93
    %p96 = scmp.ne.s32.totalorder %s79, %s95
    %p97 = scmp.eq.s32.totalorder %s21, 0
    %p98 = por %p96, %p97
    %s99 = sadd.s32 %s23, 1
    %s100 = smul.u32 %s99, 4
    %p101 = scmp.lt.s32.totalorder %s100, 7
    %s102 = scalar_select %p101, %s100, 7
    %s103 = sadd.s32 %s30, 1
    %s104 = smul.u32 %s103, 4
    %p105 = scmp.lt.s32.totalorder %s104, 7
    %s106 = scalar_select %p105, %s104, 7
    %s107 = ssub.s32 %s22, %s34
    %s108 = ssub.s32 %s102, %s106
    %s109 = sor.u32 %s107, %s108
    %p110 = scmp.eq.s32.totalorder %s109, 0
    %s112 = sadd.s32 %s111, 1
    %s113 = scalar_select %p110, %s111, %s112
    %p116 = pneg %p110
    %p117 = scmp.eq.s32.totalorder %s15, 3
    %p118 = por %p116, %p117
    %p119 = scmp.ne.s32.totalorder %s111, %s114
    %p120 = scmp.eq.s32.totalorder %s15, 0
    %p121 = por %p119, %p120
    %p122 = scmp.ne.s32.totalorder %s111, %s114
    %p123 = scmp.eq.s32.totalorder %s20, 3
    %p124 = por %p122, %p123
    %p125 = scmp.ne.s32.totalorder %s114, %s115
    %p126 = scmp.eq.s32.totalorder %s20, 0
    %p127 = por %p125, %p126
    %p128 = scmp.ne.s32.totalorder %s114, %s115
    %p129 = scmp.eq.s32.totalorder %s21, 3
    %p130 = por %p128, %p129
    %p132 = scmp.ne.s32.totalorder %s115, %s131
    %p133 = scmp.eq.s32.totalorder %s21, 0
    %p134 = por %p132, %p133
    %s135 = ssub.s32 %s22, %s34
    %s136 = ssub.s32 %s23, %s30
    %s137 = sor.u32 %s135, %s136
    %p138 = scmp.eq.s32.totalorder %s137, 0
    %s140 = sadd.s32 %s139, 1
    %s141 = scalar_select %p138, %s139, %s140
    %p144 = pneg %p138
    %p145 = scmp.eq.s32.totalorder %s15, 3
    %p146 = por %p144, %p145
    %p147 = scmp.ne.s32.totalorder %s139, %s142
    %p148 = scmp.eq.s32.totalorder %s15, 0
    %p149 = por %p147, %p148
    %p150 = scmp.ne.s32.totalorder %s139, %s142
    %p151 = scmp.eq.s32.totalorder %s20, 3
    %p152 = por %p150, %p151
    %p153 = scmp.ne.s32.totalorder %s142, %s143
    %p154 = scmp.eq.s32.totalorder %s20, 0
    %p155 = por %p153, %p154
    %p156 = scmp.ne.s32.totalorder %s142, %s143
    %p157 = scmp.eq.s32.totalorder %s21, 3
    %p158 = por %p156, %p157
    %p160 = scmp.ne.s32.totalorder %s143, %s159
    %p161 = scmp.eq.s32.totalorder %s21, 0
    %p162 = por %p160, %p161
    %s163 = smul.u32 %s23, 4
    %s164 = ssub.s32 %s163, 1
    %p165 = scmp.gt.s32.totalorder %s164, 0
    %s166 = scalar_select %p165, %s164, 0
    %s167 = smul.u32 %s30, 4
    %s168 = ssub.s32 %s167, 1
    %p169 = scmp.gt.s32.totalorder %s168, 0
    %s170 = scalar_select %p169, %s168, 0
    %s171 = ssub.s32 %s22, %s34
    %s172 = ssub.s32 %s166, %s170
    %s173 = sor.u32 %s171, %s172
    %p174 = scmp.eq.s32.totalorder %s173, 0
    %s176 = sadd.s32 %s175, 1
    %s177 = scalar_select %p174, %s175, %s176
    %p180 = pneg %p174
    %p181 = scmp.eq.s32.totalorder %s15, 3
    %p182 = por %p180, %p181
    %p183 = scmp.ne.s32.totalorder %s175, %s178
    %p184 = scmp.eq.s32.totalorder %s15, 0
    %p185 = por %p183, %p184
    %p186 = scmp.ne.s32.totalorder %s175, %s178
    %p187 = scmp.eq.s32.totalorder %s20, 3
    %p188 = por %p186, %p187
    %p189 = scmp.ne.s32.totalorder %s178, %s179
    %p190 = scmp.eq.s32.totalorder %s20, 0
    %p191 = por %p189, %p190
    %p192 = scmp.ne.s32.totalorder %s178, %s179
    %p193 = scmp.eq.s32.totalorder %s21, 3
    %p194 = por %p192, %p193
    %p196 = scmp.ne.s32.totalorder %s179, %s195
    %p197 = scmp.eq.s32.totalorder %s21, 0
    %p198 = por %p196, %p197
    %s199 = sadd.s32 %s23, 1
    %s200 = smul.u32 %s199, 4
    %p201 = scmp.lt.s32.totalorder %s200, 7
    %s202 = scalar_select %p201, %s200, 7
    %s203 = sadd.s32 %s30, 1
    %s204 = smul.u32 %s203, 4
    %p205 = scmp.lt.s32.totalorder %s204, 7
    %s206 = scalar_select %p205, %s204, 7
    %s207 = ssub.s32 %s22, %s34
    %s208 = ssub.s32 %s202, %s206
    %s209 = sor.u32 %s207, %s208
    %p210 = scmp.eq.s32.totalorder %s209, 0
    %s212 = sadd.s32 %s211, 1
    %s213 = scalar_select %p210, %s211, %s212
    %p216 = pneg %p210
    %p217 = scmp.eq.s32.totalorder %s15, 3
    %p218 = por %p216, %p217
    %p219 = scmp.ne.s32.totalorder %s211, %s214
    %p220 = scmp.eq.s32.totalorder %s15, 0
    %p221 = por %p219, %p220
    %p222 = scmp.ne.s32.totalorder %s211, %s214
    %p223 = scmp.eq.s32.totalorder %s20, 3
    %p224 = por %p222, %p223
    %p225 = scmp.ne.s32.totalorder %s214, %s215
    %p226 = scmp.eq.s32.totalorder %s20, 0
    %p227 = por %p225, %p226
    %p228 = scmp.ne.s32.totalorder %s214, %s215
    %p229 = scmp.eq.s32.totalorder %s21, 3
    %p230 = por %p228, %p229
    %p232 = scmp.ne.s32.totalorder %s215, %s231
    %p233 = scmp.eq.s32.totalorder %s21, 0
    %p234 = por %p232, %p233
    %s236 = sadd.s32 %s235, 1
    %p239 = scmp.eq.s32.totalorder %s15, 3
    %p240 = scmp.ne.s32.totalorder %s235, %s237
    %p241 = scmp.eq.s32.totalorder %s15, 0
    %p242 = por %p240, %p241
    %p243 = scmp.ne.s32.totalorder %s235, %s237
    %p244 = scmp.eq.s32.totalorder %s20, 3
    %p245 = por %p243, %p244
    %p246 = scmp.ne.s32.totalorder %s237, %s238
    %p247 = scmp.eq.s32.totalorder %s20, 0
    %p248 = por %p246, %p247
    %p249 = scmp.ne.s32.totalorder %s237, %s238
    %p250 = scmp.eq.s32.totalorder %s21, 3
    %p251 = por %p249, %p250
    %p253 = scmp.ne.s32.totalorder %s238, %s252
    %p254 = scmp.eq.s32.totalorder %s21, 0
    %p255 = por %p253, %p254
    %s257 = sadd.s32 %s256, 1
    %p260 = scmp.eq.s32.totalorder %s15, 3
    %p261 = scmp.ne.s32.totalorder %s256, %s258
    %p262 = scmp.eq.s32.totalorder %s15, 0
    %p263 = por %p261, %p262
    %p264 = scmp.ne.s32.totalorder %s256, %s258
    %p265 = scmp.eq.s32.totalorder %s20, 3
    %p266 = por %p264, %p265
    %p267 = scmp.ne.s32.totalorder %s258, %s259
    %p268 = scmp.eq.s32.totalorder %s20, 0
    %p269 = por %p267, %p268
    %p270 = scmp.ne.s32.totalorder %s258, %s259
    %p271 = scmp.eq.s32.totalorder %s21, 3
    %p272 = por %p270, %p271
    %p274 = scmp.ne.s32.totalorder %s259, %s273
    %p275 = scmp.eq.s32.totalorder %s21, 0
    %p276 = por %p274, %p275
    %s278 = sadd.s32 %s277, 1
    %p281 = scmp.eq.s32.totalorder %s15, 3
    %p282 = scmp.ne.s32.totalorder %s277, %s279
    %p283 = scmp.eq.s32.totalorder %s15, 0
    %p284 = por %p282, %p283
    %p285 = scmp.ne.s32.totalorder %s277, %s279
    %p286 = scmp.eq.s32.totalorder %s20, 3
    %p287 = por %p285, %p286
    %p288 = scmp.ne.s32.totalorder %s279, %s280
    %p289 = scmp.eq.s32.totalorder %s20, 0
    %p290 = por %p288, %p289
    %p291 = scmp.ne.s32.totalorder %s279, %s280
    %p292 = scmp.eq.s32.totalorder %s21, 3
    %p293 = por %p291, %p292
    %p295 = scmp.ne.s32.totalorder %s280, %s294
    %p296 = scmp.eq.s32.totalorder %s21, 0
    %p297 = por %p295, %p296
    %s298 = ssub.s32 %s22, %s34
    %s299 = ssub.s32 %s23, %s30
    %s300 = sor.u32 %s298, %s299
    %p301 = scmp.eq.s32.totalorder %s300, 0
    %s303 = sadd.s32 %s302, 1
    %s304 = scalar_select %p301, %s302, %s303
    %p307 = pneg %p301
    %p308 = scmp.eq.s32.totalorder %s15, 3
    %p309 = por %p307, %p308
    %p310 = scmp.ne.s32.totalorder %s302, %s305
    %p311 = scmp.eq.s32.totalorder %s15, 0
    %p312 = por %p310, %p311
    %p313 = scmp.ne.s32.totalorder %s302, %s305
    %p314 = scmp.eq.s32.totalorder %s20, 3
    %p315 = por %p313, %p314
    %p316 = scmp.ne.s32.totalorder %s305, %s306
    %p317 = scmp.eq.s32.totalorder %s20, 0
    %p318 = por %p316, %p317
    %p319 = scmp.ne.s32.totalorder %s305, %s306
    %p320 = scmp.eq.s32.totalorder %s21, 3
    %p321 = por %p319, %p320
    %p323 = scmp.ne.s32.totalorder %s306, %s322
    %p324 = scmp.eq.s32.totalorder %s21, 0
    %p325 = por %p323, %p324
    %p326 = scmp.le.s32.totalorder 1, %s15
    %p327 = scmp.lt.s32.totalorder %s15, 5
    %p328 = pnand %p326, %p327
    %p329 = pneg %p328
    // Predicated region
    $region9: #{simfusion_forward.1} parent=5 // pred_check
      _
    $region10: #{simfusion_forward.1} parent=5 // pred_check_branch
      %331 = sbr.rel (%p328) target = $region12
    $region11: #{simfusion_forward.1} parent=5 // pred_region
      %s332 = ssub.s32 %s15, 1
      // Predicated region
      $region13: #{simfusion_forward.1} parent=11 // pred_check
        %p333 = pneg %p248
      $region14: #{simfusion_forward.1} parent=11 // pred_check_branch
        %335 = sbr.rel (%p333) target = $region16
      $region15: #{simfusion_forward.1} parent=11 // pred_region
        _
      $region16: #{simfusion_forward.1} parent=11 // pred_fallthru
        _
      // Predicated region
      $region17: #{simfusion_forward.1} parent=11 // pred_check
        %p336 = pneg %p269
      $region18: #{simfusion_forward.1} parent=11 // pred_check_branch
        %338 = sbr.rel (%p336) target = $region20
      $region19: #{simfusion_forward.1} parent=11 // pred_region
        _
      $region20: #{simfusion_forward.1} parent=11 // pred_fallthru
        _
      // Predicated region
      $region21: #{simfusion_forward.1} parent=11 // pred_check
        %p339 = pneg %p290
      $region22: #{simfusion_forward.1} parent=11 // pred_check_branch
        %341 = sbr.rel (%p339) target = $region24
      $region23: #{simfusion_forward.1} parent=11 // pred_region
        _
      $region24: #{simfusion_forward.1} parent=11 // pred_fallthru
        _
    $region12: #{simfusion_forward.1} parent=5 // pred_fallthru
      _
    %p342 = scmp.lt.s32.totalorder %s15, 4
    // Predicated region
    $region25: #{simfusion_forward.1} parent=5 // pred_check
      %p343 = pneg %p342
    $region26: #{simfusion_forward.1} parent=5 // pred_check_branch
      %345 = sbr.rel (%p343) target = $region28
    $region27: #{simfusion_forward.1} parent=5 // pred_region
      // Predicated region
      $region29: #{simfusion_forward.1} parent=27 // pred_check
        %p346 = pneg %p49
      $region30: #{simfusion_forward.1} parent=27 // pred_check_branch
        %348 = sbr.rel (%p346) target = $region32
      $region31: #{simfusion_forward.1} parent=27 // pred_region
        %s349 = smul.u32 16, %s23
        %p350 = scmp.lt.s32.totalorder %s22, 1
        %s351 = scalar_select %p350, %s22, 1
        %p352 = scmp.lt.s32.totalorder %s349, 31
        %s353 = scalar_select %p352, %s349, 31
        %s354 = smul.addr %s351, 32
        %s355 = sadd.s32 %s353, %s354
        %s356 = smul.addr %s355, 8
        %s357 = scalar_lea.vmem %s0, %s356
        %s358 = smul.u32 16, %s23
      $region32: #{simfusion_forward.1} parent=27 // pred_fallthru
        _
      // Predicated region
      $region33: #{simfusion_forward.1} parent=27 // pred_check
        %p359 = pneg %p85
      $region34: #{simfusion_forward.1} parent=27 // pred_check_branch
        %361 = sbr.rel (%p359) target = $region36
      $region35: #{simfusion_forward.1} parent=27 // pred_region
        %s362 = smul.u32 %s23, 4
        %s363 = ssub.s32 %s362, 1
        %p364 = scmp.gt.s32.totalorder %s363, 0
        %s365 = scalar_select %p364, %s363, 0
        %s366 = smul.u32 4, %s365
        %p367 = scmp.lt.s32.totalorder %s22, 1
        %s368 = scalar_select %p367, %s22, 1
        %p369 = scmp.lt.s32.totalorder %s366, 31
        %s370 = scalar_select %p369, %s366, 31
        %s371 = smul.addr %s368, 32
        %s372 = sadd.s32 %s370, %s371
        %s373 = smul.addr %s372, 8
        %s374 = scalar_lea.vmem %s1, %s373
        %s375 = smul.u32 %s23, 4
        %s376 = ssub.s32 %s375, 1
        %p377 = scmp.gt.s32.totalorder %s376, 0
        %s378 = scalar_select %p377, %s376, 0
        %s379 = smul.u32 4, %s378
      $region36: #{simfusion_forward.1} parent=27 // pred_fallthru
        _
      // Predicated region
      $region37: #{simfusion_forward.1} parent=27 // pred_check
        %p380 = pneg %p121
      $region38: #{simfusion_forward.1} parent=27 // pred_check_branch
        %382 = sbr.rel (%p380) target = $region40
      $region39: #{simfusion_forward.1} parent=27 // pred_region
        %s383 = sadd.s32 %s23, 1
        %s384 = smul.u32 %s383, 4
        %p385 = scmp.lt.s32.totalorder %s384, 7
        %s386 = scalar_select %p385, %s384, 7
        %s387 = smul.u32 4, %s386
        %p388 = scmp.lt.s32.totalorder %s22, 1
        %s389 = scalar_select %p388, %s22, 1
        %p390 = scmp.lt.s32.totalorder %s387, 31
        %s391 = scalar_select %p390, %s387, 31
        %s392 = smul.addr %s389, 32
        %s393 = sadd.s32 %s391, %s392
        %s394 = smul.addr %s393, 8
        %s395 = scalar_lea.vmem %s2, %s394
        %s396 = sadd.s32 %s23, 1
        %s397 = smul.u32 %s396, 4
        %p398 = scmp.lt.s32.totalorder %s397, 7
        %s399 = scalar_select %p398, %s397, 7
        %s400 = smul.u32 4, %s399
      $region40: #{simfusion_forward.1} parent=27 // pred_fallthru
        _
      // Predicated region
      $region41: #{simfusion_forward.1} parent=27 // pred_check
        %p401 = pneg %p149
      $region42: #{simfusion_forward.1} parent=27 // pred_check_branch
        %403 = sbr.rel (%p401) target = $region44
      $region43: #{simfusion_forward.1} parent=27 // pred_region
        %s404 = smul.u32 16, %s23
        %p405 = scmp.lt.s32.totalorder %s22, 1
        %s406 = scalar_select %p405, %s22, 1
        %p407 = scmp.lt.s32.totalorder %s404, 31
        %s408 = scalar_select %p407, %s404, 31
        %s409 = smul.addr %s406, 32
        %s410 = sadd.s32 %s408, %s409
        %s411 = smul.addr %s410, 8
        %s412 = scalar_lea.vmem %s3, %s411
        %s413 = smul.u32 16, %s23
      $region44: #{simfusion_forward.1} parent=27 // pred_fallthru
        _
      // Predicated region
      $region45: #{simfusion_forward.1} parent=27 // pred_check
        %p414 = pneg %p185
      $region46: #{simfusion_forward.1} parent=27 // pred_check_branch
        %416 = sbr.rel (%p414) target = $region48
      $region47: #{simfusion_forward.1} parent=27 // pred_region
        %s417 = smul.u32 %s23, 4
        %s418 = ssub.s32 %s417, 1
        %p419 = scmp.gt.s32.totalorder %s418, 0
        %s420 = scalar_select %p419, %s418, 0
        %s421 = smul.u32 4, %s420
        %p422 = scmp.lt.s32.totalorder %s22, 1
        %s423 = scalar_select %p422, %s22, 1
        %p424 = scmp.lt.s32.totalorder %s421, 31
        %s425 = scalar_select %p424, %s421, 31
        %s426 = smul.addr %s423, 32
        %s427 = sadd.s32 %s425, %s426
        %s428 = smul.addr %s427, 8
        %s429 = scalar_lea.vmem %s4, %s428
        %s430 = smul.u32 %s23, 4
        %s431 = ssub.s32 %s430, 1
        %p432 = scmp.gt.s32.totalorder %s431, 0
        %s433 = scalar_select %p432, %s431, 0
        %s434 = smul.u32 4, %s433
      $region48: #{simfusion_forward.1} parent=27 // pred_fallthru
        _
      // Predicated region
      $region49: #{simfusion_forward.1} parent=27 // pred_check
        %p435 = pneg %p221
      $region50: #{simfusion_forward.1} parent=27 // pred_check_branch
        %437 = sbr.rel (%p435) target = $region52
      $region51: #{simfusion_forward.1} parent=27 // pred_region
        %s438 = sadd.s32 %s23, 1
        %s439 = smul.u32 %s438, 4
        %p440 = scmp.lt.s32.totalorder %s439, 7
        %s441 = scalar_select %p440, %s439, 7
        %s442 = smul.u32 4, %s441
        %p443 = scmp.lt.s32.totalorder %s22, 1
        %s444 = scalar_select %p443, %s22, 1
        %p445 = scmp.lt.s32.totalorder %s442, 31
        %s446 = scalar_select %p445, %s442, 31
        %s447 = smul.addr %s444, 32
        %s448 = sadd.s32 %s446, %s447
        %s449 = smul.addr %s448, 8
        %s450 = scalar_lea.vmem %s5, %s449
        %s451 = sadd.s32 %s23, 1
        %s452 = smul.u32 %s451, 4
        %p453 = scmp.lt.s32.totalorder %s452, 7
        %s454 = scalar_select %p453, %s452, 7
        %s455 = smul.u32 4, %s454
      $region52: #{simfusion_forward.1} parent=27 // pred_fallthru
        _
    $region28: #{simfusion_forward.1} parent=5 // pred_fallthru
      _
    %p456 = scmp.le.s32.totalorder 1, %s15
    %p457 = scmp.lt.s32.totalorder %s15, 5
    %p458 = pnand %p456, %p457
    %p459 = pneg %p458
    // Predicated region
    $region53: #{simfusion_forward.1} parent=5 // pred_check
      _
    $region54: #{simfusion_forward.1} parent=5 // pred_check_branch
      %461 = sbr.rel (%p458) target = $region56
    $region55: #{simfusion_forward.1} parent=5 // pred_region
      %s462 = ssub.s32 %s15, 1
      %s463 = smul.u32 16, %s25
      %p464 = scmp.lt.s32.totalorder %s24, 1
      %s465 = scalar_select %p464, %s24, 1
      %p466 = scmp.lt.s32.totalorder %s463, 31
      %s467 = scalar_select %p466, %s463, 31
      %s468 = smul.addr %s465, 32
      %s469 = sadd.s32 %s467, %s468
      %s470 = smul.addr %s469, 8
      %s471 = scalar_lea.vmem %s0, %s470
      %p472 = pneg %p55
      %p473 = pneg %p52
      %s474 = smul.u32 %s25, 4
      %s475 = ssub.s32 %s474, 1
      %p476 = scmp.gt.s32.totalorder %s475, 0
      %s477 = scalar_select %p476, %s475, 0
      %s478 = smul.u32 4, %s477
      %p479 = scmp.lt.s32.totalorder %s24, 1
      %s480 = scalar_select %p479, %s24, 1
      %p481 = scmp.lt.s32.totalorder %s478, 31
      %s482 = scalar_select %p481, %s478, 31
      %s483 = smul.addr %s480, 32
      %s484 = sadd.s32 %s482, %s483
      %s485 = smul.addr %s484, 8
      %s486 = scalar_lea.vmem %s1, %s485
      %p487 = pneg %p91
      %p488 = pneg %p88
      %s489 = sadd.s32 %s25, 1
      %s490 = smul.u32 %s489, 4
      %p491 = scmp.lt.s32.totalorder %s490, 7
      %s492 = scalar_select %p491, %s490, 7
      %s493 = smul.u32 4, %s492
      %p494 = scmp.lt.s32.totalorder %s24, 1
      %s495 = scalar_select %p494, %s24, 1
      %p496 = scmp.lt.s32.totalorder %s493, 31
      %s497 = scalar_select %p496, %s493, 31
      %s498 = smul.addr %s495, 32
      %s499 = sadd.s32 %s497, %s498
      %s500 = smul.addr %s499, 8
      %s501 = scalar_lea.vmem %s2, %s500
      %p502 = pneg %p127
      %p503 = pneg %p124
      %s504 = smul.u32 16, %s25
      %p505 = scmp.lt.s32.totalorder %s24, 1
      %s506 = scalar_select %p505, %s24, 1
      %p507 = scmp.lt.s32.totalorder %s504, 31
      %s508 = scalar_select %p507, %s504, 31
      %s509 = smul.addr %s506, 32
      %s510 = sadd.s32 %s508, %s509
      %s511 = smul.addr %s510, 8
      %s512 = scalar_lea.vmem %s3, %s511
      %p513 = pneg %p155
      %p514 = pneg %p152
      %s515 = smul.u32 %s25, 4
      %s516 = ssub.s32 %s515, 1
      %p517 = scmp.gt.s32.totalorder %s516, 0
      %s518 = scalar_select %p517, %s516, 0
      %s519 = smul.u32 4, %s518
      %p520 = scmp.lt.s32.totalorder %s24, 1
      %s521 = scalar_select %p520, %s24, 1
      %p522 = scmp.lt.s32.totalorder %s519, 31
      %s523 = scalar_select %p522, %s519, 31
      %s524 = smul.addr %s521, 32
      %s525 = sadd.s32 %s523, %s524
      %s526 = smul.addr %s525, 8
      %s527 = scalar_lea.vmem %s4, %s526
      %p528 = pneg %p191
      %p529 = pneg %p188
      %s530 = sadd.s32 %s25, 1
      %s531 = smul.u32 %s530, 4
      %p532 = scmp.lt.s32.totalorder %s531, 7
      %s533 = scalar_select %p532, %s531, 7
      %s534 = smul.u32 4, %s533
      %p535 = scmp.lt.s32.totalorder %s24, 1
      %s536 = scalar_select %p535, %s24, 1
      %p537 = scmp.lt.s32.totalorder %s534, 31
      %s538 = scalar_select %p537, %s534, 31
      %s539 = smul.addr %s536, 32
      %s540 = sadd.s32 %s538, %s539
      %s541 = smul.addr %s540, 8
      %s542 = scalar_lea.vmem %s5, %s541
      %p543 = pneg %p227
      %p544 = pneg %p224
      %p545 = pneg %p248
      %p546 = pneg %p245
      %p547 = pneg %p269
      %p548 = pneg %p266
      %p549 = pneg %p290
      %p550 = pneg %p287
      %p551 = pneg %p318
      %p552 = pneg %p315
      %s553 = smul.u32 16, %s25
      %p554 = scmp.lt.s32.totalorder %s24, 1
      %s555 = scalar_select %p554, %s24, 1
      %p556 = scmp.lt.s32.totalorder %s553, 31
      %s557 = scalar_select %p556, %s553, 31
      %s558 = smul.addr %s555, 32
      %s559 = sadd.s32 %s557, %s558
      %s560 = smul.addr %s559, 8
      %s561 = scalar_lea.vmem %s9, %s560
      %s562 = smul.u32 16, %s25
      %p563 = scmp.lt.s32.totalorder %s24, 1
      %s564 = scalar_select %p563, %s24, 1
      %p565 = scmp.lt.s32.totalorder %s562, 31
      %s566 = scalar_select %p565, %s562, 31
      %s567 = smul.addr %s564, 32
      %s568 = sadd.s32 %s566, %s567
      %s569 = smul.addr %s568, 8
      %s570 = scalar_lea.vmem %s0, %s569
      %s571 = smul.u32 16, %s25
      %s572 = smul.u32 %s25, 4
      %s573 = ssub.s32 %s572, 1
      %p574 = scmp.gt.s32.totalorder %s573, 0
      %s575 = scalar_select %p574, %s573, 0
      %s576 = smul.u32 4, %s575
      %p577 = scmp.lt.s32.totalorder %s24, 1
      %s578 = scalar_select %p577, %s24, 1
      %p579 = scmp.lt.s32.totalorder %s576, 31
      %s580 = scalar_select %p579, %s576, 31
      %s581 = smul.addr %s578, 32
      %s582 = sadd.s32 %s580, %s581
      %s583 = smul.addr %s582, 8
      %s584 = scalar_lea.vmem %s1, %s583
      %s585 = smul.u32 %s25, 4
      %s586 = ssub.s32 %s585, 1
      %p587 = scmp.gt.s32.totalorder %s586, 0
      %s588 = scalar_select %p587, %s586, 0
      %s589 = smul.u32 4, %s588
      %s590 = sadd.s32 %s25, 1
      %s591 = smul.u32 %s590, 4
      %p592 = scmp.lt.s32.totalorder %s591, 7
      %s593 = scalar_select %p592, %s591, 7
      %s594 = smul.u32 4, %s593
      %p595 = scmp.lt.s32.totalorder %s24, 1
      %s596 = scalar_select %p595, %s24, 1
      %p597 = scmp.lt.s32.totalorder %s594, 31
      %s598 = scalar_select %p597, %s594, 31
      %s599 = smul.addr %s596, 32
      %s600 = sadd.s32 %s598, %s599
      %s601 = smul.addr %s600, 8
      %s602 = scalar_lea.vmem %s2, %s601
      %s603 = sadd.s32 %s25, 1
      %s604 = smul.u32 %s603, 4
      %p605 = scmp.lt.s32.totalorder %s604, 7
      %s606 = scalar_select %p605, %s604, 7
      %s607 = smul.u32 4, %s606
      %s608 = smul.u32 16, %s25
      %p609 = scmp.lt.s32.totalorder %s24, 1
      %s610 = scalar_select %p609, %s24, 1
      %p611 = scmp.lt.s32.totalorder %s608, 31
      %s612 = scalar_select %p611, %s608, 31
      %s613 = smul.addr %s610, 32
      %s614 = sadd.s32 %s612, %s613
      %s615 = smul.addr %s614, 8
      %s616 = scalar_lea.vmem %s3, %s615
      %s617 = smul.u32 16, %s25
      %s618 = smul.u32 %s25, 4
      %s619 = ssub.s32 %s618, 1
      %p620 = scmp.gt.s32.totalorder %s619, 0
      %s621 = scalar_select %p620, %s619, 0
      %s622 = smul.u32 4, %s621
      %p623 = scmp.lt.s32.totalorder %s24, 1
      %s624 = scalar_select %p623, %s24, 1
      %p625 = scmp.lt.s32.totalorder %s622, 31
      %s626 = scalar_select %p625, %s622, 31
      %s627 = smul.addr %s624, 32
      %s628 = sadd.s32 %s626, %s627
      %s629 = smul.addr %s628, 8
      %s630 = scalar_lea.vmem %s4, %s629
      %s631 = smul.u32 %s25, 4
      %s632 = ssub.s32 %s631, 1
      %p633 = scmp.gt.s32.totalorder %s632, 0
      %s634 = scalar_select %p633, %s632, 0
      %s635 = smul.u32 4, %s634
      %s636 = sadd.s32 %s25, 1
      %s637 = smul.u32 %s636, 4
      %p638 = scmp.lt.s32.totalorder %s637, 7
      %s639 = scalar_select %p638, %s637, 7
      %s640 = smul.u32 4, %s639
      %p641 = scmp.lt.s32.totalorder %s24, 1
      %s642 = scalar_select %p641, %s24, 1
      %p643 = scmp.lt.s32.totalorder %s640, 31
      %s644 = scalar_select %p643, %s640, 31
      %s645 = smul.addr %s642, 32
      %s646 = sadd.s32 %s644, %s645
      %s647 = smul.addr %s646, 8
      %s648 = scalar_lea.vmem %s5, %s647
      %s649 = sadd.s32 %s25, 1
      %s650 = smul.u32 %s649, 4
      %p651 = scmp.lt.s32.totalorder %s650, 7
      %s652 = scalar_select %p651, %s650, 7
      %s653 = smul.u32 4, %s652
      %s654 = smul.u32 16, %s25
      %p655 = scmp.lt.s32.totalorder %s24, 1
      %s656 = scalar_select %p655, %s24, 1
      %p657 = scmp.lt.s32.totalorder %s654, 31
      %s658 = scalar_select %p657, %s654, 31
      %s659 = smul.addr %s656, 32
      %s660 = sadd.s32 %s658, %s659
      %s661 = smul.addr %s660, 8
      %s662 = scalar_lea.vmem %s9, %s661
      %s663 = smul.u32 16, %s25
      %p665 = scmp.eq.s32.totalorder %s25, 0
      %p666 = scmp.eq.s32.totalorder %s25, 1
      %v667 = vld [vmem:[%s584] sm:$0xff]
      %v668 = vld [vmem:[%s584 + $0x8] sm:$0xff]
      %v669 = vld [vmem:[%s584 + $0x10] sm:$0xff]
      %v670 = vld [vmem:[%s584 + $0x18] sm:$0xff]
      %s671 = scalar_select %p665, 1, 0
      %v672 = vstv %s671
      %vm673 = vcmp.eq.s32.totalorder %v672, 1
      %v674 = vsel %vm673, 0.0, %v667
      %v675 = vsel %vm673, 0.0, %v668
      %v676 = vsel %vm673, 0.0, %v669
      %v677 = vsel %vm673, 0.0, %v670
      %v678 = vld [vmem:[%s570] sm:$0xff]
      %v679 = vld [vmem:[%s570 + $0x8] sm:$0xff]
      %v680 = vld [vmem:[%s570 + $0x10] sm:$0xff]
      %v681 = vld [vmem:[%s570 + $0x18] sm:$0xff]
      %v682 = vld [vmem:[%s570 + $0x20] sm:$0xff]
      %v683 = vld [vmem:[%s570 + $0x28] sm:$0xff]
      %v684 = vld [vmem:[%s570 + $0x30] sm:$0xff]
      %v685 = vld [vmem:[%s570 + $0x38] sm:$0xff]
      %v686 = vld [vmem:[%s570 + $0x40] sm:$0xff]
      %v687 = vld [vmem:[%s570 + $0x48] sm:$0xff]
      %v688 = vld [vmem:[%s570 + $0x50] sm:$0xff]
      %v689 = vld [vmem:[%s570 + $0x58] sm:$0xff]
      %v690 = vld [vmem:[%s570 + $0x60] sm:$0xff]
      %v691 = vld [vmem:[%s570 + $0x68] sm:$0xff]
      %v692 = vld [vmem:[%s570 + $0x70] sm:$0xff]
      %v693 = vld [vmem:[%s570 + $0x78] sm:$0xff]
      %v694 = vld [vmem:[%s602] sm:$0xff]
      %v695 = vld [vmem:[%s602 + $0x8] sm:$0xff]
      %v696 = vld [vmem:[%s602 + $0x10] sm:$0xff]
      %v697 = vld [vmem:[%s602 + $0x18] sm:$0xff]
      %s698 = scalar_select %p666, 1, 0
      %v699 = vstv %s698
      %vm700 = vcmp.eq.s32.totalorder %v699, 1
      %v701 = vsel %vm700, 0.0, %v694
      %v702 = vsel %vm700, 0.0, %v695
      %v703 = vsel %vm700, 0.0, %v696
      %v704 = vsel %vm700, 0.0, %v697
      %v705 = vld [vmem:[%s630] sm:$0xff]
      %v706 = vld [vmem:[%s630 + $0x8] sm:$0xff]
      %v707 = vld [vmem:[%s630 + $0x10] sm:$0xff]
      %v708 = vld [vmem:[%s630 + $0x18] sm:$0xff]
      %v709 = vsel %vm673, 0.0, %v705
      %v710 = vsel %vm673, 0.0, %v706
      %v711 = vsel %vm673, 0.0, %v707
      %v712 = vsel %vm673, 0.0, %v708
      %v713 = vld [vmem:[%s616] sm:$0xff]
      %v714 = vld [vmem:[%s616 + $0x8] sm:$0xff]
      %v715 = vld [vmem:[%s616 + $0x10] sm:$0xff]
      %v716 = vld [vmem:[%s616 + $0x18] sm:$0xff]
      %v717 = vld [vmem:[%s616 + $0x20] sm:$0xff]
      %v718 = vld [vmem:[%s616 + $0x28] sm:$0xff]
      %v719 = vld [vmem:[%s616 + $0x30] sm:$0xff]
      %v720 = vld [vmem:[%s616 + $0x38] sm:$0xff]
      %v721 = vld [vmem:[%s616 + $0x40] sm:$0xff]
      %v722 = vld [vmem:[%s616 + $0x48] sm:$0xff]
      %v723 = vld [vmem:[%s616 + $0x50] sm:$0xff]
      %v724 = vld [vmem:[%s616 + $0x58] sm:$0xff]
      %v725 = vld [vmem:[%s616 + $0x60] sm:$0xff]
      %v726 = vld [vmem:[%s616 + $0x68] sm:$0xff]
      %v727 = vld [vmem:[%s616 + $0x70] sm:$0xff]
      %v728 = vld [vmem:[%s616 + $0x78] sm:$0xff]
      %v729 = vld [vmem:[%s648] sm:$0xff]
      %v730 = vld [vmem:[%s648 + $0x8] sm:$0xff]
      %v731 = vld [vmem:[%s648 + $0x10] sm:$0xff]
      %v732 = vld [vmem:[%s648 + $0x18] sm:$0xff]
      %v733 = vsel %vm700, 0.0, %v729
      %v734 = vsel %vm700, 0.0, %v730
      %v735 = vsel %vm700, 0.0, %v731
      %v736 = vsel %vm700, 0.0, %v732
      %v737 = vlaneseq
      %v738 = vshrl.u32 %v737, 7
      %v739 = vadd.s32 %v738, 8
      %v740 = vadd.s32 %v738, 16
      %v741 = vadd.s32 %v738, 24
      %v742 = vadd.s32 %v738, 32
      %v743 = vadd.s32 %v738, 40
      %v744 = vadd.s32 %v738, 48
      %v745 = vadd.s32 %v738, 56
      %v746 = vadd.s32 %v738, 64
      %v747 = vadd.s32 %v738, 72
      %v748 = vadd.s32 %v738, 80
      %v749 = vadd.s32 %v738, 88
      %v750 = vadd.s32 %v738, 96
      %v751 = vadd.s32 %v738, 104
      %v752 = vadd.s32 %v738, 112
      %v753 = vadd.s32 %v738, 120
      %v754 = vadd.s32 %v738, 128
      %v755 = vadd.s32 %v738, 136
      %v756 = vadd.s32 %v738, 144
      %v757 = vadd.s32 %v738, 152
      %v758 = vadd.s32 %v738, 160
      %v759 = vadd.s32 %v738, 168
      %v760 = vadd.s32 %v738, 176
      %v761 = vadd.s32 %v738, 184
      %vm762 = vcmp.lt.s32.totalorder %v738, 0
      %v763 = vsub.s32 0, %v738
      %v764 = vsel %vm762, %v763, %v738
      %v765 = vshrl.u32 %v764, 4
      %v766 = vand.u32 %v764, 15
      %v767 = vsub.s32 0, %v766
      %v768 = vsel %vm762, %v767, %v766
      %vm769 = vcmp.lt.s32.totalorder %v739, 0
      %v770 = vsub.s32 0, %v739
      %v771 = vsel %vm769, %v770, %v739
      %v772 = vshrl.u32 %v771, 4
      %v773 = vand.u32 %v771, 15
      %v774 = vsub.s32 0, %v773
      %v775 = vsel %vm769, %v774, %v773
      %vm776 = vcmp.lt.s32.totalorder %v740, 0
      %v777 = vsub.s32 0, %v740
      %v778 = vsel %vm776, %v777, %v740
      %v779 = vshrl.u32 %v778, 4
      %v780 = vand.u32 %v778, 15
      %v781 = vsub.s32 0, %v780
      %v782 = vsel %vm776, %v781, %v780
      %vm783 = vcmp.lt.s32.totalorder %v741, 0
      %v784 = vsub.s32 0, %v741
      %v785 = vsel %vm783, %v784, %v741
      %v786 = vshrl.u32 %v785, 4
      %v787 = vand.u32 %v785, 15
      %v788 = vsub.s32 0, %v787
      %v789 = vsel %vm783, %v788, %v787
      %vm790 = vcmp.lt.s32.totalorder %v742, 0
      %v791 = vsub.s32 0, %v742
      %v792 = vsel %vm790, %v791, %v742
      %v793 = vshrl.u32 %v792, 4
      %v794 = vand.u32 %v792, 15
      %v795 = vsub.s32 0, %v794
      %v796 = vsel %vm790, %v795, %v794
      %vm797 = vcmp.lt.s32.totalorder %v743, 0
      %v798 = vsub.s32 0, %v743
      %v799 = vsel %vm797, %v798, %v743
      %v800 = vshrl.u32 %v799, 4
      %v801 = vand.u32 %v799, 15
      %v802 = vsub.s32 0, %v801
      %v803 = vsel %vm797, %v802, %v801
      %vm804 = vcmp.lt.s32.totalorder %v744, 0
      %v805 = vsub.s32 0, %v744
      %v806 = vsel %vm804, %v805, %v744
      %v807 = vshrl.u32 %v806, 4
      %v808 = vand.u32 %v806, 15
      %v809 = vsub.s32 0, %v808
      %v810 = vsel %vm804, %v809, %v808
      %vm811 = vcmp.lt.s32.totalorder %v745, 0
      %v812 = vsub.s32 0, %v745
      %v813 = vsel %vm811, %v812, %v745
      %v814 = vshrl.u32 %v813, 4
      %v815 = vand.u32 %v813, 15
      %v816 = vsub.s32 0, %v815
      %v817 = vsel %vm811, %v816, %v815
      %vm818 = vcmp.lt.s32.totalorder %v746, 0
      %v819 = vsub.s32 0, %v746
      %v820 = vsel %vm818, %v819, %v746
      %v821 = vshrl.u32 %v820, 4
      %v822 = vand.u32 %v820, 15
      %v823 = vsub.s32 0, %v822
      %v824 = vsel %vm818, %v823, %v822
      %vm825 = vcmp.lt.s32.totalorder %v747, 0
      %v826 = vsub.s32 0, %v747
      %v827 = vsel %vm825, %v826, %v747
      %v828 = vshrl.u32 %v827, 4
      %v829 = vand.u32 %v827, 15
      %v830 = vsub.s32 0, %v829
      %v831 = vsel %vm825, %v830, %v829
      %vm832 = vcmp.lt.s32.totalorder %v748, 0
      %v833 = vsub.s32 0, %v748
      %v834 = vsel %vm832, %v833, %v748
      %v835 = vshrl.u32 %v834, 4
      %v836 = vand.u32 %v834, 15
      %v837 = vsub.s32 0, %v836
      %v838 = vsel %vm832, %v837, %v836
      %vm839 = vcmp.lt.s32.totalorder %v749, 0
      %v840 = vsub.s32 0, %v749
      %v841 = vsel %vm839, %v840, %v749
      %v842 = vshrl.u32 %v841, 4
      %v843 = vand.u32 %v841, 15
      %v844 = vsub.s32 0, %v843
      %v845 = vsel %vm839, %v844, %v843
      %vm846 = vcmp.lt.s32.totalorder %v750, 0
      %v847 = vsub.s32 0, %v750
      %v848 = vsel %vm846, %v847, %v750
      %v849 = vshrl.u32 %v848, 4
      %v850 = vand.u32 %v848, 15
      %v851 = vsub.s32 0, %v850
      %v852 = vsel %vm846, %v851, %v850
      %vm853 = vcmp.lt.s32.totalorder %v751, 0
      %v854 = vsub.s32 0, %v751
      %v855 = vsel %vm853, %v854, %v751
      %v856 = vshrl.u32 %v855, 4
      %v857 = vand.u32 %v855, 15
      %v858 = vsub.s32 0, %v857
      %v859 = vsel %vm853, %v858, %v857
      %vm860 = vcmp.lt.s32.totalorder %v752, 0
      %v861 = vsub.s32 0, %v752
      %v862 = vsel %vm860, %v861, %v752
      %v863 = vshrl.u32 %v862, 4
      %v864 = vand.u32 %v862, 15
      %v865 = vsub.s32 0, %v864
      %v866 = vsel %vm860, %v865, %v864
      %vm867 = vcmp.lt.s32.totalorder %v753, 0
      %v868 = vsub.s32 0, %v753
      %v869 = vsel %vm867, %v868, %v753
      %v870 = vshrl.u32 %v869, 4
      %v871 = vand.u32 %v869, 15
      %v872 = vsub.s32 0, %v871
      %v873 = vsel %vm867, %v872, %v871
      %vm874 = vcmp.lt.s32.totalorder %v754, 0
      %v875 = vsub.s32 0, %v754
      %v876 = vsel %vm874, %v875, %v754
      %v877 = vshrl.u32 %v876, 4
      %v878 = vand.u32 %v876, 15
      %v879 = vsub.s32 0, %v878
      %v880 = vsel %vm874, %v879, %v878
      %vm881 = vcmp.lt.s32.totalorder %v755, 0
      %v882 = vsub.s32 0, %v755
      %v883 = vsel %vm881, %v882, %v755
      %v884 = vshrl.u32 %v883, 4
      %v885 = vand.u32 %v883, 15
      %v886 = vsub.s32 0, %v885
      %v887 = vsel %vm881, %v886, %v885
      %vm888 = vcmp.lt.s32.totalorder %v756, 0
      %v889 = vsub.s32 0, %v756
      %v890 = vsel %vm888, %v889, %v756
      %v891 = vshrl.u32 %v890, 4
      %v892 = vand.u32 %v890, 15
      %v893 = vsub.s32 0, %v892
      %v894 = vsel %vm888, %v893, %v892
      %vm895 = vcmp.lt.s32.totalorder %v757, 0
      %v896 = vsub.s32 0, %v757
      %v897 = vsel %vm895, %v896, %v757
      %v898 = vshrl.u32 %v897, 4
      %v899 = vand.u32 %v897, 15
      %v900 = vsub.s32 0, %v899
      %v901 = vsel %vm895, %v900, %v899
      %vm902 = vcmp.lt.s32.totalorder %v758, 0
      %v903 = vsub.s32 0, %v758
      %v904 = vsel %vm902, %v903, %v758
      %v905 = vshrl.u32 %v904, 4
      %v906 = vand.u32 %v904, 15
      %v907 = vsub.s32 0, %v906
      %v908 = vsel %vm902, %v907, %v906
      %vm909 = vcmp.lt.s32.totalorder %v759, 0
      %v910 = vsub.s32 0, %v759
      %v911 = vsel %vm909, %v910, %v759
      %v912 = vshrl.u32 %v911, 4
      %v913 = vand.u32 %v911, 15
      %v914 = vsub.s32 0, %v913
      %v915 = vsel %vm909, %v914, %v913
      %vm916 = vcmp.lt.s32.totalorder %v760, 0
      %v917 = vsub.s32 0, %v760
      %v918 = vsel %vm916, %v917, %v760
      %v919 = vshrl.u32 %v918, 4
      %v920 = vand.u32 %v918, 15
      %v921 = vsub.s32 0, %v920
      %v922 = vsel %vm916, %v921, %v920
      %vm923 = vcmp.lt.s32.totalorder %v761, 0
      %v924 = vsub.s32 0, %v761
      %v925 = vsel %vm923, %v924, %v761
      %v926 = vshrl.u32 %v925, 4
      %v927 = vand.u32 %v925, 15
      %v928 = vsub.s32 0, %v927
      %v929 = vsel %vm923, %v928, %v927
      %vm930 = vcmp.ne.s32.totalorder %v768, 0
      %vm931 = vcmp.ne.s32.totalorder %v775, 0
      %vm932 = vcmp.ne.s32.totalorder %v782, 0
      %vm933 = vcmp.ne.s32.totalorder %v789, 0
      %vm934 = vcmp.ne.s32.totalorder %v796, 0
      %vm935 = vcmp.ne.s32.totalorder %v803, 0
      %vm936 = vcmp.ne.s32.totalorder %v810, 0
      %vm937 = vcmp.ne.s32.totalorder %v817, 0
      %vm938 = vcmp.ne.s32.totalorder %v824, 0
      %vm939 = vcmp.ne.s32.totalorder %v831, 0
      %vm940 = vcmp.ne.s32.totalorder %v838, 0
      %vm941 = vcmp.ne.s32.totalorder %v845, 0
      %vm942 = vcmp.ne.s32.totalorder %v852, 0
      %vm943 = vcmp.ne.s32.totalorder %v859, 0
      %vm944 = vcmp.ne.s32.totalorder %v866, 0
      %vm945 = vcmp.ne.s32.totalorder %v873, 0
      %vm946 = vcmp.ne.s32.totalorder %v880, 0
      %vm947 = vcmp.ne.s32.totalorder %v887, 0
      %vm948 = vcmp.ne.s32.totalorder %v894, 0
      %vm949 = vcmp.ne.s32.totalorder %v901, 0
      %vm950 = vcmp.ne.s32.totalorder %v908, 0
      %vm951 = vcmp.ne.s32.totalorder %v915, 0
      %vm952 = vcmp.ne.s32.totalorder %v922, 0
      %vm953 = vcmp.ne.s32.totalorder %v929, 0
      %vm954 = vcmp.lt.s32.totalorder %v768, 0
      %vm955 = vcmp.lt.s32.totalorder %v775, 0
      %vm956 = vcmp.lt.s32.totalorder %v782, 0
      %vm957 = vcmp.lt.s32.totalorder %v789, 0
      %vm958 = vcmp.lt.s32.totalorder %v796, 0
      %vm959 = vcmp.lt.s32.totalorder %v803, 0
      %vm960 = vcmp.lt.s32.totalorder %v810, 0
      %vm961 = vcmp.lt.s32.totalorder %v817, 0
      %vm962 = vcmp.lt.s32.totalorder %v824, 0
      %vm963 = vcmp.lt.s32.totalorder %v831, 0
      %vm964 = vcmp.lt.s32.totalorder %v838, 0
      %vm965 = vcmp.lt.s32.totalorder %v845, 0
      %vm966 = vcmp.lt.s32.totalorder %v852, 0
      %vm967 = vcmp.lt.s32.totalorder %v859, 0
      %vm968 = vcmp.lt.s32.totalorder %v866, 0
      %vm969 = vcmp.lt.s32.totalorder %v873, 0
      %vm970 = vcmp.lt.s32.totalorder %v880, 0
      %vm971 = vcmp.lt.s32.totalorder %v887, 0
      %vm972 = vcmp.lt.s32.totalorder %v894, 0
      %vm973 = vcmp.lt.s32.totalorder %v901, 0
      %vm974 = vcmp.lt.s32.totalorder %v908, 0
      %vm975 = vcmp.lt.s32.totalorder %v915, 0
      %vm976 = vcmp.lt.s32.totalorder %v922, 0
      %vm977 = vcmp.lt.s32.totalorder %v929, 0
      %vm978 = vmand %vm954, %vm930
      %vm979 = vmand %vm955, %vm931
      %vm980 = vmand %vm956, %vm932
      %vm981 = vmand %vm957, %vm933
      %vm982 = vmand %vm958, %vm934
      %vm983 = vmand %vm959, %vm935
      %vm984 = vmand %vm960, %vm936
      %vm985 = vmand %vm961, %vm937
      %vm986 = vmand %vm962, %vm938
      %vm987 = vmand %vm963, %vm939
      %vm988 = vmand %vm964, %vm940
      %vm989 = vmand %vm965, %vm941
      %vm990 = vmand %vm966, %vm942
      %vm991 = vmand %vm967, %vm943
      %vm992 = vmand %vm968, %vm944
      %vm993 = vmand %vm969, %vm945
      %vm994 = vmand %vm970, %vm946
      %vm995 = vmand %vm971, %vm947
      %vm996 = vmand %vm972, %vm948
      %vm997 = vmand %vm973, %vm949
      %vm998 = vmand %vm974, %vm950
      %vm999 = vmand %vm975, %vm951
      %vm1000 = vmand %vm976, %vm952
      %vm1001 = vmand %vm977, %vm953
      %v1002 = vadd.s32 %v768, 16
      %v1003 = vadd.s32 %v775, 16
      %v1004 = vadd.s32 %v782, 16
      %v1005 = vadd.s32 %v789, 16
      %v1006 = vadd.s32 %v796, 16
      %v1007 = vadd.s32 %v803, 16
      %v1008 = vadd.s32 %v810, 16
      %v1009 = vadd.s32 %v817, 16
      %v1010 = vadd.s32 %v824, 16
      %v1011 = vadd.s32 %v831, 16
      %v1012 = vadd.s32 %v838, 16
      %v1013 = vadd.s32 %v845, 16
      %v1014 = vadd.s32 %v852, 16
      %v1015 = vadd.s32 %v859, 16
      %v1016 = vadd.s32 %v866, 16
      %v1017 = vadd.s32 %v873, 16
      %v1018 = vadd.s32 %v880, 16
      %v1019 = vadd.s32 %v887, 16
      %v1020 = vadd.s32 %v894, 16
      %v1021 = vadd.s32 %v901, 16
      %v1022 = vadd.s32 %v908, 16
      %v1023 = vadd.s32 %v915, 16
      %v1024 = vadd.s32 %v922, 16
      %v1025 = vadd.s32 %v929, 16
      %v1026 = vsel %vm978, %v1002, %v768
      %v1027 = vsel %vm979, %v1003, %v775
      %v1028 = vsel %vm980, %v1004, %v782
      %v1029 = vsel %vm981, %v1005, %v789
      %v1030 = vsel %vm982, %v1006, %v796
      %v1031 = vsel %vm983, %v1007, %v803
      %v1032 = vsel %vm984, %v1008, %v810
      %v1033 = vsel %vm985, %v1009, %v817
      %v1034 = vsel %vm986, %v1010, %v824
      %v1035 = vsel %vm987, %v1011, %v831
      %v1036 = vsel %vm988, %v1012, %v838
      %v1037 = vsel %vm989, %v1013, %v845
      %v1038 = vsel %vm990, %v1014, %v852
      %v1039 = vsel %vm991, %v1015, %v859
      %v1040 = vsel %vm992, %v1016, %v866
      %v1041 = vsel %vm993, %v1017, %v873
      %v1042 = vsel %vm994, %v1018, %v880
      %v1043 = vsel %vm995, %v1019, %v887
      %v1044 = vsel %vm996, %v1020, %v894
      %v1045 = vsel %vm997, %v1021, %v901
      %v1046 = vsel %vm998, %v1022, %v908
      %v1047 = vsel %vm999, %v1023, %v915
      %v1048 = vsel %vm1000, %v1024, %v922
      %v1049 = vsel %vm1001, %v1025, %v929
      %v1050 = vrot.slane %v674, 7
      %v1051 = vrot.slane %v675, 7
      %v1052 = vrot.slane %v676, 7
      %v1053 = vrot.slane %v677, 7
      %v1054 = vrot.slane %v678, 7
      %v1055 = vrot.slane %v679, 7
      %v1056 = vrot.slane %v680, 7
      %v1057 = vrot.slane %v681, 7
      %v1058 = vrot.slane %v682, 7
      %v1059 = vrot.slane %v683, 7
      %v1060 = vrot.slane %v684, 7
      %v1061 = vrot.slane %v685, 7
      %v1062 = vrot.slane %v686, 7
      %v1063 = vrot.slane %v687, 7
      %v1064 = vrot.slane %v688, 7
      %v1065 = vrot.slane %v689, 7
      %v1066 = vrot.slane %v690, 7
      %v1067 = vrot.slane %v691, 7
      %v1068 = vrot.slane %v692, 7
      %v1069 = vrot.slane %v693, 7
      %v1070 = vrot.slane %v701, 7
      %v1071 = vrot.slane %v702, 7
      %v1072 = vrot.slane %v703, 7
      %v1073 = vrot.slane %v704, 7
      %vm1074 = vcmp.lt.s32.totalorder %v738, 1
      %v1075 = vsel %vm1074, %v1072, %v1073
      %v1076 = vsel %vm1074, %v1071, %v1072
      %v1077 = vsel %vm1074, %v1070, %v1071
      %v1078 = vsel %vm1074, %v1069, %v1070
      %v1079 = vsel %vm1074, %v1068, %v1069
      %v1080 = vsel %vm1074, %v1067, %v1068
      %v1081 = vsel %vm1074, %v1066, %v1067
      %v1082 = vsel %vm1074, %v1065, %v1066
      %v1083 = vsel %vm1074, %v1064, %v1065
      %v1084 = vsel %vm1074, %v1063, %v1064
      %v1085 = vsel %vm1074, %v1062, %v1063
      %v1086 = vsel %vm1074, %v1061, %v1062
      %v1087 = vsel %vm1074, %v1060, %v1061
      %v1088 = vsel %vm1074, %v1059, %v1060
      %v1089 = vsel %vm1074, %v1058, %v1059
      %v1090 = vsel %vm1074, %v1057, %v1058
      %v1091 = vsel %vm1074, %v1056, %v1057
      %v1092 = vsel %vm1074, %v1055, %v1056
      %v1093 = vsel %vm1074, %v1054, %v1055
      %v1094 = vsel %vm1074, %v1053, %v1054
      %v1095 = vsel %vm1074, %v1052, %v1053
      %v1096 = vsel %vm1074, %v1051, %v1052
      %v1097 = vsel %vm1074, %v1050, %v1051
      %v1098 = vsel %vm1074, %v1073, %v1050
      %vm1099 = vcmp.eq.s32.totalorder %v1026, 0
      %vm1100 = vcmp.eq.s32.totalorder %v1027, 0
      %vm1101 = vcmp.eq.s32.totalorder %v1028, 0
      %vm1102 = vcmp.eq.s32.totalorder %v1029, 0
      %vm1103 = vcmp.eq.s32.totalorder %v1030, 0
      %vm1104 = vcmp.eq.s32.totalorder %v1031, 0
      %vm1105 = vcmp.eq.s32.totalorder %v1032, 0
      %vm1106 = vcmp.eq.s32.totalorder %v1033, 0
      %vm1107 = vcmp.eq.s32.totalorder %v1034, 0
      %vm1108 = vcmp.eq.s32.totalorder %v1035, 0
      %vm1109 = vcmp.eq.s32.totalorder %v1036, 0
      %vm1110 = vcmp.eq.s32.totalorder %v1037, 0
      %vm1111 = vcmp.eq.s32.totalorder %v1038, 0
      %vm1112 = vcmp.eq.s32.totalorder %v1039, 0
      %vm1113 = vcmp.eq.s32.totalorder %v1040, 0
      %vm1114 = vcmp.eq.s32.totalorder %v1041, 0
      %vm1115 = vcmp.eq.s32.totalorder %v1042, 0
      %vm1116 = vcmp.eq.s32.totalorder %v1043, 0
      %vm1117 = vcmp.eq.s32.totalorder %v1044, 0
      %vm1118 = vcmp.eq.s32.totalorder %v1045, 0
      %vm1119 = vcmp.eq.s32.totalorder %v1046, 0
      %vm1120 = vcmp.eq.s32.totalorder %v1047, 0
      %vm1121 = vcmp.eq.s32.totalorder %v1048, 0
      %vm1122 = vcmp.eq.s32.totalorder %v1049, 0
      %v1123 = vsel %vm1099, 1, 0
      %v1124 = vsel %vm1100, 1, 0
      %v1125 = vsel %vm1101, 1, 0
      %v1126 = vsel %vm1102, 1, 0
      %v1127 = vsel %vm1103, 1, 0
      %v1128 = vsel %vm1104, 1, 0
      %v1129 = vsel %vm1105, 1, 0
      %v1130 = vsel %vm1106, 1, 0
      %v1131 = vsel %vm1107, 1, 0
      %v1132 = vsel %vm1108, 1, 0
      %v1133 = vsel %vm1109, 1, 0
      %v1134 = vsel %vm1110, 1, 0
      %v1135 = vsel %vm1111, 1, 0
      %v1136 = vsel %vm1112, 1, 0
      %v1137 = vsel %vm1113, 1, 0
      %v1138 = vsel %vm1114, 1, 0
      %v1139 = vsel %vm1115, 1, 0
      %v1140 = vsel %vm1116, 1, 0
      %v1141 = vsel %vm1117, 1, 0
      %v1142 = vsel %vm1118, 1, 0
      %v1143 = vsel %vm1119, 1, 0
      %v1144 = vsel %vm1120, 1, 0
      %v1145 = vsel %vm1121, 1, 0
      %v1146 = vsel %vm1122, 1, 0
      %vm1147 = vcmp.eq.s32.totalorder %v1123, 1
      %vm1148 = vcmp.eq.s32.totalorder %v1124, 1
      %vm1149 = vcmp.eq.s32.totalorder %v1125, 1
      %vm1150 = vcmp.eq.s32.totalorder %v1126, 1
      %vm1151 = vcmp.eq.s32.totalorder %v1127, 1
      %vm1152 = vcmp.eq.s32.totalorder %v1128, 1
      %vm1153 = vcmp.eq.s32.totalorder %v1129, 1
      %vm1154 = vcmp.eq.s32.totalorder %v1130, 1
      %vm1155 = vcmp.eq.s32.totalorder %v1131, 1
      %vm1156 = vcmp.eq.s32.totalorder %v1132, 1
      %vm1157 = vcmp.eq.s32.totalorder %v1133, 1
      %vm1158 = vcmp.eq.s32.totalorder %v1134, 1
      %vm1159 = vcmp.eq.s32.totalorder %v1135, 1
      %vm1160 = vcmp.eq.s32.totalorder %v1136, 1
      %vm1161 = vcmp.eq.s32.totalorder %v1137, 1
      %vm1162 = vcmp.eq.s32.totalorder %v1138, 1
      %vm1163 = vcmp.eq.s32.totalorder %v1139, 1
      %vm1164 = vcmp.eq.s32.totalorder %v1140, 1
      %vm1165 = vcmp.eq.s32.totalorder %v1141, 1
      %vm1166 = vcmp.eq.s32.totalorder %v1142, 1
      %vm1167 = vcmp.eq.s32.totalorder %v1143, 1
      %vm1168 = vcmp.eq.s32.totalorder %v1144, 1
      %vm1169 = vcmp.eq.s32.totalorder %v1145, 1
      %vm1170 = vcmp.eq.s32.totalorder %v1146, 1
      %v1171 = vsel %vm1147, 0.0, %v1098
      %v1172 = vsel %vm1148, 0.0, %v1097
      %v1173 = vsel %vm1149, 0.0, %v1096
      %v1174 = vsel %vm1150, 0.0, %v1095
      %v1175 = vsel %vm1151, 0.0, %v1094
      %v1176 = vsel %vm1152, 0.0, %v1093
      %v1177 = vsel %vm1153, 0.0, %v1092
      %v1178 = vsel %vm1154, 0.0, %v1091
      %v1179 = vsel %vm1155, 0.0, %v1090
      %v1180 = vsel %vm1156, 0.0, %v1089
      %v1181 = vsel %vm1157, 0.0, %v1088
      %v1182 = vsel %vm1158, 0.0, %v1087
      %v1183 = vsel %vm1159, 0.0, %v1086
      %v1184 = vsel %vm1160, 0.0, %v1085
      %v1185 = vsel %vm1161, 0.0, %v1084
      %v1186 = vsel %vm1162, 0.0, %v1083
      %v1187 = vsel %vm1163, 0.0, %v1082
      %v1188 = vsel %vm1164, 0.0, %v1081
      %v1189 = vsel %vm1165, 0.0, %v1080
      %v1190 = vsel %vm1166, 0.0, %v1079
      %v1191 = vsel %vm1167, 0.0, %v1078
      %v1192 = vsel %vm1168, 0.0, %v1077
      %v1193 = vsel %vm1169, 0.0, %v1076
      %v1194 = vsel %vm1170, 0.0, %v1075
      %v1195 = vrot.slane %v674, 1
      %v1196 = vrot.slane %v675, 1
      %v1197 = vrot.slane %v676, 1
      %v1198 = vrot.slane %v677, 1
      %v1199 = vrot.slane %v678, 1
      %v1200 = vrot.slane %v679, 1
      %v1201 = vrot.slane %v680, 1
      %v1202 = vrot.slane %v681, 1
      %v1203 = vrot.slane %v682, 1
      %v1204 = vrot.slane %v683, 1
      %v1205 = vrot.slane %v684, 1
      %v1206 = vrot.slane %v685, 1
      %v1207 = vrot.slane %v686, 1
      %v1208 = vrot.slane %v687, 1
      %v1209 = vrot.slane %v688, 1
      %v1210 = vrot.slane %v689, 1
      %v1211 = vrot.slane %v690, 1
      %v1212 = vrot.slane %v691, 1
      %v1213 = vrot.slane %v692, 1
      %v1214 = vrot.slane %v693, 1
      %v1215 = vrot.slane %v701, 1
      %v1216 = vrot.slane %v702, 1
      %v1217 = vrot.slane %v703, 1
      %v1218 = vrot.slane %v704, 1
      %vm1219 = vcmp.lt.s32.totalorder %v738, 7
      %v1220 = vsel %vm1219, %v1217, %v1218
      %v1221 = vsel %vm1219, %v1216, %v1217
      %v1222 = vsel %vm1219, %v1215, %v1216
      %v1223 = vsel %vm1219, %v1214, %v1215
      %v1224 = vsel %vm1219, %v1213, %v1214
      %v1225 = vsel %vm1219, %v1212, %v1213
      %v1226 = vsel %vm1219, %v1211, %v1212
      %v1227 = vsel %vm1219, %v1210, %v1211
      %v1228 = vsel %vm1219, %v1209, %v1210
      %v1229 = vsel %vm1219, %v1208, %v1209
      %v1230 = vsel %vm1219, %v1207, %v1208
      %v1231 = vsel %vm1219, %v1206, %v1207
      %v1232 = vsel %vm1219, %v1205, %v1206
      %v1233 = vsel %vm1219, %v1204, %v1205
      %v1234 = vsel %vm1219, %v1203, %v1204
      %v1235 = vsel %vm1219, %v1202, %v1203
      %v1236 = vsel %vm1219, %v1201, %v1202
      %v1237 = vsel %vm1219, %v1200, %v1201
      %v1238 = vsel %vm1219, %v1199, %v1200
      %v1239 = vsel %vm1219, %v1198, %v1199
      %v1240 = vsel %vm1219, %v1197, %v1198
      %v1241 = vsel %vm1219, %v1196, %v1197
      %v1242 = vsel %vm1219, %v1195, %v1196
      %v1243 = vsel %vm1219, %v1218, %v1195
      %vm1244 = vcmp.eq.s32.totalorder %v1026, 15
      %vm1245 = vcmp.eq.s32.totalorder %v1027, 15
      %vm1246 = vcmp.eq.s32.totalorder %v1028, 15
      %vm1247 = vcmp.eq.s32.totalorder %v1029, 15
      %vm1248 = vcmp.eq.s32.totalorder %v1030, 15
      %vm1249 = vcmp.eq.s32.totalorder %v1031, 15
      %vm1250 = vcmp.eq.s32.totalorder %v1032, 15
      %vm1251 = vcmp.eq.s32.totalorder %v1033, 15
      %vm1252 = vcmp.eq.s32.totalorder %v1034, 15
      %vm1253 = vcmp.eq.s32.totalorder %v1035, 15
      %vm1254 = vcmp.eq.s32.totalorder %v1036, 15
      %vm1255 = vcmp.eq.s32.totalorder %v1037, 15
      %vm1256 = vcmp.eq.s32.totalorder %v1038, 15
      %vm1257 = vcmp.eq.s32.totalorder %v1039, 15
      %vm1258 = vcmp.eq.s32.totalorder %v1040, 15
      %vm1259 = vcmp.eq.s32.totalorder %v1041, 15
      %vm1260 = vcmp.eq.s32.totalorder %v1042, 15
      %vm1261 = vcmp.eq.s32.totalorder %v1043, 15
      %vm1262 = vcmp.eq.s32.totalorder %v1044, 15
      %vm1263 = vcmp.eq.s32.totalorder %v1045, 15
      %vm1264 = vcmp.eq.s32.totalorder %v1046, 15
      %vm1265 = vcmp.eq.s32.totalorder %v1047, 15
      %vm1266 = vcmp.eq.s32.totalorder %v1048, 15
      %vm1267 = vcmp.eq.s32.totalorder %v1049, 15
      %v1268 = vsel %vm1244, 1, 0
      %v1269 = vsel %vm1245, 1, 0
      %v1270 = vsel %vm1246, 1, 0
      %v1271 = vsel %vm1247, 1, 0
      %v1272 = vsel %vm1248, 1, 0
      %v1273 = vsel %vm1249, 1, 0
      %v1274 = vsel %vm1250, 1, 0
      %v1275 = vsel %vm1251, 1, 0
      %v1276 = vsel %vm1252, 1, 0
      %v1277 = vsel %vm1253, 1, 0
      %v1278 = vsel %vm1254, 1, 0
      %v1279 = vsel %vm1255, 1, 0
      %v1280 = vsel %vm1256, 1, 0
      %v1281 = vsel %vm1257, 1, 0
      %v1282 = vsel %vm1258, 1, 0
      %v1283 = vsel %vm1259, 1, 0
      %v1284 = vsel %vm1260, 1, 0
      %v1285 = vsel %vm1261, 1, 0
      %v1286 = vsel %vm1262, 1, 0
      %v1287 = vsel %vm1263, 1, 0
      %v1288 = vsel %vm1264, 1, 0
      %v1289 = vsel %vm1265, 1, 0
      %v1290 = vsel %vm1266, 1, 0
      %v1291 = vsel %vm1267, 1, 0
      %vm1292 = vcmp.eq.s32.totalorder %v1268, 1
      %vm1293 = vcmp.eq.s32.totalorder %v1269, 1
      %vm1294 = vcmp.eq.s32.totalorder %v1270, 1
      %vm1295 = vcmp.eq.s32.totalorder %v1271, 1
      %vm1296 = vcmp.eq.s32.totalorder %v1272, 1
      %vm1297 = vcmp.eq.s32.totalorder %v1273, 1
      %vm1298 = vcmp.eq.s32.totalorder %v1274, 1
      %vm1299 = vcmp.eq.s32.totalorder %v1275, 1
      %vm1300 = vcmp.eq.s32.totalorder %v1276, 1
      %vm1301 = vcmp.eq.s32.totalorder %v1277, 1
      %vm1302 = vcmp.eq.s32.totalorder %v1278, 1
      %vm1303 = vcmp.eq.s32.totalorder %v1279, 1
      %vm1304 = vcmp.eq.s32.totalorder %v1280, 1
      %vm1305 = vcmp.eq.s32.totalorder %v1281, 1
      %vm1306 = vcmp.eq.s32.totalorder %v1282, 1
      %vm1307 = vcmp.eq.s32.totalorder %v1283, 1
      %vm1308 = vcmp.eq.s32.totalorder %v1284, 1
      %vm1309 = vcmp.eq.s32.totalorder %v1285, 1
      %vm1310 = vcmp.eq.s32.totalorder %v1286, 1
      %vm1311 = vcmp.eq.s32.totalorder %v1287, 1
      %vm1312 = vcmp.eq.s32.totalorder %v1288, 1
      %vm1313 = vcmp.eq.s32.totalorder %v1289, 1
      %vm1314 = vcmp.eq.s32.totalorder %v1290, 1
      %vm1315 = vcmp.eq.s32.totalorder %v1291, 1
      %v1316 = vsel %vm1292, 0.0, %v1242
      %v1317 = vsel %vm1293, 0.0, %v1241
      %v1318 = vsel %vm1294, 0.0, %v1240
      %v1319 = vsel %vm1295, 0.0, %v1239
      %v1320 = vsel %vm1296, 0.0, %v1238
      %v1321 = vsel %vm1297, 0.0, %v1237
      %v1322 = vsel %vm1298, 0.0, %v1236
      %v1323 = vsel %vm1299, 0.0, %v1235
      %v1324 = vsel %vm1300, 0.0, %v1234
      %v1325 = vsel %vm1301, 0.0, %v1233
      %v1326 = vsel %vm1302, 0.0, %v1232
      %v1327 = vsel %vm1303, 0.0, %v1231
      %v1328 = vsel %vm1304, 0.0, %v1230
      %v1329 = vsel %vm1305, 0.0, %v1229
      %v1330 = vsel %vm1306, 0.0, %v1228
      %v1331 = vsel %vm1307, 0.0, %v1227
      %v1332 = vsel %vm1308, 0.0, %v1226
      %v1333 = vsel %vm1309, 0.0, %v1225
      %v1334 = vsel %vm1310, 0.0, %v1224
      %v1335 = vsel %vm1311, 0.0, %v1223
      %v1336 = vsel %vm1312, 0.0, %v1222
      %v1337 = vsel %vm1313, 0.0, %v1221
      %v1338 = vsel %vm1314, 0.0, %v1220
      %v1339 = vsel %vm1315, 0.0, %v1243
      %v1340 = vrot.slane %v709, 7
      %v1341 = vrot.slane %v710, 7
      %v1342 = vrot.slane %v711, 7
      %v1343 = vrot.slane %v712, 7
      %v1344 = vrot.slane %v713, 7
      %v1345 = vrot.slane %v714, 7
      %v1346 = vrot.slane %v715, 7
      %v1347 = vrot.slane %v716, 7
      %v1348 = vrot.slane %v717, 7
      %v1349 = vrot.slane %v718, 7
      %v1350 = vrot.slane %v719, 7
      %v1351 = vrot.slane %v720, 7
      %v1352 = vrot.slane %v721, 7
      %v1353 = vrot.slane %v722, 7
      %v1354 = vrot.slane %v723, 7
      %v1355 = vrot.slane %v724, 7
      %v1356 = vrot.slane %v725, 7
      %v1357 = vrot.slane %v726, 7
      %v1358 = vrot.slane %v727, 7
      %v1359 = vrot.slane %v728, 7
      %v1360 = vrot.slane %v733, 7
      %v1361 = vrot.slane %v734, 7
      %v1362 = vrot.slane %v735, 7
      %v1363 = vrot.slane %v736, 7
      %v1364 = vsel %vm1074, %v1362, %v1363
      %v1365 = vsel %vm1074, %v1361, %v1362
      %v1366 = vsel %vm1074, %v1360, %v1361
      %v1367 = vsel %vm1074, %v1359, %v1360
      %v1368 = vsel %vm1074, %v1358, %v1359
      %v1369 = vsel %vm1074, %v1357, %v1358
      %v1370 = vsel %vm1074, %v1356, %v1357
      %v1371 = vsel %vm1074, %v1355, %v1356
      %v1372 = vsel %vm1074, %v1354, %v1355
      %v1373 = vsel %vm1074, %v1353, %v1354
      %v1374 = vsel %vm1074, %v1352, %v1353
      %v1375 = vsel %vm1074, %v1351, %v1352
      %v1376 = vsel %vm1074, %v1350, %v1351
      %v1377 = vsel %vm1074, %v1349, %v1350
      %v1378 = vsel %vm1074, %v1348, %v1349
      %v1379 = vsel %vm1074, %v1347, %v1348
      %v1380 = vsel %vm1074, %v1346, %v1347
      %v1381 = vsel %vm1074, %v1345, %v1346
      %v1382 = vsel %vm1074, %v1344, %v1345
      %v1383 = vsel %vm1074, %v1343, %v1344
      %v1384 = vsel %vm1074, %v1342, %v1343
      %v1385 = vsel %vm1074, %v1341, %v1342
      %v1386 = vsel %vm1074, %v1340, %v1341
      %v1387 = vsel %vm1074, %v1363, %v1340
      %v1388 = vsel %vm1147, 0.0, %v1387
      %v1389 = vsel %vm1148, 0.0, %v1386
      %v1390 = vsel %vm1149, 0.0, %v1385
      %v1391 = vsel %vm1150, 0.0, %v1384
      %v1392 = vsel %vm1151, 0.0, %v1383
      %v1393 = vsel %vm1152, 0.0, %v1382
      %v1394 = vsel %vm1153, 0.0, %v1381
      %v1395 = vsel %vm1154, 0.0, %v1380
      %v1396 = vsel %vm1155, 0.0, %v1379
      %v1397 = vsel %vm1156, 0.0, %v1378
      %v1398 = vsel %vm1157, 0.0, %v1377
      %v1399 = vsel %vm1158, 0.0, %v1376
      %v1400 = vsel %vm1159, 0.0, %v1375
      %v1401 = vsel %vm1160, 0.0, %v1374
      %v1402 = vsel %vm1161, 0.0, %v1373
      %v1403 = vsel %vm1162, 0.0, %v1372
      %v1404 = vsel %vm1163, 0.0, %v1371
      %v1405 = vsel %vm1164, 0.0, %v1370
      %v1406 = vsel %vm1165, 0.0, %v1369
      %v1407 = vsel %vm1166, 0.0, %v1368
      %v1408 = vsel %vm1167, 0.0, %v1367
      %v1409 = vsel %vm1168, 0.0, %v1366
      %v1410 = vsel %vm1169, 0.0, %v1365
      %v1411 = vsel %vm1170, 0.0, %v1364
      %v1412 = vrot.slane %v709, 1
      %v1413 = vrot.slane %v710, 1
      %v1414 = vrot.slane %v711, 1
      %v1415 = vrot.slane %v712, 1
      %v1416 = vrot.slane %v713, 1
      %v1417 = vrot.slane %v714, 1
      %v1418 = vrot.slane %v715, 1
      %v1419 = vrot.slane %v716, 1
      %v1420 = vrot.slane %v717, 1
      %v1421 = vrot.slane %v718, 1
      %v1422 = vrot.slane %v719, 1
      %v1423 = vrot.slane %v720, 1
      %v1424 = vrot.slane %v721, 1
      %v1425 = vrot.slane %v722, 1
      %v1426 = vrot.slane %v723, 1
      %v1427 = vrot.slane %v724, 1
      %v1428 = vrot.slane %v725, 1
      %v1429 = vrot.slane %v726, 1
      %v1430 = vrot.slane %v727, 1
      %v1431 = vrot.slane %v728, 1
      %v1432 = vrot.slane %v733, 1
      %v1433 = vrot.slane %v734, 1
      %v1434 = vrot.slane %v735, 1
      %v1435 = vrot.slane %v736, 1
      %v1436 = vsel %vm1219, %v1434, %v1435
      %v1437 = vsel %vm1219, %v1433, %v1434
      %v1438 = vsel %vm1219, %v1432, %v1433
      %v1439 = vsel %vm1219, %v1431, %v1432
      %v1440 = vsel %vm1219, %v1430, %v1431
      %v1441 = vsel %vm1219, %v1429, %v1430
      %v1442 = vsel %vm1219, %v1428, %v1429
      %v1443 = vsel %vm1219, %v1427, %v1428
      %v1444 = vsel %vm1219, %v1426, %v1427
      %v1445 = vsel %vm1219, %v1425, %v1426
      %v1446 = vsel %vm1219, %v1424, %v1425
      %v1447 = vsel %vm1219, %v1423, %v1424
      %v1448 = vsel %vm1219, %v1422, %v1423
      %v1449 = vsel %vm1219, %v1421, %v1422
      %v1450 = vsel %vm1219, %v1420, %v1421
      %v1451 = vsel %vm1219, %v1419, %v1420
      %v1452 = vsel %vm1219, %v1418, %v1419
      %v1453 = vsel %vm1219, %v1417, %v1418
      %v1454 = vsel %vm1219, %v1416, %v1417
      %v1455 = vsel %vm1219, %v1415, %v1416
      %v1456 = vsel %vm1219, %v1414, %v1415
      %v1457 = vsel %vm1219, %v1413, %v1414
      %v1458 = vsel %vm1219, %v1412, %v1413
      %v1459 = vsel %vm1219, %v1435, %v1412
      %v1460 = vsel %vm1292, 0.0, %v1458
      %v1461 = vsel %vm1293, 0.0, %v1457
      %v1462 = vsel %vm1294, 0.0, %v1456
      %v1463 = vsel %vm1295, 0.0, %v1455
      %v1464 = vsel %vm1296, 0.0, %v1454
      %v1465 = vsel %vm1297, 0.0, %v1453
      %v1466 = vsel %vm1298, 0.0, %v1452
      %v1467 = vsel %vm1299, 0.0, %v1451
      %v1468 = vsel %vm1300, 0.0, %v1450
      %v1469 = vsel %vm1301, 0.0, %v1449
      %v1470 = vsel %vm1302, 0.0, %v1448
      %v1471 = vsel %vm1303, 0.0, %v1447
      %v1472 = vsel %vm1304, 0.0, %v1446
      %v1473 = vsel %vm1305, 0.0, %v1445
      %v1474 = vsel %vm1306, 0.0, %v1444
      %v1475 = vsel %vm1307, 0.0, %v1443
      %v1476 = vsel %vm1308, 0.0, %v1442
      %v1477 = vsel %vm1309, 0.0, %v1441
      %v1478 = vsel %vm1310, 0.0, %v1440
      %v1479 = vsel %vm1311, 0.0, %v1439
      %v1480 = vsel %vm1312, 0.0, %v1438
      %v1481 = vsel %vm1313, 0.0, %v1437
      %v1482 = vsel %vm1314, 0.0, %v1436
      %v1483 = vsel %vm1315, 0.0, %v1459
      %v1484 = vpack.c.bf16 %v1172, %v1171
      %v1485 = vpack.c.bf16 %v1174, %v1173
      %v1486 = vpack.c.bf16 %v1176, %v1175
      %v1487 = vpack.c.bf16 %v1178, %v1177
      %v1488 = vpack.c.bf16 %v1180, %v1179
      %v1489 = vpack.c.bf16 %v1182, %v1181
      %v1490 = vpack.c.bf16 %v1184, %v1183
      %v1491 = vpack.c.bf16 %v1186, %v1185
      %v1492 = vpack.c.bf16 %v1188, %v1187
      %v1493 = vpack.c.bf16 %v1190, %v1189
      %v1494 = vpack.c.bf16 %v1192, %v1191
      %v1495 = vpack.c.bf16 %v1194, %v1193
      %v1496 = vpack.c.bf16 %v675, %v674
      %v1497 = vpack.c.bf16 %v677, %v676
      %v1498 = vpack.c.bf16 %v679, %v678
      %v1499 = vpack.c.bf16 %v681, %v680
      %v1500 = vpack.c.bf16 %v683, %v682
      %v1501 = vpack.c.bf16 %v685, %v684
      %v1502 = vpack.c.bf16 %v687, %v686
      %v1503 = vpack.c.bf16 %v689, %v688
      %v1504 = vpack.c.bf16 %v691, %v690
      %v1505 = vpack.c.bf16 %v693, %v692
      %v1506 = vpack.c.bf16 %v702, %v701
      %v1507 = vpack.c.bf16 %v704, %v703
      %v1508 = vpack.c.bf16 %v1317, %v1316
      %v1509 = vpack.c.bf16 %v1319, %v1318
      %v1510 = vpack.c.bf16 %v1321, %v1320
      %v1511 = vpack.c.bf16 %v1323, %v1322
      %v1512 = vpack.c.bf16 %v1325, %v1324
      %v1513 = vpack.c.bf16 %v1327, %v1326
      %v1514 = vpack.c.bf16 %v1329, %v1328
      %v1515 = vpack.c.bf16 %v1331, %v1330
      %v1516 = vpack.c.bf16 %v1333, %v1332
      %v1517 = vpack.c.bf16 %v1335, %v1334
      %v1518 = vpack.c.bf16 %v1337, %v1336
      %v1519 = vpack.c.bf16 %v1339, %v1338
      %v1520 = vpack.c.bf16 %v1389, %v1388
      %v1521 = vpack.c.bf16 %v1391, %v1390
      %v1522 = vpack.c.bf16 %v1393, %v1392
      %v1523 = vpack.c.bf16 %v1395, %v1394
      %v1524 = vpack.c.bf16 %v1397, %v1396
      %v1525 = vpack.c.bf16 %v1399, %v1398
      %v1526 = vpack.c.bf16 %v1401, %v1400
      %v1527 = vpack.c.bf16 %v1403, %v1402
      %v1528 = vpack.c.bf16 %v1405, %v1404
      %v1529 = vpack.c.bf16 %v1407, %v1406
      %v1530 = vpack.c.bf16 %v1409, %v1408
      %v1531 = vpack.c.bf16 %v1411, %v1410
      %v1532 = vpack.c.bf16 %v710, %v709
      %v1533 = vpack.c.bf16 %v712, %v711
      %v1534 = vpack.c.bf16 %v714, %v713
      %v1535 = vpack.c.bf16 %v716, %v715
      %v1536 = vpack.c.bf16 %v718, %v717
      %v1537 = vpack.c.bf16 %v720, %v719
      %v1538 = vpack.c.bf16 %v722, %v721
      %v1539 = vpack.c.bf16 %v724, %v723
      %v1540 = vpack.c.bf16 %v726, %v725
      %v1541 = vpack.c.bf16 %v728, %v727
      %v1542 = vpack.c.bf16 %v734, %v733
      %v1543 = vpack.c.bf16 %v736, %v735
      %v1544 = vpack.c.bf16 %v1461, %v1460
      %v1545 = vpack.c.bf16 %v1463, %v1462
      %v1546 = vpack.c.bf16 %v1465, %v1464
      %v1547 = vpack.c.bf16 %v1467, %v1466
      %v1548 = vpack.c.bf16 %v1469, %v1468
      %v1549 = vpack.c.bf16 %v1471, %v1470
      %v1550 = vpack.c.bf16 %v1473, %v1472
      %v1551 = vpack.c.bf16 %v1475, %v1474
      %v1552 = vpack.c.bf16 %v1477, %v1476
      %v1553 = vpack.c.bf16 %v1479, %v1478
      %v1554 = vpack.c.bf16 %v1481, %v1480
      %v1555 = vpack.c.bf16 %v1483, %v1482
      %1568 = vrot.lane.b32.xlu0 %v1496, 4
      %v1569 = vpop.permute.xlu0 %1568
      %1570 = vrot.lane.b32.xlu0 %v1497, 4
      %v1571 = vpop.permute.xlu0 %1570
      %1572 = vrot.lane.b32.xlu0 %v1498, 4
      %v1573 = vpop.permute.xlu0 %1572
      %1574 = vrot.lane.b32.xlu0 %v1499, 4
      %v1575 = vpop.permute.xlu0 %1574
      %1576 = vrot.lane.b32.xlu0 %v1500, 4
      %v1577 = vpop.permute.xlu0 %1576
      %1578 = vrot.lane.b32.xlu0 %v1501, 4
      %v1579 = vpop.permute.xlu0 %1578
      %1580 = vrot.lane.b32.xlu0 %v1502, 4
      %v1581 = vpop.permute.xlu0 %1580
      %1582 = vrot.lane.b32.xlu0 %v1503, 4
      %v1583 = vpop.permute.xlu0 %1582
      %1584 = vrot.lane.b32.xlu0 %v1504, 4
      %v1585 = vpop.permute.xlu0 %1584
      %1586 = vrot.lane.b32.xlu0 %v1505, 4
      %v1587 = vpop.permute.xlu0 %1586
      %1588 = vrot.lane.b32.xlu0 %v1506, 4
      %v1589 = vpop.permute.xlu0 %1588
      %1590 = vrot.lane.b32.xlu0 %v1507, 4
      %v1591 = vpop.permute.xlu0 %1590
      %1604 = vrot.lane.b32.xlu0 %v1508, 8
      %v1605 = vpop.permute.xlu0 %1604
      %1606 = vrot.lane.b32.xlu0 %v1509, 8
      %v1607 = vpop.permute.xlu0 %1606
      %1608 = vrot.lane.b32.xlu0 %v1510, 8
      %v1609 = vpop.permute.xlu0 %1608
      %1610 = vrot.lane.b32.xlu0 %v1511, 8
      %v1611 = vpop.permute.xlu0 %1610
      %1612 = vrot.lane.b32.xlu0 %v1512, 8
      %v1613 = vpop.permute.xlu0 %1612
      %1614 = vrot.lane.b32.xlu0 %v1513, 8
      %v1615 = vpop.permute.xlu0 %1614
      %1616 = vrot.lane.b32.xlu0 %v1514, 8
      %v1617 = vpop.permute.xlu0 %1616
      %1618 = vrot.lane.b32.xlu0 %v1515, 8
      %v1619 = vpop.permute.xlu0 %1618
      %1620 = vrot.lane.b32.xlu0 %v1516, 8
      %v1621 = vpop.permute.xlu0 %1620
      %1622 = vrot.lane.b32.xlu0 %v1517, 8
      %v1623 = vpop.permute.xlu0 %1622
      %1624 = vrot.lane.b32.xlu0 %v1518, 8
      %v1625 = vpop.permute.xlu0 %1624
      %1626 = vrot.lane.b32.xlu0 %v1519, 8
      %v1627 = vpop.permute.xlu0 %1626
      %1640 = vrot.lane.b32.xlu0 %v1520, 12
      %v1641 = vpop.permute.xlu0 %1640
      %1642 = vrot.lane.b32.xlu0 %v1521, 12
      %v1643 = vpop.permute.xlu0 %1642
      %1644 = vrot.lane.b32.xlu0 %v1522, 12
      %v1645 = vpop.permute.xlu0 %1644
      %1646 = vrot.lane.b32.xlu0 %v1523, 12
      %v1647 = vpop.permute.xlu0 %1646
      %1648 = vrot.lane.b32.xlu0 %v1524, 12
      %v1649 = vpop.permute.xlu0 %1648
      %1650 = vrot.lane.b32.xlu0 %v1525, 12
      %v1651 = vpop.permute.xlu0 %1650
      %1652 = vrot.lane.b32.xlu0 %v1526, 12
      %v1653 = vpop.permute.xlu0 %1652
      %1654 = vrot.lane.b32.xlu0 %v1527, 12
      %v1655 = vpop.permute.xlu0 %1654
      %1656 = vrot.lane.b32.xlu0 %v1528, 12
      %v1657 = vpop.permute.xlu0 %1656
      %1658 = vrot.lane.b32.xlu0 %v1529, 12
      %v1659 = vpop.permute.xlu0 %1658
      %1660 = vrot.lane.b32.xlu0 %v1530, 12
      %v1661 = vpop.permute.xlu0 %1660
      %1662 = vrot.lane.b32.xlu0 %v1531, 12
      %v1663 = vpop.permute.xlu0 %1662
      %1676 = vrot.lane.b32.xlu0 %v1532, 16
      %v1677 = vpop.permute.xlu0 %1676
      %1678 = vrot.lane.b32.xlu0 %v1533, 16
      %v1679 = vpop.permute.xlu0 %1678
      %1680 = vrot.lane.b32.xlu0 %v1534, 16
      %v1681 = vpop.permute.xlu0 %1680
      %1682 = vrot.lane.b32.xlu0 %v1535, 16
      %v1683 = vpop.permute.xlu0 %1682
      %1684 = vrot.lane.b32.xlu0 %v1536, 16
      %v1685 = vpop.permute.xlu0 %1684
      %1686 = vrot.lane.b32.xlu0 %v1537, 16
      %v1687 = vpop.permute.xlu0 %1686
      %1688 = vrot.lane.b32.xlu0 %v1538, 16
      %v1689 = vpop.permute.xlu0 %1688
      %1690 = vrot.lane.b32.xlu0 %v1539, 16
      %v1691 = vpop.permute.xlu0 %1690
      %1692 = vrot.lane.b32.xlu0 %v1540, 16
      %v1693 = vpop.permute.xlu0 %1692
      %1694 = vrot.lane.b32.xlu0 %v1541, 16
      %v1695 = vpop.permute.xlu0 %1694
      %1696 = vrot.lane.b32.xlu0 %v1542, 16
      %v1697 = vpop.permute.xlu0 %1696
      %1698 = vrot.lane.b32.xlu0 %v1543, 16
      %v1699 = vpop.permute.xlu0 %1698
      %1712 = vrot.lane.b32.xlu0 %v1544, 20
      %v1713 = vpop.permute.xlu0 %1712
      %1714 = vrot.lane.b32.xlu0 %v1545, 20
      %v1715 = vpop.permute.xlu0 %1714
      %1716 = vrot.lane.b32.xlu0 %v1546, 20
      %v1717 = vpop.permute.xlu0 %1716
      %1718 = vrot.lane.b32.xlu0 %v1547, 20
      %v1719 = vpop.permute.xlu0 %1718
      %1720 = vrot.lane.b32.xlu0 %v1548, 20
      %v1721 = vpop.permute.xlu0 %1720
      %1722 = vrot.lane.b32.xlu0 %v1549, 20
      %v1723 = vpop.permute.xlu0 %1722
      %1724 = vrot.lane.b32.xlu0 %v1550, 20
      %v1725 = vpop.permute.xlu0 %1724
      %1726 = vrot.lane.b32.xlu0 %v1551, 20
      %v1727 = vpop.permute.xlu0 %1726
      %1728 = vrot.lane.b32.xlu0 %v1552, 20
      %v1729 = vpop.permute.xlu0 %1728
      %1730 = vrot.lane.b32.xlu0 %v1553, 20
      %v1731 = vpop.permute.xlu0 %1730
      %1732 = vrot.lane.b32.xlu0 %v1554, 20
      %v1733 = vpop.permute.xlu0 %1732
      %1734 = vrot.lane.b32.xlu0 %v1555, 20
      %v1735 = vpop.permute.xlu0 %1734
      %vm1736 = vcmask 31744
      %v1739 = vsel %vm1736, %v1484, %v1569
      %v1742 = vsel %vm1736, %v1485, %v1571
      %v1745 = vsel %vm1736, %v1486, %v1573
      %v1748 = vsel %vm1736, %v1487, %v1575
      %v1751 = vsel %vm1736, %v1488, %v1577
      %v1754 = vsel %vm1736, %v1489, %v1579
      %v1757 = vsel %vm1736, %v1490, %v1581
      %v1760 = vsel %vm1736, %v1491, %v1583
      %v1763 = vsel %vm1736, %v1492, %v1585
      %v1766 = vsel %vm1736, %v1493, %v1587
      %v1769 = vsel %vm1736, %v1494, %v1589
      %v1772 = vsel %vm1736, %v1495, %v1591
      %vm1773 = vcmask 64512
      %v1775 = vsel %vm1773, %v1739, %v1605
      %v1777 = vsel %vm1773, %v1742, %v1607
      %v1779 = vsel %vm1773, %v1745, %v1609
      %v1781 = vsel %vm1773, %v1748, %v1611
      %v1783 = vsel %vm1773, %v1751, %v1613
      %v1785 = vsel %vm1773, %v1754, %v1615
      %v1787 = vsel %vm1773, %v1757, %v1617
      %v1789 = vsel %vm1773, %v1760, %v1619
      %v1791 = vsel %vm1773, %v1763, %v1621
      %v1793 = vsel %vm1773, %v1766, %v1623
      %v1795 = vsel %vm1773, %v1769, %v1625
      %v1797 = vsel %vm1773, %v1772, %v1627
      %vm1798 = vcmask 97280
      %v1800 = vsel %vm1798, %v1775, %v1641
      %v1802 = vsel %vm1798, %v1777, %v1643
      %v1804 = vsel %vm1798, %v1779, %v1645
      %v1806 = vsel %vm1798, %v1781, %v1647
      %v1808 = vsel %vm1798, %v1783, %v1649
      %v1810 = vsel %vm1798, %v1785, %v1651
      %v1812 = vsel %vm1798, %v1787, %v1653
      %v1814 = vsel %vm1798, %v1789, %v1655
      %v1816 = vsel %vm1798, %v1791, %v1657
      %v1818 = vsel %vm1798, %v1793, %v1659
      %v1820 = vsel %vm1798, %v1795, %v1661
      %v1822 = vsel %vm1798, %v1797, %v1663
      %vm1823 = vcmask 130048
      %v1825 = vsel %vm1823, %v1800, %v1677
      %v1827 = vsel %vm1823, %v1802, %v1679
      %v1829 = vsel %vm1823, %v1804, %v1681
      %v1831 = vsel %vm1823, %v1806, %v1683
      %v1833 = vsel %vm1823, %v1808, %v1685
      %v1835 = vsel %vm1823, %v1810, %v1687
      %v1837 = vsel %vm1823, %v1812, %v1689
      %v1839 = vsel %vm1823, %v1814, %v1691
      %v1841 = vsel %vm1823, %v1816, %v1693
      %v1843 = vsel %vm1823, %v1818, %v1695
      %v1845 = vsel %vm1823, %v1820, %v1697
      %v1847 = vsel %vm1823, %v1822, %v1699
      %vm1848 = vcmask 162816
      %v1850 = vsel %vm1848, %v1825, %v1713
      %v1852 = vsel %vm1848, %v1827, %v1715
      %v1854 = vsel %vm1848, %v1829, %v1717
      %v1856 = vsel %vm1848, %v1831, %v1719
      %v1858 = vsel %vm1848, %v1833, %v1721
      %v1860 = vsel %vm1848, %v1835, %v1723
      %v1862 = vsel %vm1848, %v1837, %v1725
      %v1864 = vsel %vm1848, %v1839, %v1727
      %v1866 = vsel %vm1848, %v1841, %v1729
      %v1868 = vsel %vm1848, %v1843, %v1731
      %v1870 = vsel %vm1848, %v1845, %v1733
      %v1872 = vsel %vm1848, %v1847, %v1735
      %v1873 = vld [vmem:[%s6] sm:$0xf]
      %v1874 = vld [vmem:[%s6 + $0x4] sm:$0xf]
      %v1875 = vld [vmem:[%s6 + $0x8] sm:$0xf]
      %s1876 = scalar_lea.vmem %s6, 12
      %v1877 = vld [vmem:[%s1876] sm:$0xf]
      %v1878 = vld [vmem:[%s1876 + $0x4] sm:$0xf]
      %v1879 = vld [vmem:[%s1876 + $0x8] sm:$0xf]
      %v1883 = vunpack.c.l.b16 %v1877
      %v1884 = vunpack.c.l.b16 %v1878
      %v1885 = vunpack.c.l.b16 %v1879
      %v1886 = vpack.c.b16 %v1884, %v1883
      %v1887 = vpack.c.b16 %v1885, %v1885
      %vm1889 = vcmask 195584
      %v1890 = vsel %vm1889, %v1852, 0
      %v1892 = vsel %vm1889, %v1854, 0
      %v1894 = vsel %vm1889, %v1856, 0
      %v1896 = vsel %vm1889, %v1858, 0
      %v1898 = vsel %vm1889, %v1860, 0
      %v1900 = vsel %vm1889, %v1862, 0
      %v1902 = vsel %vm1889, %v1864, 0
      %v1904 = vsel %vm1889, %v1866, 0
      %v1906 = vsel %vm1889, %v1868, 0
      %v1908 = vsel %vm1889, %v1870, 0
      %vm1910 = vcmask 1043456
      %v1912 = vsel %vm1910, %v1887, 0
      %1914 = vmatprep.subr.bf16.mxu0 0
      %1915 = vmatpush1.bf16.msra.mxu0 %v1886
      %1916 = vmatprep.subr.bf16.mxu0 0
      %1917 = vmatpush1.bf16.msra.mxu0 %v1912
      %1918 = vmatprep.subr.bf16.mxu0 0
      %1919 = vmatpush1.bf16.msra.mxu0 0
      %1920 = vmatprep.subr.bf16.mxu0 0
      %1921 = vmatpush1.bf16.msra.mxu0 0
      %1922 = vmatprep.subr.bf16.mxu0 0
      %1923 = vmatpush1.bf16.msra.mxu0 0
      %1924 = vmatprep.subr.bf16.mxu0 0
      %1925 = vmatpush1.bf16.msra.mxu0 0
      %1926 = vmatprep.subr.bf16.mxu0 0
      %1927 = vmatpush1.bf16.msra.mxu0 0
      %1928 = vmatprep.subr.bf16.mxu0 0
      %1929 = vmatpush1.bf16.msra.mxu0 0
      %1930 = vmatprep.subr.bf16.mxu0 0
      %1931 = vmatpush1.bf16.msra.mxu0 0
      %1932 = vmatprep.subr.bf16.mxu0 0
      %1933 = vmatpush1.bf16.msra.mxu0 0
      %1934 = vmatprep.subr.bf16.mxu0 0
      %1935 = vmatpush1.bf16.msra.mxu0 0
      %1936 = vmatprep.subr.bf16.mxu0 0
      %1937 = vmatpush1.bf16.msra.mxu0 0
      %1938 = vmatprep.subr.bf16.mxu0 0
      %1939 = vmatpush1.bf16.msra.mxu0 0
      %1940 = vmatprep.subr.bf16.mxu0 0
      %1941 = vmatpush1.bf16.msra.mxu0 0
      %1942 = vmatprep.subr.bf16.mxu0 0
      %1943 = vmatpush1.bf16.msra.mxu0 0
      %1944 = vmatprep.subr.bf16.mxu0 0
      %1945 = vmatpush1.bf16.msra.mxu0 0
      %1946 = vmatprep.mubr.bf16.mxu0 0
      %1947 = vmatmul.mubr.bf16.gmra.mrb[0].mxu0 %v1890
      %v1948 = vpop.f32.mrb[0].mxu0
      %v1949 = vadd.f32 0.0, %v1948
      %v1950 = vpop.f32.mrb[0].mxu0
      %v1951 = vpop.f32.mrb[0].mxu0
      %v1952 = vadd.f32 0.0, %v1951
      %v1953 = vpop.f32.mrb[0].mxu0
      %1954 = vmatprep.mubr.bf16.mxu0 0
      %1955 = vmatmul.mubr.bf16.gmra.mrb[0].mxu0 %v1892
      %v1956 = vpop.f32.mrb[0].mxu0
      %v1957 = vadd.f32 0.0, %v1956
      %v1958 = vpop.f32.mrb[0].mxu0
      %v1959 = vpop.f32.mrb[0].mxu0
      %v1960 = vadd.f32 0.0, %v1959
      %v1961 = vpop.f32.mrb[0].mxu0
      %1962 = vmatprep.mubr.bf16.mxu0 0
      %1963 = vmatmul.mubr.bf16.gmra.mrb[0].mxu0 %v1894
      %v1964 = vpop.f32.mrb[0].mxu0
      %v1965 = vadd.f32 0.0, %v1964
      %v1966 = vpop.f32.mrb[0].mxu0
      %v1967 = vpop.f32.mrb[0].mxu0
      %v1968 = vadd.f32 0.0, %v1967
      %v1969 = vpop.f32.mrb[0].mxu0
      %1970 = vmatprep.mubr.bf16.mxu0 0
      %1971 = vmatmul.mubr.bf16.gmra.mrb[0].mxu0 %v1896
      %v1972 = vpop.f32.mrb[0].mxu0
      %v1973 = vadd.f32 0.0, %v1972
      %v1974 = vpop.f32.mrb[0].mxu0
      %v1975 = vpop.f32.mrb[0].mxu0
      %v1976 = vadd.f32 0.0, %v1975
      %v1977 = vpop.f32.mrb[0].mxu0
      %1978 = vmatprep.mubr.bf16.mxu0 0
      %1979 = vmatmul.mubr.bf16.gmra.mrb[0].mxu0 %v1898
      %v1980 = vpop.f32.mrb[0].mxu0
      %v1981 = vadd.f32 0.0, %v1980
      %v1982 = vpop.f32.mrb[0].mxu0
      %v1983 = vpop.f32.mrb[0].mxu0
      %v1984 = vadd.f32 0.0, %v1983
      %v1985 = vpop.f32.mrb[0].mxu0
      %1986 = vmatprep.mubr.bf16.mxu0 0
      %1987 = vmatmul.mubr.bf16.gmra.mrb[0].mxu0 %v1900
      %v1988 = vpop.f32.mrb[0].mxu0
      %v1989 = vadd.f32 0.0, %v1988
      %v1990 = vpop.f32.mrb[0].mxu0
      %v1991 = vpop.f32.mrb[0].mxu0
      %v1992 = vadd.f32 0.0, %v1991
      %v1993 = vpop.f32.mrb[0].mxu0
      %1994 = vmatprep.mubr.bf16.mxu0 0
      %1995 = vmatmul.mubr.bf16.gmra.mrb[0].mxu0 %v1902
      %v1996 = vpop.f32.mrb[0].mxu0
      %v1997 = vadd.f32 0.0, %v1996
      %v1998 = vpop.f32.mrb[0].mxu0
      %v1999 = vpop.f32.mrb[0].mxu0
      %v2000 = vadd.f32 0.0, %v1999
      %v2001 = vpop.f32.mrb[0].mxu0
      %2002 = vmatprep.mubr.bf16.mxu0 0
      %2003 = vmatmul.mubr.bf16.gmra.mrb[0].mxu0 %v1904
      %v2004 = vpop.f32.mrb[0].mxu0
      %v2005 = vadd.f32 0.0, %v2004
      %v2006 = vpop.f32.mrb[0].mxu0
      %v2007 = vpop.f32.mrb[0].mxu0
      %v2008 = vadd.f32 0.0, %v2007
      %v2009 = vpop.f32.mrb[0].mxu0
      %2010 = vmatprep.mubr.bf16.mxu0 0
      %2011 = vmatmul.mubr.bf16.gmra.mrb[0].mxu0 %v1906
      %v2012 = vpop.f32.mrb[0].mxu0
      %v2013 = vadd.f32 0.0, %v2012
      %v2014 = vpop.f32.mrb[0].mxu0
      %v2015 = vpop.f32.mrb[0].mxu0
      %v2016 = vadd.f32 0.0, %v2015
      %v2017 = vpop.f32.mrb[0].mxu0
      %2018 = vmatprep.mubr.bf16.mxu0 0
      %2019 = vmatmul.mubr.bf16.gmra.mrb[0].mxu0 %v1908
      %v2020 = vpop.f32.mrb[0].mxu0
      %v2021 = vadd.f32 0.0, %v2020
      %v2022 = vpop.f32.mrb[0].mxu0
      %v2023 = vpop.f32.mrb[0].mxu0
      %v2024 = vadd.f32 0.0, %v2023
      %v2025 = vpop.f32.mrb[0].mxu0
      %2026 = vdwg.mxu0
      %v2030 = vunpack.c.l.b16 %v1873
      %v2031 = vunpack.c.l.b16 %v1874
      %v2032 = vunpack.c.l.b16 %v1875
      %v2033 = vpack.c.b16 %v2031, %v2030
      %v2034 = vpack.c.b16 %v2032, %v2032
      %v2036 = vsel %vm1889, %v1850, 0
      %v2039 = vsel %vm1910, %v2034, 0
      %2041 = vmatprep.subr.bf16.mxu0 0
      %2042 = vmatpush1.bf16.msra.mxu0 %v2033
      %2043 = vmatprep.subr.bf16.mxu0 0
      %2044 = vmatpush1.bf16.msra.mxu0 %v2039
      %2045 = vmatprep.subr.bf16.mxu0 0
      %2046 = vmatpush1.bf16.msra.mxu0 0
      %2047 = vmatprep.subr.bf16.mxu0 0
      %2048 = vmatpush1.bf16.msra.mxu0 0
      %2049 = vmatprep.subr.bf16.mxu0 0
      %2050 = vmatpush1.bf16.msra.mxu0 0
      %2051 = vmatprep.subr.bf16.mxu0 0
      %2052 = vmatpush1.bf16.msra.mxu0 0
      %2053 = vmatprep.subr.bf16.mxu0 0
      %2054 = vmatpush1.bf16.msra.mxu0 0
      %2055 = vmatprep.subr.bf16.mxu0 0
      %2056 = vmatpush1.bf16.msra.mxu0 0
      %2057 = vmatprep.subr.bf16.mxu0 0
      %2058 = vmatpush1.bf16.msra.mxu0 0
      %2059 = vmatprep.subr.bf16.mxu0 0
      %2060 = vmatpush1.bf16.msra.mxu0 0
      %2061 = vmatprep.subr.bf16.mxu0 0
      %2062 = vmatpush1.bf16.msra.mxu0 0
      %2063 = vmatprep.subr.bf16.mxu0 0
      %2064 = vmatpush1.bf16.msra.mxu0 0
      %2065 = vmatprep.subr.bf16.mxu0 0
      %2066 = vmatpush1.bf16.msra.mxu0 0
      %2067 = vmatprep.subr.bf16.mxu0 0
      %2068 = vmatpush1.bf16.msra.mxu0 0
      %2069 = vmatprep.subr.bf16.mxu0 0
      %2070 = vmatpush1.bf16.msra.mxu0 0
      %2071 = vmatprep.subr.bf16.mxu0 0
      %2072 = vmatpush1.bf16.msra.mxu0 0
      %2073 = vmatprep.mubr.bf16.mxu0 0
      %2074 = vmatmul.mubr.bf16.gmra.mrb[0].mxu0 %v2036
      %v2075 = vpop.f32.mrb[0].mxu0
      %v2076 = vadd.f32 %v1949, %v2075
      %v2077 = vpop.f32.mrb[0].mxu0
      %v2078 = vpop.f32.mrb[0].mxu0
      %v2079 = vadd.f32 %v1952, %v2078
      %v2080 = vpop.f32.mrb[0].mxu0
      %2081 = vmatprep.mubr.bf16.mxu0 0
      %2082 = vmatmul.mubr.bf16.gmra.mrb[0].mxu0 %v1890
      %v2083 = vpop.f32.mrb[0].mxu0
      %v2084 = vadd.f32 %v1957, %v2083
      %v2085 = vpop.f32.mrb[0].mxu0
      %v2086 = vpop.f32.mrb[0].mxu0
      %v2087 = vadd.f32 %v1960, %v2086
      %v2088 = vpop.f32.mrb[0].mxu0
      %2089 = vmatprep.mubr.bf16.mxu0 0
      %2090 = vmatmul.mubr.bf16.gmra.mrb[0].mxu0 %v1892
      %v2091 = vpop.f32.mrb[0].mxu0
      %v2092 = vadd.f32 %v1965, %v2091
      %v2093 = vpop.f32.mrb[0].mxu0
      %v2094 = vpop.f32.mrb[0].mxu0
      %v2095 = vadd.f32 %v1968, %v2094
      %v2096 = vpop.f32.mrb[0].mxu0
      %2097 = vmatprep.mubr.bf16.mxu0 0
      %2098 = vmatmul.mubr.bf16.gmra.mrb[0].mxu0 %v1894
      %v2099 = vpop.f32.mrb[0].mxu0
      %v2100 = vadd.f32 %v1973, %v2099
      %v2101 = vpop.f32.mrb[0].mxu0
      %v2102 = vpop.f32.mrb[0].mxu0
      %v2103 = vadd.f32 %v1976, %v2102
      %v2104 = vpop.f32.mrb[0].mxu0
      %2105 = vmatprep.mubr.bf16.mxu0 0
      %2106 = vmatmul.mubr.bf16.gmra.mrb[0].mxu0 %v1896
      %v2107 = vpop.f32.mrb[0].mxu0
      %v2108 = vadd.f32 %v1981, %v2107
      %v2109 = vpop.f32.mrb[0].mxu0
      %v2110 = vpop.f32.mrb[0].mxu0
      %v2111 = vadd.f32 %v1984, %v2110
      %v2112 = vpop.f32.mrb[0].mxu0
      %2113 = vmatprep.mubr.bf16.mxu0 0
      %2114 = vmatmul.mubr.bf16.gmra.mrb[0].mxu0 %v1898
      %v2115 = vpop.f32.mrb[0].mxu0
      %v2116 = vadd.f32 %v1989, %v2115
      %v2117 = vpop.f32.mrb[0].mxu0
      %v2118 = vpop.f32.mrb[0].mxu0
      %v2119 = vadd.f32 %v1992, %v2118
      %v2120 = vpop.f32.mrb[0].mxu0
      %2121 = vmatprep.mubr.bf16.mxu0 0
      %2122 = vmatmul.mubr.bf16.gmra.mrb[0].mxu0 %v1900
      %v2123 = vpop.f32.mrb[0].mxu0
      %v2124 = vadd.f32 %v1997, %v2123
      %v2125 = vpop.f32.mrb[0].mxu0
      %v2126 = vpop.f32.mrb[0].mxu0
      %v2127 = vadd.f32 %v2000, %v2126
      %v2128 = vpop.f32.mrb[0].mxu0
      %2129 = vmatprep.mubr.bf16.mxu0 0
      %2130 = vmatmul.mubr.bf16.gmra.mrb[0].mxu0 %v1902
      %v2131 = vpop.f32.mrb[0].mxu0
      %v2132 = vadd.f32 %v2005, %v2131
      %v2133 = vpop.f32.mrb[0].mxu0
      %v2134 = vpop.f32.mrb[0].mxu0
      %v2135 = vadd.f32 %v2008, %v2134
      %v2136 = vpop.f32.mrb[0].mxu0
      %2137 = vmatprep.mubr.bf16.mxu0 0
      %2138 = vmatmul.mubr.bf16.gmra.mrb[0].mxu0 %v1904
      %v2139 = vpop.f32.mrb[0].mxu0
      %v2140 = vadd.f32 %v2013, %v2139
      %v2141 = vpop.f32.mrb[0].mxu0
      %v2142 = vpop.f32.mrb[0].mxu0
      %v2143 = vadd.f32 %v2016, %v2142
      %v2144 = vpop.f32.mrb[0].mxu0
      %2145 = vmatprep.mubr.bf16.mxu0 0
      %2146 = vmatmul.mubr.bf16.gmra.mrb[0].mxu0 %v1906
      %v2147 = vpop.f32.mrb[0].mxu0
      %v2148 = vadd.f32 %v2021, %v2147
      %v2149 = vpop.f32.mrb[0].mxu0
      %v2150 = vpop.f32.mrb[0].mxu0
      %v2151 = vadd.f32 %v2024, %v2150
      %v2152 = vpop.f32.mrb[0].mxu0
      %2153 = vdwg.mxu0
      %s2154 = scalar_lea.vmem %s6, 24
      %v2155 = vld [vmem:[%s2154] sm:$0xf]
      %v2156 = vld [vmem:[%s2154 + $0x4] sm:$0xf]
      %v2157 = vld [vmem:[%s2154 + $0x8] sm:$0xf]
      %v2161 = vunpack.c.l.b16 %v2155
      %v2162 = vunpack.c.l.b16 %v2156
      %v2163 = vunpack.c.l.b16 %v2157
      %v2164 = vpack.c.b16 %v2162, %v2161
      %v2165 = vpack.c.b16 %v2163, %v2163
      %v2167 = vsel %vm1889, %v1872, 0
      %v2170 = vsel %vm1910, %v2165, 0
      %2172 = vmatprep.subr.bf16.mxu0 0
      %2173 = vmatpush1.bf16.msra.mxu0 %v2164
      %2174 = vmatprep.subr.bf16.mxu0 0
      %2175 = vmatpush1.bf16.msra.mxu0 %v2170
      %2176 = vmatprep.subr.bf16.mxu0 0
      %2177 = vmatpush1.bf16.msra.mxu0 0
      %2178 = vmatprep.subr.bf16.mxu0 0
      %2179 = vmatpush1.bf16.msra.mxu0 0
      %2180 = vmatprep.subr.bf16.mxu0 0
      %2181 = vmatpush1.bf16.msra.mxu0 0
      %2182 = vmatprep.subr.bf16.mxu0 0
      %2183 = vmatpush1.bf16.msra.mxu0 0
      %2184 = vmatprep.subr.bf16.mxu0 0
      %2185 = vmatpush1.bf16.msra.mxu0 0
      %2186 = vmatprep.subr.bf16.mxu0 0
      %2187 = vmatpush1.bf16.msra.mxu0 0
      %2188 = vmatprep.subr.bf16.mxu0 0
      %2189 = vmatpush1.bf16.msra.mxu0 0
      %2190 = vmatprep.subr.bf16.mxu0 0
      %2191 = vmatpush1.bf16.msra.mxu0 0
      %2192 = vmatprep.subr.bf16.mxu0 0
      %2193 = vmatpush1.bf16.msra.mxu0 0
      %2194 = vmatprep.subr.bf16.mxu0 0
      %2195 = vmatpush1.bf16.msra.mxu0 0
      %2196 = vmatprep.subr.bf16.mxu0 0
      %2197 = vmatpush1.bf16.msra.mxu0 0
      %2198 = vmatprep.subr.bf16.mxu0 0
      %2199 = vmatpush1.bf16.msra.mxu0 0
      %2200 = vmatprep.subr.bf16.mxu0 0
      %2201 = vmatpush1.bf16.msra.mxu0 0
      %2202 = vmatprep.subr.bf16.mxu0 0
      %2203 = vmatpush1.bf16.msra.mxu0 0
      %2204 = vmatprep.mubr.bf16.mxu0 0
      %2205 = vmatmul.mubr.bf16.gmra.mrb[0].mxu0 %v1892
      %v2206 = vpop.f32.mrb[0].mxu0
      %v2207 = vadd.f32 0.0, %v2206
      %v2208 = vpop.f32.mrb[0].mxu0
      %v2209 = vpop.f32.mrb[0].mxu0
      %v2210 = vadd.f32 0.0, %v2209
      %v2211 = vpop.f32.mrb[0].mxu0
      %2212 = vmatprep.mubr.bf16.mxu0 0
      %2213 = vmatmul.mubr.bf16.gmra.mrb[0].mxu0 %v1894
      %v2214 = vpop.f32.mrb[0].mxu0
      %v2215 = vadd.f32 0.0, %v2214
      %v2216 = vpop.f32.mrb[0].mxu0
      %v2217 = vpop.f32.mrb[0].mxu0
      %v2218 = vadd.f32 0.0, %v2217
      %v2219 = vpop.f32.mrb[0].mxu0
      %2220 = vmatprep.mubr.bf16.mxu0 0
      %2221 = vmatmul.mubr.bf16.gmra.mrb[0].mxu0 %v1896
      %v2222 = vpop.f32.mrb[0].mxu0
      %v2223 = vadd.f32 0.0, %v2222
      %v2224 = vpop.f32.mrb[0].mxu0
      %v2225 = vpop.f32.mrb[0].mxu0
      %v2226 = vadd.f32 0.0, %v2225
      %v2227 = vpop.f32.mrb[0].mxu0
      %2228 = vmatprep.mubr.bf16.mxu0 0
      %2229 = vmatmul.mubr.bf16.gmra.mrb[0].mxu0 %v1898
      %v2230 = vpop.f32.mrb[0].mxu0
      %v2231 = vadd.f32 0.0, %v2230
      %v2232 = vpop.f32.mrb[0].mxu0
      %v2233 = vpop.f32.mrb[0].mxu0
      %v2234 = vadd.f32 0.0, %v2233
      %v2235 = vpop.f32.mrb[0].mxu0
      %2236 = vmatprep.mubr.bf16.mxu0 0
      %2237 = vmatmul.mubr.bf16.gmra.mrb[0].mxu0 %v1900
      %v2238 = vpop.f32.mrb[0].mxu0
      %v2239 = vadd.f32 0.0, %v2238
      %v2240 = vpop.f32.mrb[0].mxu0
      %v2241 = vpop.f32.mrb[0].mxu0
      %v2242 = vadd.f32 0.0, %v2241
      %v2243 = vpop.f32.mrb[0].mxu0
      %2244 = vmatprep.mubr.bf16.mxu0 0
      %2245 = vmatmul.mubr.bf16.gmra.mrb[0].mxu0 %v1902
      %v2246 = vpop.f32.mrb[0].mxu0
      %v2247 = vadd.f32 0.0, %v2246
      %v2248 = vpop.f32.mrb[0].mxu0
      %v2249 = vpop.f32.mrb[0].mxu0
      %v2250 = vadd.f32 0.0, %v2249
      %v2251 = vpop.f32.mrb[0].mxu0
      %2252 = vmatprep.mubr.bf16.mxu0 0
      %2253 = vmatmul.mubr.bf16.gmra.mrb[0].mxu0 %v1904
      %v2254 = vpop.f32.mrb[0].mxu0
      %v2255 = vadd.f32 0.0, %v2254
      %v2256 = vpop.f32.mrb[0].mxu0
      %v2257 = vpop.f32.mrb[0].mxu0
      %v2258 = vadd.f32 0.0, %v2257
      %v2259 = vpop.f32.mrb[0].mxu0
      %2260 = vmatprep.mubr.bf16.mxu0 0
      %2261 = vmatmul.mubr.bf16.gmra.mrb[0].mxu0 %v1906
      %v2262 = vpop.f32.mrb[0].mxu0
      %v2263 = vadd.f32 0.0, %v2262
      %v2264 = vpop.f32.mrb[0].mxu0
      %v2265 = vpop.f32.mrb[0].mxu0
      %v2266 = vadd.f32 0.0, %v2265
      %v2267 = vpop.f32.mrb[0].mxu0
      %2268 = vmatprep.mubr.bf16.mxu0 0
      %2269 = vmatmul.mubr.bf16.gmra.mrb[0].mxu0 %v1908
      %v2270 = vpop.f32.mrb[0].mxu0
      %v2271 = vadd.f32 0.0, %v2270
      %v2272 = vpop.f32.mrb[0].mxu0
      %v2273 = vpop.f32.mrb[0].mxu0
      %v2274 = vadd.f32 0.0, %v2273
      %v2275 = vpop.f32.mrb[0].mxu0
      %2276 = vmatprep.mubr.bf16.mxu0 0
      %2277 = vmatmul.mubr.bf16.gmra.mrb[0].mxu0 %v2167
      %v2278 = vpop.f32.mrb[0].mxu0
      %v2279 = vadd.f32 0.0, %v2278
      %v2280 = vpop.f32.mrb[0].mxu0
      %v2281 = vpop.f32.mrb[0].mxu0
      %v2282 = vadd.f32 0.0, %v2281
      %v2283 = vpop.f32.mrb[0].mxu0
      %2284 = vdwg.mxu0
      %v2285 = vadd.f32 %v2076, %v2207
      %v2286 = vadd.f32 %v2079, %v2210
      %v2287 = vadd.f32 %v2084, %v2215
      %v2288 = vadd.f32 %v2087, %v2218
      %v2289 = vadd.f32 %v2092, %v2223
      %v2290 = vadd.f32 %v2095, %v2226
      %v2291 = vadd.f32 %v2100, %v2231
      %v2292 = vadd.f32 %v2103, %v2234
      %v2293 = vadd.f32 %v2108, %v2239
      %v2294 = vadd.f32 %v2111, %v2242
      %v2295 = vadd.f32 %v2116, %v2247
      %v2296 = vadd.f32 %v2119, %v2250
      %v2297 = vadd.f32 %v2124, %v2255
      %v2298 = vadd.f32 %v2127, %v2258
      %v2299 = vadd.f32 %v2132, %v2263
      %v2300 = vadd.f32 %v2135, %v2266
      %v2301 = vadd.f32 %v2140, %v2271
      %v2302 = vadd.f32 %v2143, %v2274
      %v2303 = vadd.f32 %v2148, %v2279
      %v2304 = vadd.f32 %v2151, %v2282
      %v2305 = vld [vmem:[%s8] sm:$0xf]
      %v2306 = vlaneseq
      %v2307 = vshrl.u32 %v2306, 7
      %v2308 = vsub.s32 0, %v2307
      %v2309 = vrot.slane %v2305, %v2308
      %v2310 = vmul.f32 %v2285, %v2309
      %v2311 = vmul.f32 %v2286, %v2309
      %v2312 = vmul.f32 %v2287, %v2309
      %v2313 = vmul.f32 %v2288, %v2309
      %v2314 = vmul.f32 %v2289, %v2309
      %v2315 = vmul.f32 %v2290, %v2309
      %v2316 = vmul.f32 %v2291, %v2309
      %v2317 = vmul.f32 %v2292, %v2309
      %v2318 = vmul.f32 %v2293, %v2309
      %v2319 = vmul.f32 %v2294, %v2309
      %v2320 = vmul.f32 %v2295, %v2309
      %v2321 = vmul.f32 %v2296, %v2309
      %v2322 = vmul.f32 %v2297, %v2309
      %v2323 = vmul.f32 %v2298, %v2309
      %v2324 = vmul.f32 %v2299, %v2309
      %v2325 = vmul.f32 %v2300, %v2309
      %v2326 = vmul.f32 %v2301, %v2309
      %v2327 = vmul.f32 %v2302, %v2309
      %v2328 = vmul.f32 %v2303, %v2309
      %v2329 = vmul.f32 %v2304, %v2309
      %v2330 = vlaneseq
      %v2331 = vshrl.u32 %v2330, 7
      %v2332 = vsub.s32 1, %v2331
      %v2333 = vrot.slane %v2305, %v2332
      %v2334 = vadd.f32 %v2310, %v2333
      %v2335 = vadd.f32 %v2311, %v2333
      %v2336 = vadd.f32 %v2312, %v2333
      %v2337 = vadd.f32 %v2313, %v2333
      %v2338 = vadd.f32 %v2314, %v2333
      %v2339 = vadd.f32 %v2315, %v2333
      %v2340 = vadd.f32 %v2316, %v2333
      %v2341 = vadd.f32 %v2317, %v2333
      %v2342 = vadd.f32 %v2318, %v2333
      %v2343 = vadd.f32 %v2319, %v2333
      %v2344 = vadd.f32 %v2320, %v2333
      %v2345 = vadd.f32 %v2321, %v2333
      %v2346 = vadd.f32 %v2322, %v2333
      %v2347 = vadd.f32 %v2323, %v2333
      %v2348 = vadd.f32 %v2324, %v2333
      %v2349 = vadd.f32 %v2325, %v2333
      %v2350 = vadd.f32 %v2326, %v2333
      %v2351 = vadd.f32 %v2327, %v2333
      %v2352 = vadd.f32 %v2328, %v2333
      %v2353 = vadd.f32 %v2329, %v2333
      %v2354 = vmax.f32 %v2334, 0.0
      %v2355 = vmax.f32 %v2335, 0.0
      %v2356 = vmax.f32 %v2336, 0.0
      %v2357 = vmax.f32 %v2337, 0.0
      %v2358 = vmax.f32 %v2338, 0.0
      %v2359 = vmax.f32 %v2339, 0.0
      %v2360 = vmax.f32 %v2340, 0.0
      %v2361 = vmax.f32 %v2341, 0.0
      %v2362 = vmax.f32 %v2342, 0.0
      %v2363 = vmax.f32 %v2343, 0.0
      %v2364 = vmax.f32 %v2344, 0.0
      %v2365 = vmax.f32 %v2345, 0.0
      %v2366 = vmax.f32 %v2346, 0.0
      %v2367 = vmax.f32 %v2347, 0.0
      %v2368 = vmax.f32 %v2348, 0.0
      %v2369 = vmax.f32 %v2349, 0.0
      %v2370 = vmax.f32 %v2350, 0.0
      %v2371 = vmax.f32 %v2351, 0.0
      %v2372 = vmax.f32 %v2352, 0.0
      %v2373 = vmax.f32 %v2353, 0.0
      %vm2374 = vcmp.ge.s32.totalorder %v738, 16
      %vm2375 = vcmp.ge.s32.totalorder %v739, 16
      %vm2376 = vcmp.ge.s32.totalorder %v740, 16
      %vm2377 = vcmp.ge.s32.totalorder %v741, 16
      %vm2378 = vcmp.ge.s32.totalorder %v742, 16
      %vm2379 = vcmp.ge.s32.totalorder %v743, 16
      %vm2380 = vcmp.ge.s32.totalorder %v744, 16
      %vm2381 = vcmp.ge.s32.totalorder %v745, 16
      %vm2382 = vcmp.ge.s32.totalorder %v746, 16
      %vm2383 = vcmp.ge.s32.totalorder %v747, 16
      %vm2384 = vcmp.ge.s32.totalorder %v748, 16
      %vm2385 = vcmp.ge.s32.totalorder %v749, 16
      %vm2386 = vcmp.ge.s32.totalorder %v750, 16
      %vm2387 = vcmp.ge.s32.totalorder %v751, 16
      %vm2388 = vcmp.ge.s32.totalorder %v752, 16
      %vm2389 = vcmp.ge.s32.totalorder %v753, 16
      %vm2390 = vcmp.ge.s32.totalorder %v754, 16
      %vm2391 = vcmp.ge.s32.totalorder %v755, 16
      %vm2392 = vcmp.ge.s32.totalorder %v756, 16
      %vm2393 = vcmp.ge.s32.totalorder %v757, 16
      %p2394 = scmp.ne.s32.totalorder %s25, 0
      %s2395 = scalar_select %p2394, 1, 0
      %v2396 = vstv %s2395
      %vm2397 = vcmp.eq.s32.totalorder %v2396, 1
      %vm2398 = vmor %vm2374, %vm2397
      %vm2399 = vmor %vm2375, %vm2397
      %vm2400 = vmor %vm2376, %vm2397
      %vm2401 = vmor %vm2377, %vm2397
      %vm2402 = vmor %vm2378, %vm2397
      %vm2403 = vmor %vm2379, %vm2397
      %vm2404 = vmor %vm2380, %vm2397
      %vm2405 = vmor %vm2381, %vm2397
      %vm2406 = vmor %vm2382, %vm2397
      %vm2407 = vmor %vm2383, %vm2397
      %vm2408 = vmor %vm2384, %vm2397
      %vm2409 = vmor %vm2385, %vm2397
      %vm2410 = vmor %vm2386, %vm2397
      %vm2411 = vmor %vm2387, %vm2397
      %vm2412 = vmor %vm2388, %vm2397
      %vm2413 = vmor %vm2389, %vm2397
      %vm2414 = vmor %vm2390, %vm2397
      %vm2415 = vmor %vm2391, %vm2397
      %vm2416 = vmor %vm2392, %vm2397
      %vm2417 = vmor %vm2393, %vm2397
      %vm2418 = vcmp.lt.s32.totalorder %v738, 144
      %vm2419 = vcmp.lt.s32.totalorder %v739, 144
      %vm2420 = vcmp.lt.s32.totalorder %v740, 144
      %vm2421 = vcmp.lt.s32.totalorder %v741, 144
      %vm2422 = vcmp.lt.s32.totalorder %v742, 144
      %vm2423 = vcmp.lt.s32.totalorder %v743, 144
      %vm2424 = vcmp.lt.s32.totalorder %v744, 144
      %vm2425 = vcmp.lt.s32.totalorder %v745, 144
      %vm2426 = vcmp.lt.s32.totalorder %v746, 144
      %vm2427 = vcmp.lt.s32.totalorder %v747, 144
      %vm2428 = vcmp.lt.s32.totalorder %v748, 144
      %vm2429 = vcmp.lt.s32.totalorder %v749, 144
      %vm2430 = vcmp.lt.s32.totalorder %v750, 144
      %vm2431 = vcmp.lt.s32.totalorder %v751, 144
      %vm2432 = vcmp.lt.s32.totalorder %v752, 144
      %vm2433 = vcmp.lt.s32.totalorder %v753, 144
      %vm2434 = vcmp.lt.s32.totalorder %v754, 144
      %vm2435 = vcmp.lt.s32.totalorder %v755, 144
      %vm2436 = vcmp.lt.s32.totalorder %v756, 144
      %vm2437 = vcmp.lt.s32.totalorder %v757, 144
      %p2438 = scmp.ne.s32.totalorder %s25, 1
      %s2439 = scalar_select %p2438, 1, 0
      %v2440 = vstv %s2439
      %vm2441 = vcmp.eq.s32.totalorder %v2440, 1
      %vm2442 = vmor %vm2418, %vm2441
      %vm2443 = vmor %vm2419, %vm2441
      %vm2444 = vmor %vm2420, %vm2441
      %vm2445 = vmor %vm2421, %vm2441
      %vm2446 = vmor %vm2422, %vm2441
      %vm2447 = vmor %vm2423, %vm2441
      %vm2448 = vmor %vm2424, %vm2441
      %vm2449 = vmor %vm2425, %vm2441
      %vm2450 = vmor %vm2426, %vm2441
      %vm2451 = vmor %vm2427, %vm2441
      %vm2452 = vmor %vm2428, %vm2441
      %vm2453 = vmor %vm2429, %vm2441
      %vm2454 = vmor %vm2430, %vm2441
      %vm2455 = vmor %vm2431, %vm2441
      %vm2456 = vmor %vm2432, %vm2441
      %vm2457 = vmor %vm2433, %vm2441
      %vm2458 = vmor %vm2434, %vm2441
      %vm2459 = vmor %vm2435, %vm2441
      %vm2460 = vmor %vm2436, %vm2441
      %vm2461 = vmor %vm2437, %vm2441
      %vm2462 = vmand %vm2398, %vm2442
      %vm2463 = vmand %vm2399, %vm2443
      %vm2464 = vmand %vm2400, %vm2444
      %vm2465 = vmand %vm2401, %vm2445
      %vm2466 = vmand %vm2402, %vm2446
      %vm2467 = vmand %vm2403, %vm2447
      %vm2468 = vmand %vm2404, %vm2448
      %vm2469 = vmand %vm2405, %vm2449
      %vm2470 = vmand %vm2406, %vm2450
      %vm2471 = vmand %vm2407, %vm2451
      %vm2472 = vmand %vm2408, %vm2452
      %vm2473 = vmand %vm2409, %vm2453
      %vm2474 = vmand %vm2410, %vm2454
      %vm2475 = vmand %vm2411, %vm2455
      %vm2476 = vmand %vm2412, %vm2456
      %vm2477 = vmand %vm2413, %vm2457
      %vm2478 = vmand %vm2414, %vm2458
      %vm2479 = vmand %vm2415, %vm2459
      %vm2480 = vmand %vm2416, %vm2460
      %vm2481 = vmand %vm2417, %vm2461
      %v2482 = vsel %vm2462, 1, 0
      %v2483 = vsel %vm2463, 1, 0
      %v2484 = vsel %vm2464, 1, 0
      %v2485 = vsel %vm2465, 1, 0
      %v2486 = vsel %vm2466, 1, 0
      %v2487 = vsel %vm2467, 1, 0
      %v2488 = vsel %vm2468, 1, 0
      %v2489 = vsel %vm2469, 1, 0
      %v2490 = vsel %vm2470, 1, 0
      %v2491 = vsel %vm2471, 1, 0
      %v2492 = vsel %vm2472, 1, 0
      %v2493 = vsel %vm2473, 1, 0
      %v2494 = vsel %vm2474, 1, 0
      %v2495 = vsel %vm2475, 1, 0
      %v2496 = vsel %vm2476, 1, 0
      %v2497 = vsel %vm2477, 1, 0
      %v2498 = vsel %vm2478, 1, 0
      %v2499 = vsel %vm2479, 1, 0
      %v2500 = vsel %vm2480, 1, 0
      %v2501 = vsel %vm2481, 1, 0
      %vm2502 = vcmp.eq.s32.totalorder %v2482, 1
      %vm2503 = vcmp.eq.s32.totalorder %v2483, 1
      %vm2504 = vcmp.eq.s32.totalorder %v2484, 1
      %vm2505 = vcmp.eq.s32.totalorder %v2485, 1
      %vm2506 = vcmp.eq.s32.totalorder %v2486, 1
      %vm2507 = vcmp.eq.s32.totalorder %v2487, 1
      %vm2508 = vcmp.eq.s32.totalorder %v2488, 1
      %vm2509 = vcmp.eq.s32.totalorder %v2489, 1
      %vm2510 = vcmp.eq.s32.totalorder %v2490, 1
      %vm2511 = vcmp.eq.s32.totalorder %v2491, 1
      %vm2512 = vcmp.eq.s32.totalorder %v2492, 1
      %vm2513 = vcmp.eq.s32.totalorder %v2493, 1
      %vm2514 = vcmp.eq.s32.totalorder %v2494, 1
      %vm2515 = vcmp.eq.s32.totalorder %v2495, 1
      %vm2516 = vcmp.eq.s32.totalorder %v2496, 1
      %vm2517 = vcmp.eq.s32.totalorder %v2497, 1
      %vm2518 = vcmp.eq.s32.totalorder %v2498, 1
      %vm2519 = vcmp.eq.s32.totalorder %v2499, 1
      %vm2520 = vcmp.eq.s32.totalorder %v2500, 1
      %vm2521 = vcmp.eq.s32.totalorder %v2501, 1
      %v2522 = vsel %vm2502, %v2354, 0.0
      %v2523 = vsel %vm2503, %v2355, 0.0
      %v2524 = vsel %vm2504, %v2356, 0.0
      %v2525 = vsel %vm2505, %v2357, 0.0
      %v2526 = vsel %vm2506, %v2358, 0.0
      %v2527 = vsel %vm2507, %v2359, 0.0
      %v2528 = vsel %vm2508, %v2360, 0.0
      %v2529 = vsel %vm2509, %v2361, 0.0
      %v2530 = vsel %vm2510, %v2362, 0.0
      %v2531 = vsel %vm2511, %v2363, 0.0
      %v2532 = vsel %vm2512, %v2364, 0.0
      %v2533 = vsel %vm2513, %v2365, 0.0
      %v2534 = vsel %vm2514, %v2366, 0.0
      %v2535 = vsel %vm2515, %v2367, 0.0
      %v2536 = vsel %vm2516, %v2368, 0.0
      %v2537 = vsel %vm2517, %v2369, 0.0
      %v2538 = vsel %vm2518, %v2370, 0.0
      %v2539 = vsel %vm2519, %v2371, 0.0
      %v2540 = vsel %vm2520, %v2372, 0.0
      %v2541 = vsel %vm2521, %v2373, 0.0
      %v2542 = vrot.slane %v2522, 7
      %v2543 = vrot.slane %v2523, 7
      %v2544 = vrot.slane %v2524, 7
      %v2545 = vrot.slane %v2525, 7
      %v2546 = vrot.slane %v2526, 7
      %v2547 = vrot.slane %v2527, 7
      %v2548 = vrot.slane %v2528, 7
      %v2549 = vrot.slane %v2529, 7
      %v2550 = vrot.slane %v2530, 7
      %v2551 = vrot.slane %v2531, 7
      %v2552 = vrot.slane %v2532, 7
      %v2553 = vrot.slane %v2533, 7
      %v2554 = vrot.slane %v2534, 7
      %v2555 = vrot.slane %v2535, 7
      %v2556 = vrot.slane %v2536, 7
      %v2557 = vrot.slane %v2537, 7
      %v2558 = vrot.slane %v2538, 7
      %v2559 = vrot.slane %v2539, 7
      %v2560 = vrot.slane %v2540, 7
      %v2561 = vrot.slane %v2541, 7
      %v2562 = vsel %vm1074, %v2560, %v2561
      %v2563 = vsel %vm1074, %v2559, %v2560
      %v2564 = vsel %vm1074, %v2558, %v2559
      %v2565 = vsel %vm1074, %v2557, %v2558
      %v2566 = vsel %vm1074, %v2556, %v2557
      %v2567 = vsel %vm1074, %v2555, %v2556
      %v2568 = vsel %vm1074, %v2554, %v2555
      %v2569 = vsel %vm1074, %v2553, %v2554
      %v2570 = vsel %vm1074, %v2552, %v2553
      %v2571 = vsel %vm1074, %v2551, %v2552
      %v2572 = vsel %vm1074, %v2550, %v2551
      %v2573 = vsel %vm1074, %v2549, %v2550
      %v2574 = vsel %vm1074, %v2548, %v2549
      %v2575 = vsel %vm1074, %v2547, %v2548
      %v2576 = vsel %vm1074, %v2546, %v2547
      %v2577 = vsel %vm1074, %v2545, %v2546
      %v2578 = vsel %vm1074, %v2544, %v2545
      %v2579 = vsel %vm1074, %v2543, %v2544
      %v2580 = vsel %vm1074, %v2542, %v2543
      %v2581 = vsel %vm1074, %v2561, %v2542
      %v2582 = vsel %vm1147, 0.0, %v2581
      %v2583 = vsel %vm1148, 0.0, %v2580
      %v2584 = vsel %vm1149, 0.0, %v2579
      %v2585 = vsel %vm1150, 0.0, %v2578
      %v2586 = vsel %vm1151, 0.0, %v2577
      %v2587 = vsel %vm1152, 0.0, %v2576
      %v2588 = vsel %vm1153, 0.0, %v2575
      %v2589 = vsel %vm1154, 0.0, %v2574
      %v2590 = vsel %vm1155, 0.0, %v2573
      %v2591 = vsel %vm1156, 0.0, %v2572
      %v2592 = vsel %vm1157, 0.0, %v2571
      %v2593 = vsel %vm1158, 0.0, %v2570
      %v2594 = vsel %vm1159, 0.0, %v2569
      %v2595 = vsel %vm1160, 0.0, %v2568
      %v2596 = vsel %vm1161, 0.0, %v2567
      %v2597 = vsel %vm1162, 0.0, %v2566
      %v2598 = vsel %vm1163, 0.0, %v2565
      %v2599 = vsel %vm1164, 0.0, %v2564
      %v2600 = vsel %vm1165, 0.0, %v2563
      %v2601 = vsel %vm1166, 0.0, %v2562
      %v2602 = vrot.slane %v2522, 1
      %v2603 = vrot.slane %v2523, 1
      %v2604 = vrot.slane %v2524, 1
      %v2605 = vrot.slane %v2525, 1
      %v2606 = vrot.slane %v2526, 1
      %v2607 = vrot.slane %v2527, 1
      %v2608 = vrot.slane %v2528, 1
      %v2609 = vrot.slane %v2529, 1
      %v2610 = vrot.slane %v2530, 1
      %v2611 = vrot.slane %v2531, 1
      %v2612 = vrot.slane %v2532, 1
      %v2613 = vrot.slane %v2533, 1
      %v2614 = vrot.slane %v2534, 1
      %v2615 = vrot.slane %v2535, 1
      %v2616 = vrot.slane %v2536, 1
      %v2617 = vrot.slane %v2537, 1
      %v2618 = vrot.slane %v2538, 1
      %v2619 = vrot.slane %v2539, 1
      %v2620 = vrot.slane %v2540, 1
      %v2621 = vrot.slane %v2541, 1
      %v2622 = vsel %vm1219, %v2620, %v2621
      %v2623 = vsel %vm1219, %v2619, %v2620
      %v2624 = vsel %vm1219, %v2618, %v2619
      %v2625 = vsel %vm1219, %v2617, %v2618
      %v2626 = vsel %vm1219, %v2616, %v2617
      %v2627 = vsel %vm1219, %v2615, %v2616
      %v2628 = vsel %vm1219, %v2614, %v2615
      %v2629 = vsel %vm1219, %v2613, %v2614
      %v2630 = vsel %vm1219, %v2612, %v2613
      %v2631 = vsel %vm1219, %v2611, %v2612
      %v2632 = vsel %vm1219, %v2610, %v2611
      %v2633 = vsel %vm1219, %v2609, %v2610
      %v2634 = vsel %vm1219, %v2608, %v2609
      %v2635 = vsel %vm1219, %v2607, %v2608
      %v2636 = vsel %vm1219, %v2606, %v2607
      %v2637 = vsel %vm1219, %v2605, %v2606
      %v2638 = vsel %vm1219, %v2604, %v2605
      %v2639 = vsel %vm1219, %v2603, %v2604
      %v2640 = vsel %vm1219, %v2602, %v2603
      %v2641 = vsel %vm1219, %v2621, %v2602
      %v2642 = vsel %vm1292, 0.0, %v2640
      %v2643 = vsel %vm1293, 0.0, %v2639
      %v2644 = vsel %vm1294, 0.0, %v2638
      %v2645 = vsel %vm1295, 0.0, %v2637
      %v2646 = vsel %vm1296, 0.0, %v2636
      %v2647 = vsel %vm1297, 0.0, %v2635
      %v2648 = vsel %vm1298, 0.0, %v2634
      %v2649 = vsel %vm1299, 0.0, %v2633
      %v2650 = vsel %vm1300, 0.0, %v2632
      %v2651 = vsel %vm1301, 0.0, %v2631
      %v2652 = vsel %vm1302, 0.0, %v2630
      %v2653 = vsel %vm1303, 0.0, %v2629
      %v2654 = vsel %vm1304, 0.0, %v2628
      %v2655 = vsel %vm1305, 0.0, %v2627
      %v2656 = vsel %vm1306, 0.0, %v2626
      %v2657 = vsel %vm1307, 0.0, %v2625
      %v2658 = vsel %vm1308, 0.0, %v2624
      %v2659 = vsel %vm1309, 0.0, %v2623
      %v2660 = vsel %vm1310, 0.0, %v2622
      %v2661 = vsel %vm1311, 0.0, %v2641
      %v2662 = vpack.c.bf16 %v2583, %v2582
      %v2663 = vpack.c.bf16 %v2585, %v2584
      %v2664 = vpack.c.bf16 %v2587, %v2586
      %v2665 = vpack.c.bf16 %v2589, %v2588
      %v2666 = vpack.c.bf16 %v2591, %v2590
      %v2667 = vpack.c.bf16 %v2593, %v2592
      %v2668 = vpack.c.bf16 %v2595, %v2594
      %v2669 = vpack.c.bf16 %v2597, %v2596
      %v2670 = vpack.c.bf16 %v2599, %v2598
      %v2671 = vpack.c.bf16 %v2601, %v2600
      %v2672 = vpack.c.bf16 %v2523, %v2522
      %v2673 = vpack.c.bf16 %v2525, %v2524
      %v2674 = vpack.c.bf16 %v2527, %v2526
      %v2675 = vpack.c.bf16 %v2529, %v2528
      %v2676 = vpack.c.bf16 %v2531, %v2530
      %v2677 = vpack.c.bf16 %v2533, %v2532
      %v2678 = vpack.c.bf16 %v2535, %v2534
      %v2679 = vpack.c.bf16 %v2537, %v2536
      %v2680 = vpack.c.bf16 %v2539, %v2538
      %v2681 = vpack.c.bf16 %v2541, %v2540
      %v2682 = vpack.c.bf16 %v2643, %v2642
      %v2683 = vpack.c.bf16 %v2645, %v2644
      %v2684 = vpack.c.bf16 %v2647, %v2646
      %v2685 = vpack.c.bf16 %v2649, %v2648
      %v2686 = vpack.c.bf16 %v2651, %v2650
      %v2687 = vpack.c.bf16 %v2653, %v2652
      %v2688 = vpack.c.bf16 %v2655, %v2654
      %v2689 = vpack.c.bf16 %v2657, %v2656
      %v2690 = vpack.c.bf16 %v2659, %v2658
      %v2691 = vpack.c.bf16 %v2661, %v2660
      %2702 = vrot.lane.b32.xlu0 %v2672, 4
      %v2703 = vpop.permute.xlu0 %2702
      %2704 = vrot.lane.b32.xlu0 %v2673, 4
      %v2705 = vpop.permute.xlu0 %2704
      %2706 = vrot.lane.b32.xlu0 %v2674, 4
      %v2707 = vpop.permute.xlu0 %2706
      %2708 = vrot.lane.b32.xlu0 %v2675, 4
      %v2709 = vpop.permute.xlu0 %2708
      %2710 = vrot.lane.b32.xlu0 %v2676, 4
      %v2711 = vpop.permute.xlu0 %2710
      %2712 = vrot.lane.b32.xlu0 %v2677, 4
      %v2713 = vpop.permute.xlu0 %2712
      %2714 = vrot.lane.b32.xlu0 %v2678, 4
      %v2715 = vpop.permute.xlu0 %2714
      %2716 = vrot.lane.b32.xlu0 %v2679, 4
      %v2717 = vpop.permute.xlu0 %2716
      %2718 = vrot.lane.b32.xlu0 %v2680, 4
      %v2719 = vpop.permute.xlu0 %2718
      %2720 = vrot.lane.b32.xlu0 %v2681, 4
      %v2721 = vpop.permute.xlu0 %2720
      %2732 = vrot.lane.b32.xlu0 %v2682, 8
      %v2733 = vpop.permute.xlu0 %2732
      %2734 = vrot.lane.b32.xlu0 %v2683, 8
      %v2735 = vpop.permute.xlu0 %2734
      %2736 = vrot.lane.b32.xlu0 %v2684, 8
      %v2737 = vpop.permute.xlu0 %2736
      %2738 = vrot.lane.b32.xlu0 %v2685, 8
      %v2739 = vpop.permute.xlu0 %2738
      %2740 = vrot.lane.b32.xlu0 %v2686, 8
      %v2741 = vpop.permute.xlu0 %2740
      %2742 = vrot.lane.b32.xlu0 %v2687, 8
      %v2743 = vpop.permute.xlu0 %2742
      %2744 = vrot.lane.b32.xlu0 %v2688, 8
      %v2745 = vpop.permute.xlu0 %2744
      %2746 = vrot.lane.b32.xlu0 %v2689, 8
      %v2747 = vpop.permute.xlu0 %2746
      %2748 = vrot.lane.b32.xlu0 %v2690, 8
      %v2749 = vpop.permute.xlu0 %2748
      %2750 = vrot.lane.b32.xlu0 %v2691, 8
      %v2751 = vpop.permute.xlu0 %2750
      %v2754 = vsel %vm1736, %v2662, %v2703
      %v2757 = vsel %vm1736, %v2663, %v2705
      %v2760 = vsel %vm1736, %v2664, %v2707
      %v2763 = vsel %vm1736, %v2665, %v2709
      %v2766 = vsel %vm1736, %v2666, %v2711
      %v2769 = vsel %vm1736, %v2667, %v2713
      %v2772 = vsel %vm1736, %v2668, %v2715
      %v2775 = vsel %vm1736, %v2669, %v2717
      %v2778 = vsel %vm1736, %v2670, %v2719
      %v2781 = vsel %vm1736, %v2671, %v2721
      %v2783 = vsel %vm1773, %v2754, %v2733
      %v2785 = vsel %vm1773, %v2757, %v2735
      %v2787 = vsel %vm1773, %v2760, %v2737
      %v2789 = vsel %vm1773, %v2763, %v2739
      %v2791 = vsel %vm1773, %v2766, %v2741
      %v2793 = vsel %vm1773, %v2769, %v2743
      %v2795 = vsel %vm1773, %v2772, %v2745
      %v2797 = vsel %vm1773, %v2775, %v2747
      %v2799 = vsel %vm1773, %v2778, %v2749
      %v2801 = vsel %vm1773, %v2781, %v2751
      %v2802 = vld [vmem:[%s7] sm:$0xf]
      %v2803 = vld [vmem:[%s7 + $0x4] sm:$0x3]
      %s2804 = scalar_lea.vmem %s7, 8
      %v2805 = vld [vmem:[%s2804] sm:$0xf]
      %v2806 = vld [vmem:[%s2804 + $0x4] sm:$0x3]
      %v2809 = vunpack.c.l.b16 %v2805
      %v2810 = vunpack.c.l.b16 %v2806
      %v2811 = vpack.c.b16 %v2810, %v2809
      %v2812 = vsel %vm1798, %v2785, 0
      %v2814 = vsel %vm1798, %v2787, 0
      %v2816 = vsel %vm1798, %v2789, 0
      %v2818 = vsel %vm1798, %v2791, 0
      %v2820 = vsel %vm1798, %v2793, 0
      %v2822 = vsel %vm1798, %v2795, 0
      %v2824 = vsel %vm1798, %v2797, 0
      %v2826 = vsel %vm1798, %v2799, 0
      %vm2828 = vcmask 1045504
      %v2830 = vsel %vm2828, %v2811, 0
      %2832 = vmatprep.subr.bf16.mxu0 0
      %2833 = vmatpush1.bf16.msra.mxu0 %v2830
      %2834 = vmatprep.subr.bf16.mxu0 0
      %2835 = vmatpush1.bf16.msra.mxu0 0
      %2836 = vmatprep.subr.bf16.mxu0 0
      %2837 = vmatpush1.bf16.msra.mxu0 0
      %2838 = vmatprep.subr.bf16.mxu0 0
      %2839 = vmatpush1.bf16.msra.mxu0 0
      %2840 = vmatprep.subr.bf16.mxu0 0
      %2841 = vmatpush1.bf16.msra.mxu0 0
      %2842 = vmatprep.subr.bf16.mxu0 0
      %2843 = vmatpush1.bf16.msra.mxu0 0
      %2844 = vmatprep.subr.bf16.mxu0 0
      %2845 = vmatpush1.bf16.msra.mxu0 0
      %2846 = vmatprep.subr.bf16.mxu0 0
      %2847 = vmatpush1.bf16.msra.mxu0 0
      %2848 = vmatprep.subr.bf16.mxu0 0
      %2849 = vmatpush1.bf16.msra.mxu0 0
      %2850 = vmatprep.subr.bf16.mxu0 0
      %2851 = vmatpush1.bf16.msra.mxu0 0
      %2852 = vmatprep.subr.bf16.mxu0 0
      %2853 = vmatpush1.bf16.msra.mxu0 0
      %2854 = vmatprep.subr.bf16.mxu0 0
      %2855 = vmatpush1.bf16.msra.mxu0 0
      %2856 = vmatprep.subr.bf16.mxu0 0
      %2857 = vmatpush1.bf16.msra.mxu0 0
      %2858 = vmatprep.subr.bf16.mxu0 0
      %2859 = vmatpush1.bf16.msra.mxu0 0
      %2860 = vmatprep.subr.bf16.mxu0 0
      %2861 = vmatpush1.bf16.msra.mxu0 0
      %2862 = vmatprep.subr.bf16.mxu0 0
      %2863 = vmatpush1.bf16.msra.mxu0 0
      %2864 = vmatprep.mubr.bf16.mxu0 0
      %2865 = vmatmul.mubr.bf16.gmra.mrb[0].mxu0 %v2812
      %v2866 = vpop.f32.mrb[0].mxu0
      %v2867 = vadd.f32 0.0, %v2866
      %v2868 = vpop.f32.mrb[0].mxu0
      %v2869 = vpop.f32.mrb[0].mxu0
      %v2870 = vadd.f32 0.0, %v2869
      %v2871 = vpop.f32.mrb[0].mxu0
      %2872 = vmatprep.mubr.bf16.mxu0 0
      %2873 = vmatmul.mubr.bf16.gmra.mrb[0].mxu0 %v2814
      %v2874 = vpop.f32.mrb[0].mxu0
      %v2875 = vadd.f32 0.0, %v2874
      %v2876 = vpop.f32.mrb[0].mxu0
      %v2877 = vpop.f32.mrb[0].mxu0
      %v2878 = vadd.f32 0.0, %v2877
      %v2879 = vpop.f32.mrb[0].mxu0
      %2880 = vmatprep.mubr.bf16.mxu0 0
      %2881 = vmatmul.mubr.bf16.gmra.mrb[0].mxu0 %v2816
      %v2882 = vpop.f32.mrb[0].mxu0
      %v2883 = vadd.f32 0.0, %v2882
      %v2884 = vpop.f32.mrb[0].mxu0
      %v2885 = vpop.f32.mrb[0].mxu0
      %v2886 = vadd.f32 0.0, %v2885
      %v2887 = vpop.f32.mrb[0].mxu0
      %2888 = vmatprep.mubr.bf16.mxu0 0
      %2889 = vmatmul.mubr.bf16.gmra.mrb[0].mxu0 %v2818
      %v2890 = vpop.f32.mrb[0].mxu0
      %v2891 = vadd.f32 0.0, %v2890
      %v2892 = vpop.f32.mrb[0].mxu0
      %v2893 = vpop.f32.mrb[0].mxu0
      %v2894 = vadd.f32 0.0, %v2893
      %v2895 = vpop.f32.mrb[0].mxu0
      %2896 = vmatprep.mubr.bf16.mxu0 0
      %2897 = vmatmul.mubr.bf16.gmra.mrb[0].mxu0 %v2820
      %v2898 = vpop.f32.mrb[0].mxu0
      %v2899 = vadd.f32 0.0, %v2898
      %v2900 = vpop.f32.mrb[0].mxu0
      %v2901 = vpop.f32.mrb[0].mxu0
      %v2902 = vadd.f32 0.0, %v2901
      %v2903 = vpop.f32.mrb[0].mxu0
      %2904 = vmatprep.mubr.bf16.mxu0 0
      %2905 = vmatmul.mubr.bf16.gmra.mrb[0].mxu0 %v2822
      %v2906 = vpop.f32.mrb[0].mxu0
      %v2907 = vadd.f32 0.0, %v2906
      %v2908 = vpop.f32.mrb[0].mxu0
      %v2909 = vpop.f32.mrb[0].mxu0
      %v2910 = vadd.f32 0.0, %v2909
      %v2911 = vpop.f32.mrb[0].mxu0
      %2912 = vmatprep.mubr.bf16.mxu0 0
      %2913 = vmatmul.mubr.bf16.gmra.mrb[0].mxu0 %v2824
      %v2914 = vpop.f32.mrb[0].mxu0
      %v2915 = vadd.f32 0.0, %v2914
      %v2916 = vpop.f32.mrb[0].mxu0
      %v2917 = vpop.f32.mrb[0].mxu0
      %v2918 = vadd.f32 0.0, %v2917
      %v2919 = vpop.f32.mrb[0].mxu0
      %2920 = vmatprep.mubr.bf16.mxu0 0
      %2921 = vmatmul.mubr.bf16.gmra.mrb[0].mxu0 %v2826
      %v2922 = vpop.f32.mrb[0].mxu0
      %v2923 = vadd.f32 0.0, %v2922
      %v2924 = vpop.f32.mrb[0].mxu0
      %v2925 = vpop.f32.mrb[0].mxu0
      %v2926 = vadd.f32 0.0, %v2925
      %v2927 = vpop.f32.mrb[0].mxu0
      %2928 = vdwg.mxu0
      %v2931 = vunpack.c.l.b16 %v2802
      %v2932 = vunpack.c.l.b16 %v2803
      %v2933 = vpack.c.b16 %v2932, %v2931
      %v2934 = vsel %vm1798, %v2783, 0
      %v2937 = vsel %vm2828, %v2933, 0
      %2939 = vmatprep.subr.bf16.mxu0 0
      %2940 = vmatpush1.bf16.msra.mxu0 %v2937
      %2941 = vmatprep.subr.bf16.mxu0 0
      %2942 = vmatpush1.bf16.msra.mxu0 0
      %2943 = vmatprep.subr.bf16.mxu0 0
      %2944 = vmatpush1.bf16.msra.mxu0 0
      %2945 = vmatprep.subr.bf16.mxu0 0
      %2946 = vmatpush1.bf16.msra.mxu0 0
      %2947 = vmatprep.subr.bf16.mxu0 0
      %2948 = vmatpush1.bf16.msra.mxu0 0
      %2949 = vmatprep.subr.bf16.mxu0 0
      %2950 = vmatpush1.bf16.msra.mxu0 0
      %2951 = vmatprep.subr.bf16.mxu0 0
      %2952 = vmatpush1.bf16.msra.mxu0 0
      %2953 = vmatprep.subr.bf16.mxu0 0
      %2954 = vmatpush1.bf16.msra.mxu0 0
      %2955 = vmatprep.subr.bf16.mxu0 0
      %2956 = vmatpush1.bf16.msra.mxu0 0
      %2957 = vmatprep.subr.bf16.mxu0 0
      %2958 = vmatpush1.bf16.msra.mxu0 0
      %2959 = vmatprep.subr.bf16.mxu0 0
      %2960 = vmatpush1.bf16.msra.mxu0 0
      %2961 = vmatprep.subr.bf16.mxu0 0
      %2962 = vmatpush1.bf16.msra.mxu0 0
      %2963 = vmatprep.subr.bf16.mxu0 0
      %2964 = vmatpush1.bf16.msra.mxu0 0
      %2965 = vmatprep.subr.bf16.mxu0 0
      %2966 = vmatpush1.bf16.msra.mxu0 0
      %2967 = vmatprep.subr.bf16.mxu0 0
      %2968 = vmatpush1.bf16.msra.mxu0 0
      %2969 = vmatprep.subr.bf16.mxu0 0
      %2970 = vmatpush1.bf16.msra.mxu0 0
      %2971 = vmatprep.mubr.bf16.mxu0 0
      %2972 = vmatmul.mubr.bf16.gmra.mrb[0].mxu0 %v2934
      %v2973 = vpop.f32.mrb[0].mxu0
      %v2974 = vadd.f32 %v2867, %v2973
      %v2975 = vpop.f32.mrb[0].mxu0
      %v2976 = vpop.f32.mrb[0].mxu0
      %v2977 = vadd.f32 %v2870, %v2976
      %v2978 = vpop.f32.mrb[0].mxu0
      %2979 = vmatprep.mubr.bf16.mxu0 0
      %2980 = vmatmul.mubr.bf16.gmra.mrb[0].mxu0 %v2812
      %v2981 = vpop.f32.mrb[0].mxu0
      %v2982 = vadd.f32 %v2875, %v2981
      %v2983 = vpop.f32.mrb[0].mxu0
      %v2984 = vpop.f32.mrb[0].mxu0
      %v2985 = vadd.f32 %v2878, %v2984
      %v2986 = vpop.f32.mrb[0].mxu0
      %2987 = vmatprep.mubr.bf16.mxu0 0
      %2988 = vmatmul.mubr.bf16.gmra.mrb[0].mxu0 %v2814
      %v2989 = vpop.f32.mrb[0].mxu0
      %v2990 = vadd.f32 %v2883, %v2989
      %v2991 = vpop.f32.mrb[0].mxu0
      %v2992 = vpop.f32.mrb[0].mxu0
      %v2993 = vadd.f32 %v2886, %v2992
      %v2994 = vpop.f32.mrb[0].mxu0
      %2995 = vmatprep.mubr.bf16.mxu0 0
      %2996 = vmatmul.mubr.bf16.gmra.mrb[0].mxu0 %v2816
      %v2997 = vpop.f32.mrb[0].mxu0
      %v2998 = vadd.f32 %v2891, %v2997
      %v2999 = vpop.f32.mrb[0].mxu0
      %v3000 = vpop.f32.mrb[0].mxu0
      %v3001 = vadd.f32 %v2894, %v3000
      %v3002 = vpop.f32.mrb[0].mxu0
      %3003 = vmatprep.mubr.bf16.mxu0 0
      %3004 = vmatmul.mubr.bf16.gmra.mrb[0].mxu0 %v2818
      %v3005 = vpop.f32.mrb[0].mxu0
      %v3006 = vadd.f32 %v2899, %v3005
      %v3007 = vpop.f32.mrb[0].mxu0
      %v3008 = vpop.f32.mrb[0].mxu0
      %v3009 = vadd.f32 %v2902, %v3008
      %v3010 = vpop.f32.mrb[0].mxu0
      %3011 = vmatprep.mubr.bf16.mxu0 0
      %3012 = vmatmul.mubr.bf16.gmra.mrb[0].mxu0 %v2820
      %v3013 = vpop.f32.mrb[0].mxu0
      %v3014 = vadd.f32 %v2907, %v3013
      %v3015 = vpop.f32.mrb[0].mxu0
      %v3016 = vpop.f32.mrb[0].mxu0
      %v3017 = vadd.f32 %v2910, %v3016
      %v3018 = vpop.f32.mrb[0].mxu0
      %3019 = vmatprep.mubr.bf16.mxu0 0
      %3020 = vmatmul.mubr.bf16.gmra.mrb[0].mxu0 %v2822
      %v3021 = vpop.f32.mrb[0].mxu0
      %v3022 = vadd.f32 %v2915, %v3021
      %v3023 = vpop.f32.mrb[0].mxu0
      %v3024 = vpop.f32.mrb[0].mxu0
      %v3025 = vadd.f32 %v2918, %v3024
      %v3026 = vpop.f32.mrb[0].mxu0
      %3027 = vmatprep.mubr.bf16.mxu0 0
      %3028 = vmatmul.mubr.bf16.gmra.mrb[0].mxu0 %v2824
      %v3029 = vpop.f32.mrb[0].mxu0
      %v3030 = vadd.f32 %v2923, %v3029
      %v3031 = vpop.f32.mrb[0].mxu0
      %v3032 = vpop.f32.mrb[0].mxu0
      %v3033 = vadd.f32 %v2926, %v3032
      %v3034 = vpop.f32.mrb[0].mxu0
      %3035 = vdwg.mxu0
      %s3036 = scalar_lea.vmem %s7, 16
      %v3037 = vld [vmem:[%s3036] sm:$0xf]
      %v3038 = vld [vmem:[%s3036 + $0x4] sm:$0x3]
      %v3041 = vunpack.c.l.b16 %v3037
      %v3042 = vunpack.c.l.b16 %v3038
      %v3043 = vpack.c.b16 %v3042, %v3041
      %v3044 = vsel %vm1798, %v2801, 0
      %v3047 = vsel %vm2828, %v3043, 0
      %3049 = vmatprep.subr.bf16.mxu0 0
      %3050 = vmatpush1.bf16.msra.mxu0 %v3047
      %3051 = vmatprep.subr.bf16.mxu0 0
      %3052 = vmatpush1.bf16.msra.mxu0 0
      %3053 = vmatprep.subr.bf16.mxu0 0
      %3054 = vmatpush1.bf16.msra.mxu0 0
      %3055 = vmatprep.subr.bf16.mxu0 0
      %3056 = vmatpush1.bf16.msra.mxu0 0
      %3057 = vmatprep.subr.bf16.mxu0 0
      %3058 = vmatpush1.bf16.msra.mxu0 0
      %3059 = vmatprep.subr.bf16.mxu0 0
      %3060 = vmatpush1.bf16.msra.mxu0 0
      %3061 = vmatprep.subr.bf16.mxu0 0
      %3062 = vmatpush1.bf16.msra.mxu0 0
      %3063 = vmatprep.subr.bf16.mxu0 0
      %3064 = vmatpush1.bf16.msra.mxu0 0
      %3065 = vmatprep.subr.bf16.mxu0 0
      %3066 = vmatpush1.bf16.msra.mxu0 0
      %3067 = vmatprep.subr.bf16.mxu0 0
      %3068 = vmatpush1.bf16.msra.mxu0 0
      %3069 = vmatprep.subr.bf16.mxu0 0
      %3070 = vmatpush1.bf16.msra.mxu0 0
      %3071 = vmatprep.subr.bf16.mxu0 0
      %3072 = vmatpush1.bf16.msra.mxu0 0
      %3073 = vmatprep.subr.bf16.mxu0 0
      %3074 = vmatpush1.bf16.msra.mxu0 0
      %3075 = vmatprep.subr.bf16.mxu0 0
      %3076 = vmatpush1.bf16.msra.mxu0 0
      %3077 = vmatprep.subr.bf16.mxu0 0
      %3078 = vmatpush1.bf16.msra.mxu0 0
      %3079 = vmatprep.subr.bf16.mxu0 0
      %3080 = vmatpush1.bf16.msra.mxu0 0
      %3081 = vmatprep.mubr.bf16.mxu0 0
      %3082 = vmatmul.mubr.bf16.gmra.mrb[0].mxu0 %v2814
      %v3083 = vpop.f32.mrb[0].mxu0
      %v3084 = vadd.f32 0.0, %v3083
      %v3085 = vpop.f32.mrb[0].mxu0
      %v3086 = vpop.f32.mrb[0].mxu0
      %v3087 = vadd.f32 0.0, %v3086
      %v3088 = vpop.f32.mrb[0].mxu0
      %3089 = vmatprep.mubr.bf16.mxu0 0
      %3090 = vmatmul.mubr.bf16.gmra.mrb[0].mxu0 %v2816
      %v3091 = vpop.f32.mrb[0].mxu0
      %v3092 = vadd.f32 0.0, %v3091
      %v3093 = vpop.f32.mrb[0].mxu0
      %v3094 = vpop.f32.mrb[0].mxu0
      %v3095 = vadd.f32 0.0, %v3094
      %v3096 = vpop.f32.mrb[0].mxu0
      %3097 = vmatprep.mubr.bf16.mxu0 0
      %3098 = vmatmul.mubr.bf16.gmra.mrb[0].mxu0 %v2818
      %v3099 = vpop.f32.mrb[0].mxu0
      %v3100 = vadd.f32 0.0, %v3099
      %v3101 = vpop.f32.mrb[0].mxu0
      %v3102 = vpop.f32.mrb[0].mxu0
      %v3103 = vadd.f32 0.0, %v3102
      %v3104 = vpop.f32.mrb[0].mxu0
      %3105 = vmatprep.mubr.bf16.mxu0 0
      %3106 = vmatmul.mubr.bf16.gmra.mrb[0].mxu0 %v2820
      %v3107 = vpop.f32.mrb[0].mxu0
      %v3108 = vadd.f32 0.0, %v3107
      %v3109 = vpop.f32.mrb[0].mxu0
      %v3110 = vpop.f32.mrb[0].mxu0
      %v3111 = vadd.f32 0.0, %v3110
      %v3112 = vpop.f32.mrb[0].mxu0
      %3113 = vmatprep.mubr.bf16.mxu0 0
      %3114 = vmatmul.mubr.bf16.gmra.mrb[0].mxu0 %v2822
      %v3115 = vpop.f32.mrb[0].mxu0
      %v3116 = vadd.f32 0.0, %v3115
      %v3117 = vpop.f32.mrb[0].mxu0
      %v3118 = vpop.f32.mrb[0].mxu0
      %v3119 = vadd.f32 0.0, %v3118
      %v3120 = vpop.f32.mrb[0].mxu0
      %3121 = vmatprep.mubr.bf16.mxu0 0
      %3122 = vmatmul.mubr.bf16.gmra.mrb[0].mxu0 %v2824
      %v3123 = vpop.f32.mrb[0].mxu0
      %v3124 = vadd.f32 0.0, %v3123
      %v3125 = vpop.f32.mrb[0].mxu0
      %v3126 = vpop.f32.mrb[0].mxu0
      %v3127 = vadd.f32 0.0, %v3126
      %v3128 = vpop.f32.mrb[0].mxu0
      %3129 = vmatprep.mubr.bf16.mxu0 0
      %3130 = vmatmul.mubr.bf16.gmra.mrb[0].mxu0 %v2826
      %v3131 = vpop.f32.mrb[0].mxu0
      %v3132 = vadd.f32 0.0, %v3131
      %v3133 = vpop.f32.mrb[0].mxu0
      %v3134 = vpop.f32.mrb[0].mxu0
      %v3135 = vadd.f32 0.0, %v3134
      %v3136 = vpop.f32.mrb[0].mxu0
      %3137 = vmatprep.mubr.bf16.mxu0 0
      %3138 = vmatmul.mubr.bf16.gmra.mrb[0].mxu0 %v3044
      %v3139 = vpop.f32.mrb[0].mxu0
      %v3140 = vadd.f32 0.0, %v3139
      %v3141 = vpop.f32.mrb[0].mxu0
      %v3142 = vpop.f32.mrb[0].mxu0
      %v3143 = vadd.f32 0.0, %v3142
      %v3144 = vpop.f32.mrb[0].mxu0
      %3145 = vdwg.mxu0
      %v3146 = vadd.f32 %v2974, %v3084
      %v3147 = vadd.f32 %v2977, %v3087
      %v3148 = vadd.f32 %v2982, %v3092
      %v3149 = vadd.f32 %v2985, %v3095
      %v3150 = vadd.f32 %v2990, %v3100
      %v3151 = vadd.f32 %v2993, %v3103
      %v3152 = vadd.f32 %v2998, %v3108
      %v3153 = vadd.f32 %v3001, %v3111
      %v3154 = vadd.f32 %v3006, %v3116
      %v3155 = vadd.f32 %v3009, %v3119
      %v3156 = vadd.f32 %v3014, %v3124
      %v3157 = vadd.f32 %v3017, %v3127
      %v3158 = vadd.f32 %v3022, %v3132
      %v3159 = vadd.f32 %v3025, %v3135
      %v3160 = vadd.f32 %v3030, %v3140
      %v3161 = vadd.f32 %v3033, %v3143
      %v3162 = vlaneseq
      %v3163 = vshrl.u32 %v3162, 7
      %v3164 = vsub.s32 2, %v3163
      %v3165 = vrot.slane %v2305, %v3164
      %v3166 = vmul.f32 %v3146, %v3165
      %v3167 = vmul.f32 %v3147, %v3165
      %v3168 = vmul.f32 %v3148, %v3165
      %v3169 = vmul.f32 %v3149, %v3165
      %v3170 = vmul.f32 %v3150, %v3165
      %v3171 = vmul.f32 %v3151, %v3165
      %v3172 = vmul.f32 %v3152, %v3165
      %v3173 = vmul.f32 %v3153, %v3165
      %v3174 = vmul.f32 %v3154, %v3165
      %v3175 = vmul.f32 %v3155, %v3165
      %v3176 = vmul.f32 %v3156, %v3165
      %v3177 = vmul.f32 %v3157, %v3165
      %v3178 = vmul.f32 %v3158, %v3165
      %v3179 = vmul.f32 %v3159, %v3165
      %v3180 = vmul.f32 %v3160, %v3165
      %v3181 = vmul.f32 %v3161, %v3165
      %v3182 = vlaneseq
      %v3183 = vshrl.u32 %v3182, 7
      %v3184 = vsub.s32 3, %v3183
      %v3185 = vrot.slane %v2305, %v3184
      %v3186 = vadd.f32 %v3166, %v3185
      %v3187 = vadd.f32 %v3167, %v3185
      %v3188 = vadd.f32 %v3168, %v3185
      %v3189 = vadd.f32 %v3169, %v3185
      %v3190 = vadd.f32 %v3170, %v3185
      %v3191 = vadd.f32 %v3171, %v3185
      %v3192 = vadd.f32 %v3172, %v3185
      %v3193 = vadd.f32 %v3173, %v3185
      %v3194 = vadd.f32 %v3174, %v3185
      %v3195 = vadd.f32 %v3175, %v3185
      %v3196 = vadd.f32 %v3176, %v3185
      %v3197 = vadd.f32 %v3177, %v3185
      %v3198 = vadd.f32 %v3178, %v3185
      %v3199 = vadd.f32 %v3179, %v3185
      %v3200 = vadd.f32 %v3180, %v3185
      %v3201 = vadd.f32 %v3181, %v3185
      %v3202 = vmax.f32 %v3186, 0.0
      %v3203 = vmax.f32 %v3187, 0.0
      %v3204 = vmax.f32 %v3188, 0.0
      %v3205 = vmax.f32 %v3189, 0.0
      %v3206 = vmax.f32 %v3190, 0.0
      %v3207 = vmax.f32 %v3191, 0.0
      %v3208 = vmax.f32 %v3192, 0.0
      %v3209 = vmax.f32 %v3193, 0.0
      %v3210 = vmax.f32 %v3194, 0.0
      %v3211 = vmax.f32 %v3195, 0.0
      %v3212 = vmax.f32 %v3196, 0.0
      %v3213 = vmax.f32 %v3197, 0.0
      %v3214 = vmax.f32 %v3198, 0.0
      %v3215 = vmax.f32 %v3199, 0.0
      %v3216 = vmax.f32 %v3200, 0.0
      %v3217 = vmax.f32 %v3201, 0.0
      %v3218 = vadd.f32 %v3202, %v678
      %v3219 = vadd.f32 %v3203, %v679
      %v3220 = vadd.f32 %v3204, %v680
      %v3221 = vadd.f32 %v3205, %v681
      %v3222 = vadd.f32 %v3206, %v682
      %v3223 = vadd.f32 %v3207, %v683
      %v3224 = vadd.f32 %v3208, %v684
      %v3225 = vadd.f32 %v3209, %v685
      %v3226 = vadd.f32 %v3210, %v686
      %v3227 = vadd.f32 %v3211, %v687
      %v3228 = vadd.f32 %v3212, %v688
      %v3229 = vadd.f32 %v3213, %v689
      %v3230 = vadd.f32 %v3214, %v690
      %v3231 = vadd.f32 %v3215, %v691
      %v3232 = vadd.f32 %v3216, %v692
      %v3233 = vadd.f32 %v3217, %v693
      %3234 = vst.msk [vmem:[%s662] sm:$0xff] %vm1736, %v3218
      %3235 = vst.msk [vmem:[%s662 + $0x8] sm:$0xff] %vm1736, %v3219
      %3236 = vst.msk [vmem:[%s662 + $0x10] sm:$0xff] %vm1736, %v3220
      %3237 = vst.msk [vmem:[%s662 + $0x18] sm:$0xff] %vm1736, %v3221
      %3238 = vst.msk [vmem:[%s662 + $0x20] sm:$0xff] %vm1736, %v3222
      %3239 = vst.msk [vmem:[%s662 + $0x28] sm:$0xff] %vm1736, %v3223
      %3240 = vst.msk [vmem:[%s662 + $0x30] sm:$0xff] %vm1736, %v3224
      %3241 = vst.msk [vmem:[%s662 + $0x38] sm:$0xff] %vm1736, %v3225
      %3242 = vst.msk [vmem:[%s662 + $0x40] sm:$0xff] %vm1736, %v3226
      %3243 = vst.msk [vmem:[%s662 + $0x48] sm:$0xff] %vm1736, %v3227
      %3244 = vst.msk [vmem:[%s662 + $0x50] sm:$0xff] %vm1736, %v3228
      %3245 = vst.msk [vmem:[%s662 + $0x58] sm:$0xff] %vm1736, %v3229
      %3246 = vst.msk [vmem:[%s662 + $0x60] sm:$0xff] %vm1736, %v3230
      %3247 = vst.msk [vmem:[%s662 + $0x68] sm:$0xff] %vm1736, %v3231
      %3248 = vst.msk [vmem:[%s662 + $0x70] sm:$0xff] %vm1736, %v3232
      %3249 = vst.msk [vmem:[%s662 + $0x78] sm:$0xff] %vm1736, %v3233
      %s3250 = smul.u32 16, %s25
      %p3251 = scmp.lt.s32.totalorder %s24, 1
      %s3252 = scalar_select %p3251, %s24, 1
      %p3253 = scmp.lt.s32.totalorder %s3250, 31
      %s3254 = scalar_select %p3253, %s3250, 31
      %s3255 = smul.addr %s3252, 32
      %s3256 = sadd.s32 %s3254, %s3255
      %s3257 = smul.addr %s3256, 8
      %s3258 = scalar_lea.vmem %s9, %s3257
      // Predicated region
      $region57: #{simfusion_forward.1} parent=55 // pred_check
        %p3259 = pneg %p315
      $region58: #{simfusion_forward.1} parent=55 // pred_check_branch
        %3261 = sbr.rel (%p3259) target = $region60
      $region59: #{simfusion_forward.1} parent=55 // pred_region
        %s3262 = smul.u32 16, %s25
      $region60: #{simfusion_forward.1} parent=55 // pred_fallthru
        _
    $region56: #{simfusion_forward.1} parent=5 // pred_fallthru
      _
    %p3263 = scmp.le.s32.totalorder 2, %s15
    // Predicated region
    $region61: #{simfusion_forward.1} parent=5 // pred_check
      %p3264 = pneg %p3263
    $region62: #{simfusion_forward.1} parent=5 // pred_check_branch
      %3266 = sbr.rel (%p3264) target = $region64
    $region63: #{simfusion_forward.1} parent=5 // pred_region
      %s3267 = ssub.s32 %s15, 2
      // Predicated region
      $region65: #{simfusion_forward.1} parent=63 // pred_check
        %p3268 = pneg %p321
      $region66: #{simfusion_forward.1} parent=63 // pred_check_branch
        %3270 = sbr.rel (%p3268) target = $region68
      $region67: #{simfusion_forward.1} parent=63 // pred_region
        %s3271 = smul.u32 16, %s27
        %p3272 = scmp.lt.s32.totalorder %s26, 1
        %s3273 = scalar_select %p3272, %s26, 1
        %p3274 = scmp.lt.s32.totalorder %s3271, 31
        %s3275 = scalar_select %p3274, %s3271, 31
        %s3276 = smul.addr %s3273, 32
        %s3277 = sadd.s32 %s3275, %s3276
        %s3278 = smul.addr %s3277, 8
        %s3279 = scalar_lea.vmem %s9, %s3278
      $region68: #{simfusion_forward.1} parent=63 // pred_fallthru
        _
    $region64: #{simfusion_forward.1} parent=5 // pred_fallthru
      _
  $region6: #{simfusion_forward.1} parent=0 // loop_footer
    %s19 = sadd.s32 1, %s15
  $region7: #{simfusion_forward.1} parent=0 // loop_footer_branch
    %14 = sbr.rel target = $region3
  $region8: #{simfusion_forward.1} parent=0 // loop_exit
    _

</llo_original>
